<compile_context>
chip_gen: v7x
topology: tpu7x:2x2x1
jax: 0.10.0
libtpu: 0.0.40
codegen_flags: <defaults>
</compile_context>

<pallas_src>
import functools

import jax
import jax.numpy as jnp
from jax.experimental import pallas as pl
from jax.experimental.pallas import tpu as pltpu


def _round_up(x, m):
    return (x + m - 1) // m * m


def _selector_matrices(F, T, k, dtype=jnp.float32):
    """Constant 0/1 matrices expressing LN reduction, conv zero-padding and
    un-padding as lane-dense MXU matmuls (constant-folded by XLA)."""
    p = k // 2
    Tp, Fp = T + 2 * p, F + 2 * p
    FT = F * T
    W = F * Tp                              # conv outputs enumerated on the T-padded grid
    Rpad = _round_up(Fp * Tp + k - 1, 128)  # flat padded slab width, lane-tile aligned

    s = jnp.arange(FT)
    f_idx, t_idx = s // T, s % T
    # LayerNorm(n_feats): sum the F entries that share a time index.
    sel = (t_idx[:, None] == jnp.arange(T)[None, :]).astype(dtype)       # (FT, T)
    selt = jnp.transpose(sel)                                            # (T, FT)
    # Conv: place activations into the zero-padded flat (Fp, Tp) slab ...
    place = (f_idx + p) * Tp + (t_idx + p)
    pmat = (place[:, None] == jnp.arange(Rpad)[None, :]).astype(dtype)   # (FT, Rpad)
    # ... and select valid output columns back out (drops the T halo in-kernel).
    rsel = f_idx * Tp + t_idx
    qmat = (jnp.arange(W)[:, None] == rsel[None, :]).astype(dtype)       # (W, FT)
    return sel, selt, pmat, qmat, Tp, W, Rpad


def residual_cnn_kernel(x_ref, sel_ref, selt_ref, pmat_ref, qmat_ref,
                        g1_ref, be1_ref, w1_ref, b1_ref,
                        g2_ref, be2_ref, w2_ref, b2_ref,
                        o_ref, *, C, F, k, Tp, W):
    inv_f = 1.0 / float(F)

    def ln_gelu(h, g_ref, b_ref):
        # LayerNorm over n_feats directly on the folded lane-dense (C, F*T) layout:
        # the reduction is a matmul with a 0/1 selector (MXU), stats are tiny (C, T)
        # arrays broadcast back with selT.  No cross-lane VPU reduction needed.
        s1 = jnp.dot(h, sel_ref[...], preferred_element_type=jnp.float32)       # (C, T)
        s2 = jnp.dot(h * h, sel_ref[...], preferred_element_type=jnp.float32)   # (C, T)
        mean = s1 * inv_f
        var = s2 * inv_f - mean * mean
        rstd = jax.lax.rsqrt(var + 1e-5)
        mean_b = jnp.dot(mean, selt_ref[...], preferred_element_type=jnp.float32)
        rstd_b = jnp.dot(rstd, selt_ref[...], preferred_element_type=jnp.float32)
        y = (h - mean_b) * rstd_b * g_ref[...] + b_ref[...]
        # TODO(synk): PyTorch F.gelu defaults to exact erf; tanh form keeps the
        # transcendental on the otherwise idle EUP slot (perf feedback), ~1e-4 shift.
        return jax.nn.gelu(y, approximate=True)

    def conv_same(h, w_ref, bias_ref):
        # 'same' conv, stride 1: zero-padded flat slab via placement matmul, then one
        # (Cout,Cin)@(Cin,rows) MXU dot per tap into a lane-dense (C, W) accumulator
        # (~3 vregs, no spills); the un-padding selector removes halo columns
        # in-kernel so the output store is exactly the valid (C, F*T) block.
        slab = jnp.dot(h, pmat_ref[...], preferred_element_type=jnp.float32)    # (Cin, Rpad)
        acc = jnp.zeros((C, W), jnp.float32)
        for di in range(k):
            for dj in range(k):
                off = di * Tp + dj                                              # static tap offset
                acc = acc + jnp.dot(w_ref[di * k + dj], slab[:, off:off + W],
                                    preferred_element_type=jnp.float32)
        out = jnp.dot(acc, qmat_ref[...], preferred_element_type=jnp.float32)   # (C, F*T)
        return out + bias_ref[...]

    x = x_ref[0]                                   # (C, F*T), lane-dense load
    h = ln_gelu(x, g1_ref, be1_ref)
    h = conv_same(h, w1_ref, b1_ref)
    h = ln_gelu(h, g2_ref, be2_ref)
    h = conv_same(h, w2_ref, b2_ref)
    o_ref[0] = (h + x).astype(o_ref.dtype)         # fused residual add, lane-dense store


def residual_cnn_forward(x, params):
    """x: (batch, channels, n_feats, time) -> same shape. PyTorch ResidualCNN, eval mode."""
    B, C, F, T = x.shape
    cout, cin, kh, kw = params["w1"].shape
    assert cin == C and cout == C and kh == kw, "residual add needs in==out channels"
    k = kh
    FT = F * T
    # TODO(synk): training-mode dropout mask (pltpu.prng_random_bits) not applied;
    # nn.Dropout is identity in eval mode.

    sel, selt, pmat, qmat, Tp, W, Rpad = _selector_matrices(F, T, k)

    def tapify(w):  # (Cout, Cin, k, k) -> (k*k, Cout, Cin)
        return jnp.transpose(w, (2, 3, 0, 1)).reshape(k * k, w.shape[0], w.shape[1]) \
                  .astype(jnp.float32)

    x_flat = x.reshape(B, C, FT).astype(jnp.float32)          # free trailing-dim merge
    g1 = jnp.repeat(params["ln1_g"].astype(jnp.float32), T).reshape(1, FT)
    be1 = jnp.repeat(params["ln1_b"].astype(jnp.float32), T).reshape(1, FT)
    g2 = jnp.repeat(params["ln2_g"].astype(jnp.float32), T).reshape(1, FT)
    be2 = jnp.repeat(params["ln2_b"].astype(jnp.float32), T).reshape(1, FT)
    w1, w2 = tapify(params["w1"]), tapify(params["w2"])
    b1 = params["b1"].reshape(C, 1).astype(jnp.float32)
    b2 = params["b2"].reshape(C, 1).astype(jnp.float32)

    kern = functools.partial(residual_cnn_kernel, C=C, F=F, k=k, Tp=Tp, W=W)

    def bcast(shape):   # step-invariant block: full array, DMA'd once
        return pl.BlockSpec(shape, lambda b: (0,) * len(shape))

    out_flat = pl.pallas_call(
        kern,
        out_shape=jax.ShapeDtypeStruct((B, C, FT), jnp.float32),
        grid=(B,),
        in_specs=[
            pl.BlockSpec((1, C, FT), lambda b: (b, 0, 0)),
            bcast((FT, T)), bcast((T, FT)), bcast((FT, Rpad)), bcast((W, FT)),
            bcast((1, FT)), bcast((1, FT)),
            bcast((k * k, C, C)), bcast((C, 1)),
            bcast((1, FT)), bcast((1, FT)),
            bcast((k * k, C, C)), bcast((C, 1)),
        ],
        out_specs=pl.BlockSpec((1, C, FT), lambda b: (b, 0, 0)),
        compiler_params=pltpu.CompilerParams(
            dimension_semantics=("parallel",)),
    )(x_flat, sel, selt, pmat, qmat, g1, be1, w1, b1, g2, be2, w2, b2)

    return out_flat.reshape(B, C, F, T)


# ---------------------------------------------------------------------------
# Deterministic parameter init (PyTorch-ish conv init; LN affine perturbed so the
# affine path is exercised).
# ---------------------------------------------------------------------------
def init_params(key, in_channels, out_channels, kernel, n_feats):
    ks = jax.random.split(key, 8)

    def conv_init(kw, kb, cout, cin):
        bound = 1.0 / float(cin * kernel * kernel) ** 0.5
        w = jax.random.uniform(kw, (cout, cin, kernel, kernel), jnp.float32,
                               -bound, bound)
        b = jax.random.uniform(kb, (cout,), jnp.float32, -bound, bound)
        return w, b

    w1, b1 = conv_init(ks[0], ks[1], out_channels, in_channels)
    w2, b2 = conv_init(ks[2], ks[3], out_channels, out_channels)
    return {
        "ln1_g": 1.0 + 0.1 * jax.random.normal(ks[4], (n_feats,), jnp.float32),
        "ln1_b": 0.1 * jax.random.normal(ks[5], (n_feats,), jnp.float32),
        "ln2_g": 1.0 + 0.1 * jax.random.normal(ks[6], (n_feats,), jnp.float32),
        "ln2_b": 0.1 * jax.random.normal(ks[7], (n_feats,), jnp.float32),
        "w1": w1, "b1": b1, "w2": w2, "b2": b2,
    }


# ---------------------------------------------------------------------------
# Pure-JAX reference (PyTorch semantics: exact GELU, LN eps 1e-5) for correctness.
# ---------------------------------------------------------------------------
def ref_forward(x, p):
    _, _, k, _ = p["w1"].shape
    pad = k // 2

    def cnn_layer_norm(z, g, b):
        zt = jnp.transpose(z, (0, 1, 3, 2))                  # (B, C, T, F)
        m = zt.mean(-1, keepdims=True)
        v = ((zt - m) ** 2).mean(-1, keepdims=True)
        zn = (zt - m) / jnp.sqrt(v + 1e-5) * g + b
        return jnp.transpose(zn, (0, 1, 3, 2))

    def conv(z, w, b):
        y = jax.lax.conv_general_dilated(
            z, w, window_strides=(1, 1),
            padding=((pad, pad), (pad, pad)),
            dimension_numbers=("NCHW", "OIHW", "NCHW"),
            precision=jax.lax.Precision.HIGHEST)
        return y + b.reshape(1, -1, 1, 1)

    r = x
    y = jax.nn.gelu(cnn_layer_norm(x, p["ln1_g"], p["ln1_b"]), approximate=False)
    y = conv(y, p["w1"], p["b1"])
    y = jax.nn.gelu(cnn_layer_norm(y, p["ln2_g"], p["ln2_b"]), approximate=False)
    y = conv(y, p["w2"], p["b2"])
    return y + r


if __name__ == "__main__":
    # ResidualCNN(in_channels=4, out_channels=4, kernel=3, stride=1,
    #             dropout=0.1, n_feats=16) on (batch=2, 4, 16, time=16).
    batch, channels, n_feats, n_time = 2, 4, 16, 16
    kernel_size = 3

    key = jax.random.PRNGKey(0)
    kx, kp = jax.random.split(key)
    x = jax.random.normal(kx, (batch, channels, n_feats, n_time), jnp.float32)
    params = init_params(kp, channels, channels, kernel_size, n_feats)

    fwd = jax.jit(residual_cnn_forward)
    out = fwd(x, params)
    jax.block_until_ready(out)

    ref = ref_forward(x, params)
    assert out.shape == x.shape, out.shape
    err = float(jnp.max(jnp.abs(out - ref)))
    assert err < 2e-2, f"max abs err {err}"
    print("KERNEL_OK")
</pallas_src>

<mosaic_0001>
module attributes {stable_mosaic.version = 11 : i64} {
  func.func @residual_cnn_kernel(%arg0: i32, %arg1: memref<1x4x256xf32, #tpu.memory_space<vmem>>, %arg2: memref<256x16xf32, #tpu.memory_space<vmem>>, %arg3: memref<16x256xf32, #tpu.memory_space<vmem>>, %arg4: memref<256x384xf32, #tpu.memory_space<vmem>>, %arg5: memref<288x256xf32, #tpu.memory_space<vmem>>, %arg6: memref<1x256xf32, #tpu.memory_space<vmem>>, %arg7: memref<1x256xf32, #tpu.memory_space<vmem>>, %arg8: memref<9x4x4xf32, #tpu.memory_space<vmem>>, %arg9: memref<4x1xf32, #tpu.memory_space<vmem>>, %arg10: memref<1x256xf32, #tpu.memory_space<vmem>>, %arg11: memref<1x256xf32, #tpu.memory_space<vmem>>, %arg12: memref<9x4x4xf32, #tpu.memory_space<vmem>>, %arg13: memref<4x1xf32, #tpu.memory_space<vmem>>, %arg14: memref<1x4x256xf32, #tpu.memory_space<vmem>>) attributes {dimension_semantics = [#tpu.dimension_semantics<parallel>], iteration_bounds = array<i64: 2>, scalar_prefetch = 0 : i64, scratch_operands = 0 : i64, tpu.core_type = #tpu.core_type<tc>, window_params = [{transform_indices = @transform_0, window_bounds = array<i64: 1, 4, 256>}, {pipeline_mode = #tpu.pipeline_mode<synchronous>, transform_indices = @transform_1, window_bounds = array<i64: 256, 16>}, {pipeline_mode = #tpu.pipeline_mode<synchronous>, transform_indices = @transform_2, window_bounds = array<i64: 16, 256>}, {pipeline_mode = #tpu.pipeline_mode<synchronous>, transform_indices = @transform_3, window_bounds = array<i64: 256, 384>}, {pipeline_mode = #tpu.pipeline_mode<synchronous>, transform_indices = @transform_4, window_bounds = array<i64: 288, 256>}, {pipeline_mode = #tpu.pipeline_mode<synchronous>, transform_indices = @transform_5, window_bounds = array<i64: 1, 256>}, {pipeline_mode = #tpu.pipeline_mode<synchronous>, transform_indices = @transform_6, window_bounds = array<i64: 1, 256>}, {pipeline_mode = #tpu.pipeline_mode<synchronous>, transform_indices = @transform_7, window_bounds = array<i64: 9, 4, 4>}, {pipeline_mode = #tpu.pipeline_mode<synchronous>, transform_indices = @transform_8, window_bounds = array<i64: 4, 1>}, {pipeline_mode = #tpu.pipeline_mode<synchronous>, transform_indices = @transform_9, window_bounds = array<i64: 1, 256>}, {pipeline_mode = #tpu.pipeline_mode<synchronous>, transform_indices = @transform_10, window_bounds = array<i64: 1, 256>}, {pipeline_mode = #tpu.pipeline_mode<synchronous>, transform_indices = @transform_11, window_bounds = array<i64: 9, 4, 4>}, {pipeline_mode = #tpu.pipeline_mode<synchronous>, transform_indices = @transform_12, window_bounds = array<i64: 4, 1>}, {transform_indices = @transform_13, window_bounds = array<i64: 1, 4, 256>}]} {
    %c0 = arith.constant 0 : index
    %c0_0 = arith.constant 0 : index
    %c0_1 = arith.constant 0 : index
    %0 = vector.load %arg1[%c0, %c0_0, %c0_1] : memref<1x4x256xf32, #tpu.memory_space<vmem>>, vector<1x4x256xf32>
    %1 = vector.shape_cast %0 : vector<1x4x256xf32> to vector<4x256xf32>
    %c0_2 = arith.constant 0 : index
    %c0_3 = arith.constant 0 : index
    %2 = vector.load %arg2[%c0_2, %c0_3] : memref<256x16xf32, #tpu.memory_space<vmem>>, vector<256x16xf32>
    %cst = arith.constant dense<0.000000e+00> : vector<4x16xf32>
    %3 = tpu.matmul %1, %2, %cst {dimension_numbers = #tpu.dot_dimension_numbers<[1], [0], [0], [1], [0, 0, 1, 1], [], []>} : vector<4x256xf32>, vector<256x16xf32>, vector<4x16xf32> -> vector<4x16xf32>
    %4 = arith.mulf %1, %1 : vector<4x256xf32>
    %c0_4 = arith.constant 0 : index
    %c0_5 = arith.constant 0 : index
    %5 = vector.load %arg2[%c0_4, %c0_5] : memref<256x16xf32, #tpu.memory_space<vmem>>, vector<256x16xf32>
    %cst_6 = arith.constant dense<0.000000e+00> : vector<4x16xf32>
    %6 = tpu.matmul %4, %5, %cst_6 {dimension_numbers = #tpu.dot_dimension_numbers<[1], [0], [0], [1], [0, 0, 1, 1], [], []>} : vector<4x256xf32>, vector<256x16xf32>, vector<4x16xf32> -> vector<4x16xf32>
    %cst_7 = arith.constant 6.250000e-02 : f32
    %7 = vector.broadcast %cst_7 : f32 to vector<4x16xf32>
    %8 = arith.mulf %3, %7 : vector<4x16xf32>
    %cst_8 = arith.constant 6.250000e-02 : f32
    %9 = vector.broadcast %cst_8 : f32 to vector<4x16xf32>
    %10 = arith.mulf %6, %9 : vector<4x16xf32>
    %11 = arith.mulf %8, %8 : vector<4x16xf32>
    %12 = arith.subf %10, %11 : vector<4x16xf32>
    %cst_9 = arith.constant 9.99999974E-6 : f32
    %13 = vector.broadcast %cst_9 : f32 to vector<4x16xf32>
    %14 = arith.addf %12, %13 : vector<4x16xf32>
    %15 = math.rsqrt %14 : vector<4x16xf32>
    %c0_10 = arith.constant 0 : index
    %c0_11 = arith.constant 0 : index
    %16 = vector.load %arg3[%c0_10, %c0_11] : memref<16x256xf32, #tpu.memory_space<vmem>>, vector<16x256xf32>
    %cst_12 = arith.constant dense<0.000000e+00> : vector<4x256xf32>
    %17 = tpu.matmul %8, %16, %cst_12 {dimension_numbers = #tpu.dot_dimension_numbers<[1], [0], [0], [1], [0, 0, 1, 1], [], []>} : vector<4x16xf32>, vector<16x256xf32>, vector<4x256xf32> -> vector<4x256xf32>
    %c0_13 = arith.constant 0 : index
    %c0_14 = arith.constant 0 : index
    %18 = vector.load %arg3[%c0_13, %c0_14] : memref<16x256xf32, #tpu.memory_space<vmem>>, vector<16x256xf32>
    %cst_15 = arith.constant dense<0.000000e+00> : vector<4x256xf32>
    %19 = tpu.matmul %15, %18, %cst_15 {dimension_numbers = #tpu.dot_dimension_numbers<[1], [0], [0], [1], [0, 0, 1, 1], [], []>} : vector<4x16xf32>, vector<16x256xf32>, vector<4x256xf32> -> vector<4x256xf32>
    %20 = arith.subf %1, %17 : vector<4x256xf32>
    %21 = arith.mulf %20, %19 : vector<4x256xf32>
    %c0_16 = arith.constant 0 : index
    %c0_17 = arith.constant 0 : index
    %22 = vector.load %arg6[%c0_16, %c0_17] : memref<1x256xf32, #tpu.memory_space<vmem>>, vector<1x256xf32>
    %23 = vector.broadcast %22 : vector<1x256xf32> to vector<4x256xf32>
    %24 = arith.mulf %21, %23 : vector<4x256xf32>
    %c0_18 = arith.constant 0 : index
    %c0_19 = arith.constant 0 : index
    %25 = vector.load %arg7[%c0_18, %c0_19] : memref<1x256xf32, #tpu.memory_space<vmem>>, vector<1x256xf32>
    %26 = vector.broadcast %25 : vector<1x256xf32> to vector<4x256xf32>
    %27 = arith.addf %24, %26 : vector<4x256xf32>
    %28 = arith.mulf %27, %27 : vector<4x256xf32>
    %29 = arith.mulf %27, %28 : vector<4x256xf32>
    %cst_20 = arith.constant 4.471500e-02 : f32
    %30 = vector.broadcast %cst_20 : f32 to vector<4x256xf32>
    %31 = arith.mulf %30, %29 : vector<4x256xf32>
    %32 = arith.addf %27, %31 : vector<4x256xf32>
    %cst_21 = arith.constant 0.797884583 : f32
    %33 = vector.broadcast %cst_21 : f32 to vector<4x256xf32>
    %34 = arith.mulf %33, %32 : vector<4x256xf32>
    %35 = math.tanh %34 : vector<4x256xf32>
    %cst_22 = arith.constant 1.000000e+00 : f32
    %36 = vector.broadcast %cst_22 : f32 to vector<4x256xf32>
    %37 = arith.addf %36, %35 : vector<4x256xf32>
    %cst_23 = arith.constant 5.000000e-01 : f32
    %38 = vector.broadcast %cst_23 : f32 to vector<4x256xf32>
    %39 = arith.mulf %38, %37 : vector<4x256xf32>
    %40 = arith.mulf %27, %39 : vector<4x256xf32>
    %c0_24 = arith.constant 0 : index
    %c0_25 = arith.constant 0 : index
    %41 = vector.load %arg4[%c0_24, %c0_25] : memref<256x384xf32, #tpu.memory_space<vmem>>, vector<256x384xf32>
    %cst_26 = arith.constant dense<0.000000e+00> : vector<4x384xf32>
    %42 = tpu.matmul %40, %41, %cst_26 {dimension_numbers = #tpu.dot_dimension_numbers<[1], [0], [0], [1], [0, 0, 1, 1], [], []>} : vector<4x256xf32>, vector<256x384xf32>, vector<4x384xf32> -> vector<4x384xf32>
    %cst_27 = arith.constant 0.000000e+00 : f32
    %43 = vector.broadcast %cst_27 : f32 to vector<4x288xf32>
    %c0_28 = arith.constant 0 : index
    %c0_29 = arith.constant 0 : index
    %c0_30 = arith.constant 0 : index
    %44 = vector.load %arg8[%c0_28, %c0_29, %c0_30] : memref<9x4x4xf32, #tpu.memory_space<vmem>>, vector<1x4x4xf32>
    %45 = vector.shape_cast %44 : vector<1x4x4xf32> to vector<4x4xf32>
    %46 = vector.extract_strided_slice %42 {offsets = [0, 0], sizes = [4, 288], strides = [1, 1]} : vector<4x384xf32> to vector<4x288xf32>
    %cst_31 = arith.constant dense<0.000000e+00> : vector<4x288xf32>
    %47 = tpu.matmul %45, %46, %cst_31 {dimension_numbers = #tpu.dot_dimension_numbers<[1], [0], [0], [1], [0, 0, 1, 1], [], []>} : vector<4x4xf32>, vector<4x288xf32>, vector<4x288xf32> -> vector<4x288xf32>
    %48 = arith.addf %43, %47 : vector<4x288xf32>
    %c1 = arith.constant 1 : index
    %c0_32 = arith.constant 0 : index
    %c0_33 = arith.constant 0 : index
    %49 = vector.load %arg8[%c1, %c0_32, %c0_33] : memref<9x4x4xf32, #tpu.memory_space<vmem>>, vector<1x4x4xf32>
    %50 = vector.shape_cast %49 : vector<1x4x4xf32> to vector<4x4xf32>
    %51 = vector.extract_strided_slice %42 {offsets = [0, 1], sizes = [4, 288], strides = [1, 1]} : vector<4x384xf32> to vector<4x288xf32>
    %cst_34 = arith.constant dense<0.000000e+00> : vector<4x288xf32>
    %52 = tpu.matmul %50, %51, %cst_34 {dimension_numbers = #tpu.dot_dimension_numbers<[1], [0], [0], [1], [0, 0, 1, 1], [], []>} : vector<4x4xf32>, vector<4x288xf32>, vector<4x288xf32> -> vector<4x288xf32>
    %53 = arith.addf %48, %52 : vector<4x288xf32>
    %c2 = arith.constant 2 : index
    %c0_35 = arith.constant 0 : index
    %c0_36 = arith.constant 0 : index
    %54 = vector.load %arg8[%c2, %c0_35, %c0_36] : memref<9x4x4xf32, #tpu.memory_space<vmem>>, vector<1x4x4xf32>
    %55 = vector.shape_cast %54 : vector<1x4x4xf32> to vector<4x4xf32>
    %56 = vector.extract_strided_slice %42 {offsets = [0, 2], sizes = [4, 288], strides = [1, 1]} : vector<4x384xf32> to vector<4x288xf32>
    %cst_37 = arith.constant dense<0.000000e+00> : vector<4x288xf32>
    %57 = tpu.matmul %55, %56, %cst_37 {dimension_numbers = #tpu.dot_dimension_numbers<[1], [0], [0], [1], [0, 0, 1, 1], [], []>} : vector<4x4xf32>, vector<4x288xf32>, vector<4x288xf32> -> vector<4x288xf32>
    %58 = arith.addf %53, %57 : vector<4x288xf32>
    %c3 = arith.constant 3 : index
    %c0_38 = arith.constant 0 : index
    %c0_39 = arith.constant 0 : index
    %59 = vector.load %arg8[%c3, %c0_38, %c0_39] : memref<9x4x4xf32, #tpu.memory_space<vmem>>, vector<1x4x4xf32>
    %60 = vector.shape_cast %59 : vector<1x4x4xf32> to vector<4x4xf32>
    %61 = vector.extract_strided_slice %42 {offsets = [0, 18], sizes = [4, 288], strides = [1, 1]} : vector<4x384xf32> to vector<4x288xf32>
    %cst_40 = arith.constant dense<0.000000e+00> : vector<4x288xf32>
    %62 = tpu.matmul %60, %61, %cst_40 {dimension_numbers = #tpu.dot_dimension_numbers<[1], [0], [0], [1], [0, 0, 1, 1], [], []>} : vector<4x4xf32>, vector<4x288xf32>, vector<4x288xf32> -> vector<4x288xf32>
    %63 = arith.addf %58, %62 : vector<4x288xf32>
    %c4 = arith.constant 4 : index
    %c0_41 = arith.constant 0 : index
    %c0_42 = arith.constant 0 : index
    %64 = vector.load %arg8[%c4, %c0_41, %c0_42] : memref<9x4x4xf32, #tpu.memory_space<vmem>>, vector<1x4x4xf32>
    %65 = vector.shape_cast %64 : vector<1x4x4xf32> to vector<4x4xf32>
    %66 = vector.extract_strided_slice %42 {offsets = [0, 19], sizes = [4, 288], strides = [1, 1]} : vector<4x384xf32> to vector<4x288xf32>
    %cst_43 = arith.constant dense<0.000000e+00> : vector<4x288xf32>
    %67 = tpu.matmul %65, %66, %cst_43 {dimension_numbers = #tpu.dot_dimension_numbers<[1], [0], [0], [1], [0, 0, 1, 1], [], []>} : vector<4x4xf32>, vector<4x288xf32>, vector<4x288xf32> -> vector<4x288xf32>
    %68 = arith.addf %63, %67 : vector<4x288xf32>
    %c5 = arith.constant 5 : index
    %c0_44 = arith.constant 0 : index
    %c0_45 = arith.constant 0 : index
    %69 = vector.load %arg8[%c5, %c0_44, %c0_45] : memref<9x4x4xf32, #tpu.memory_space<vmem>>, vector<1x4x4xf32>
    %70 = vector.shape_cast %69 : vector<1x4x4xf32> to vector<4x4xf32>
    %71 = vector.extract_strided_slice %42 {offsets = [0, 20], sizes = [4, 288], strides = [1, 1]} : vector<4x384xf32> to vector<4x288xf32>
    %cst_46 = arith.constant dense<0.000000e+00> : vector<4x288xf32>
    %72 = tpu.matmul %70, %71, %cst_46 {dimension_numbers = #tpu.dot_dimension_numbers<[1], [0], [0], [1], [0, 0, 1, 1], [], []>} : vector<4x4xf32>, vector<4x288xf32>, vector<4x288xf32> -> vector<4x288xf32>
    %73 = arith.addf %68, %72 : vector<4x288xf32>
    %c6 = arith.constant 6 : index
    %c0_47 = arith.constant 0 : index
    %c0_48 = arith.constant 0 : index
    %74 = vector.load %arg8[%c6, %c0_47, %c0_48] : memref<9x4x4xf32, #tpu.memory_space<vmem>>, vector<1x4x4xf32>
    %75 = vector.shape_cast %74 : vector<1x4x4xf32> to vector<4x4xf32>
    %76 = vector.extract_strided_slice %42 {offsets = [0, 36], sizes = [4, 288], strides = [1, 1]} : vector<4x384xf32> to vector<4x288xf32>
    %cst_49 = arith.constant dense<0.000000e+00> : vector<4x288xf32>
    %77 = tpu.matmul %75, %76, %cst_49 {dimension_numbers = #tpu.dot_dimension_numbers<[1], [0], [0], [1], [0, 0, 1, 1], [], []>} : vector<4x4xf32>, vector<4x288xf32>, vector<4x288xf32> -> vector<4x288xf32>
    %78 = arith.addf %73, %77 : vector<4x288xf32>
    %c7 = arith.constant 7 : index
    %c0_50 = arith.constant 0 : index
    %c0_51 = arith.constant 0 : index
    %79 = vector.load %arg8[%c7, %c0_50, %c0_51] : memref<9x4x4xf32, #tpu.memory_space<vmem>>, vector<1x4x4xf32>
    %80 = vector.shape_cast %79 : vector<1x4x4xf32> to vector<4x4xf32>
    %81 = vector.extract_strided_slice %42 {offsets = [0, 37], sizes = [4, 288], strides = [1, 1]} : vector<4x384xf32> to vector<4x288xf32>
    %cst_52 = arith.constant dense<0.000000e+00> : vector<4x288xf32>
    %82 = tpu.matmul %80, %81, %cst_52 {dimension_numbers = #tpu.dot_dimension_numbers<[1], [0], [0], [1], [0, 0, 1, 1], [], []>} : vector<4x4xf32>, vector<4x288xf32>, vector<4x288xf32> -> vector<4x288xf32>
    %83 = arith.addf %78, %82 : vector<4x288xf32>
    %c8 = arith.constant 8 : index
    %c0_53 = arith.constant 0 : index
    %c0_54 = arith.constant 0 : index
    %84 = vector.load %arg8[%c8, %c0_53, %c0_54] : memref<9x4x4xf32, #tpu.memory_space<vmem>>, vector<1x4x4xf32>
    %85 = vector.shape_cast %84 : vector<1x4x4xf32> to vector<4x4xf32>
    %86 = vector.extract_strided_slice %42 {offsets = [0, 38], sizes = [4, 288], strides = [1, 1]} : vector<4x384xf32> to vector<4x288xf32>
    %cst_55 = arith.constant dense<0.000000e+00> : vector<4x288xf32>
    %87 = tpu.matmul %85, %86, %cst_55 {dimension_numbers = #tpu.dot_dimension_numbers<[1], [0], [0], [1], [0, 0, 1, 1], [], []>} : vector<4x4xf32>, vector<4x288xf32>, vector<4x288xf32> -> vector<4x288xf32>
    %88 = arith.addf %83, %87 : vector<4x288xf32>
    %c0_56 = arith.constant 0 : index
    %c0_57 = arith.constant 0 : index
    %89 = vector.load %arg5[%c0_56, %c0_57] : memref<288x256xf32, #tpu.memory_space<vmem>>, vector<288x256xf32>
    %cst_58 = arith.constant dense<0.000000e+00> : vector<4x256xf32>
    %90 = tpu.matmul %88, %89, %cst_58 {dimension_numbers = #tpu.dot_dimension_numbers<[1], [0], [0], [1], [0, 0, 1, 1], [], []>} : vector<4x288xf32>, vector<288x256xf32>, vector<4x256xf32> -> vector<4x256xf32>
    %c0_59 = arith.constant 0 : index
    %c0_60 = arith.constant 0 : index
    %91 = vector.load %arg9[%c0_59, %c0_60] : memref<4x1xf32, #tpu.memory_space<vmem>>, vector<4x1xf32>
    %92 = vector.broadcast %91 : vector<4x1xf32> to vector<4x256xf32>
    %93 = arith.addf %90, %92 : vector<4x256xf32>
    %c0_61 = arith.constant 0 : index
    %c0_62 = arith.constant 0 : index
    %94 = vector.load %arg2[%c0_61, %c0_62] : memref<256x16xf32, #tpu.memory_space<vmem>>, vector<256x16xf32>
    %cst_63 = arith.constant dense<0.000000e+00> : vector<4x16xf32>
    %95 = tpu.matmul %93, %94, %cst_63 {dimension_numbers = #tpu.dot_dimension_numbers<[1], [0], [0], [1], [0, 0, 1, 1], [], []>} : vector<4x256xf32>, vector<256x16xf32>, vector<4x16xf32> -> vector<4x16xf32>
    %96 = arith.mulf %93, %93 : vector<4x256xf32>
    %c0_64 = arith.constant 0 : index
    %c0_65 = arith.constant 0 : index
    %97 = vector.load %arg2[%c0_64, %c0_65] : memref<256x16xf32, #tpu.memory_space<vmem>>, vector<256x16xf32>
    %cst_66 = arith.constant dense<0.000000e+00> : vector<4x16xf32>
    %98 = tpu.matmul %96, %97, %cst_66 {dimension_numbers = #tpu.dot_dimension_numbers<[1], [0], [0], [1], [0, 0, 1, 1], [], []>} : vector<4x256xf32>, vector<256x16xf32>, vector<4x16xf32> -> vector<4x16xf32>
    %cst_67 = arith.constant 6.250000e-02 : f32
    %99 = vector.broadcast %cst_67 : f32 to vector<4x16xf32>
    %100 = arith.mulf %95, %99 : vector<4x16xf32>
    %cst_68 = arith.constant 6.250000e-02 : f32
    %101 = vector.broadcast %cst_68 : f32 to vector<4x16xf32>
    %102 = arith.mulf %98, %101 : vector<4x16xf32>
    %103 = arith.mulf %100, %100 : vector<4x16xf32>
    %104 = arith.subf %102, %103 : vector<4x16xf32>
    %cst_69 = arith.constant 9.99999974E-6 : f32
    %105 = vector.broadcast %cst_69 : f32 to vector<4x16xf32>
    %106 = arith.addf %104, %105 : vector<4x16xf32>
    %107 = math.rsqrt %106 : vector<4x16xf32>
    %c0_70 = arith.constant 0 : index
    %c0_71 = arith.constant 0 : index
    %108 = vector.load %arg3[%c0_70, %c0_71] : memref<16x256xf32, #tpu.memory_space<vmem>>, vector<16x256xf32>
    %cst_72 = arith.constant dense<0.000000e+00> : vector<4x256xf32>
    %109 = tpu.matmul %100, %108, %cst_72 {dimension_numbers = #tpu.dot_dimension_numbers<[1], [0], [0], [1], [0, 0, 1, 1], [], []>} : vector<4x16xf32>, vector<16x256xf32>, vector<4x256xf32> -> vector<4x256xf32>
    %c0_73 = arith.constant 0 : index
    %c0_74 = arith.constant 0 : index
    %110 = vector.load %arg3[%c0_73, %c0_74] : memref<16x256xf32, #tpu.memory_space<vmem>>, vector<16x256xf32>
    %cst_75 = arith.constant dense<0.000000e+00> : vector<4x256xf32>
    %111 = tpu.matmul %107, %110, %cst_75 {dimension_numbers = #tpu.dot_dimension_numbers<[1], [0], [0], [1], [0, 0, 1, 1], [], []>} : vector<4x16xf32>, vector<16x256xf32>, vector<4x256xf32> -> vector<4x256xf32>
    %112 = arith.subf %93, %109 : vector<4x256xf32>
    %113 = arith.mulf %112, %111 : vector<4x256xf32>
    %c0_76 = arith.constant 0 : index
    %c0_77 = arith.constant 0 : index
    %114 = vector.load %arg10[%c0_76, %c0_77] : memref<1x256xf32, #tpu.memory_space<vmem>>, vector<1x256xf32>
    %115 = vector.broadcast %114 : vector<1x256xf32> to vector<4x256xf32>
    %116 = arith.mulf %113, %115 : vector<4x256xf32>
    %c0_78 = arith.constant 0 : index
    %c0_79 = arith.constant 0 : index
    %117 = vector.load %arg11[%c0_78, %c0_79] : memref<1x256xf32, #tpu.memory_space<vmem>>, vector<1x256xf32>
    %118 = vector.broadcast %117 : vector<1x256xf32> to vector<4x256xf32>
    %119 = arith.addf %116, %118 : vector<4x256xf32>
    %120 = arith.mulf %119, %119 : vector<4x256xf32>
    %121 = arith.mulf %119, %120 : vector<4x256xf32>
    %cst_80 = arith.constant 4.471500e-02 : f32
    %122 = vector.broadcast %cst_80 : f32 to vector<4x256xf32>
    %123 = arith.mulf %122, %121 : vector<4x256xf32>
    %124 = arith.addf %119, %123 : vector<4x256xf32>
    %cst_81 = arith.constant 0.797884583 : f32
    %125 = vector.broadcast %cst_81 : f32 to vector<4x256xf32>
    %126 = arith.mulf %125, %124 : vector<4x256xf32>
    %127 = math.tanh %126 : vector<4x256xf32>
    %cst_82 = arith.constant 1.000000e+00 : f32
    %128 = vector.broadcast %cst_82 : f32 to vector<4x256xf32>
    %129 = arith.addf %128, %127 : vector<4x256xf32>
    %cst_83 = arith.constant 5.000000e-01 : f32
    %130 = vector.broadcast %cst_83 : f32 to vector<4x256xf32>
    %131 = arith.mulf %130, %129 : vector<4x256xf32>
    %132 = arith.mulf %119, %131 : vector<4x256xf32>
    %c0_84 = arith.constant 0 : index
    %c0_85 = arith.constant 0 : index
    %133 = vector.load %arg4[%c0_84, %c0_85] : memref<256x384xf32, #tpu.memory_space<vmem>>, vector<256x384xf32>
    %cst_86 = arith.constant dense<0.000000e+00> : vector<4x384xf32>
    %134 = tpu.matmul %132, %133, %cst_86 {dimension_numbers = #tpu.dot_dimension_numbers<[1], [0], [0], [1], [0, 0, 1, 1], [], []>} : vector<4x256xf32>, vector<256x384xf32>, vector<4x384xf32> -> vector<4x384xf32>
    %cst_87 = arith.constant 0.000000e+00 : f32
    %135 = vector.broadcast %cst_87 : f32 to vector<4x288xf32>
    %c0_88 = arith.constant 0 : index
    %c0_89 = arith.constant 0 : index
    %c0_90 = arith.constant 0 : index
    %136 = vector.load %arg12[%c0_88, %c0_89, %c0_90] : memref<9x4x4xf32, #tpu.memory_space<vmem>>, vector<1x4x4xf32>
    %137 = vector.shape_cast %136 : vector<1x4x4xf32> to vector<4x4xf32>
    %138 = vector.extract_strided_slice %134 {offsets = [0, 0], sizes = [4, 288], strides = [1, 1]} : vector<4x384xf32> to vector<4x288xf32>
    %cst_91 = arith.constant dense<0.000000e+00> : vector<4x288xf32>
    %139 = tpu.matmul %137, %138, %cst_91 {dimension_numbers = #tpu.dot_dimension_numbers<[1], [0], [0], [1], [0, 0, 1, 1], [], []>} : vector<4x4xf32>, vector<4x288xf32>, vector<4x288xf32> -> vector<4x288xf32>
    %140 = arith.addf %135, %139 : vector<4x288xf32>
    %c1_92 = arith.constant 1 : index
    %c0_93 = arith.constant 0 : index
    %c0_94 = arith.constant 0 : index
    %141 = vector.load %arg12[%c1_92, %c0_93, %c0_94] : memref<9x4x4xf32, #tpu.memory_space<vmem>>, vector<1x4x4xf32>
    %142 = vector.shape_cast %141 : vector<1x4x4xf32> to vector<4x4xf32>
    %143 = vector.extract_strided_slice %134 {offsets = [0, 1], sizes = [4, 288], strides = [1, 1]} : vector<4x384xf32> to vector<4x288xf32>
    %cst_95 = arith.constant dense<0.000000e+00> : vector<4x288xf32>
    %144 = tpu.matmul %142, %143, %cst_95 {dimension_numbers = #tpu.dot_dimension_numbers<[1], [0], [0], [1], [0, 0, 1, 1], [], []>} : vector<4x4xf32>, vector<4x288xf32>, vector<4x288xf32> -> vector<4x288xf32>
    %145 = arith.addf %140, %144 : vector<4x288xf32>
    %c2_96 = arith.constant 2 : index
    %c0_97 = arith.constant 0 : index
    %c0_98 = arith.constant 0 : index
    %146 = vector.load %arg12[%c2_96, %c0_97, %c0_98] : memref<9x4x4xf32, #tpu.memory_space<vmem>>, vector<1x4x4xf32>
    %147 = vector.shape_cast %146 : vector<1x4x4xf32> to vector<4x4xf32>
    %148 = vector.extract_strided_slice %134 {offsets = [0, 2], sizes = [4, 288], strides = [1, 1]} : vector<4x384xf32> to vector<4x288xf32>
    %cst_99 = arith.constant dense<0.000000e+00> : vector<4x288xf32>
    %149 = tpu.matmul %147, %148, %cst_99 {dimension_numbers = #tpu.dot_dimension_numbers<[1], [0], [0], [1], [0, 0, 1, 1], [], []>} : vector<4x4xf32>, vector<4x288xf32>, vector<4x288xf32> -> vector<4x288xf32>
    %150 = arith.addf %145, %149 : vector<4x288xf32>
    %c3_100 = arith.constant 3 : index
    %c0_101 = arith.constant 0 : index
    %c0_102 = arith.constant 0 : index
    %151 = vector.load %arg12[%c3_100, %c0_101, %c0_102] : memref<9x4x4xf32, #tpu.memory_space<vmem>>, vector<1x4x4xf32>
    %152 = vector.shape_cast %151 : vector<1x4x4xf32> to vector<4x4xf32>
    %153 = vector.extract_strided_slice %134 {offsets = [0, 18], sizes = [4, 288], strides = [1, 1]} : vector<4x384xf32> to vector<4x288xf32>
    %cst_103 = arith.constant dense<0.000000e+00> : vector<4x288xf32>
    %154 = tpu.matmul %152, %153, %cst_103 {dimension_numbers = #tpu.dot_dimension_numbers<[1], [0], [0], [1], [0, 0, 1, 1], [], []>} : vector<4x4xf32>, vector<4x288xf32>, vector<4x288xf32> -> vector<4x288xf32>
    %155 = arith.addf %150, %154 : vector<4x288xf32>
    %c4_104 = arith.constant 4 : index
    %c0_105 = arith.constant 0 : index
    %c0_106 = arith.constant 0 : index
    %156 = vector.load %arg12[%c4_104, %c0_105, %c0_106] : memref<9x4x4xf32, #tpu.memory_space<vmem>>, vector<1x4x4xf32>
    %157 = vector.shape_cast %156 : vector<1x4x4xf32> to vector<4x4xf32>
    %158 = vector.extract_strided_slice %134 {offsets = [0, 19], sizes = [4, 288], strides = [1, 1]} : vector<4x384xf32> to vector<4x288xf32>
    %cst_107 = arith.constant dense<0.000000e+00> : vector<4x288xf32>
    %159 = tpu.matmul %157, %158, %cst_107 {dimension_numbers = #tpu.dot_dimension_numbers<[1], [0], [0], [1], [0, 0, 1, 1], [], []>} : vector<4x4xf32>, vector<4x288xf32>, vector<4x288xf32> -> vector<4x288xf32>
    %160 = arith.addf %155, %159 : vector<4x288xf32>
    %c5_108 = arith.constant 5 : index
    %c0_109 = arith.constant 0 : index
    %c0_110 = arith.constant 0 : index
    %161 = vector.load %arg12[%c5_108, %c0_109, %c0_110] : memref<9x4x4xf32, #tpu.memory_space<vmem>>, vector<1x4x4xf32>
    %162 = vector.shape_cast %161 : vector<1x4x4xf32> to vector<4x4xf32>
    %163 = vector.extract_strided_slice %134 {offsets = [0, 20], sizes = [4, 288], strides = [1, 1]} : vector<4x384xf32> to vector<4x288xf32>
    %cst_111 = arith.constant dense<0.000000e+00> : vector<4x288xf32>
    %164 = tpu.matmul %162, %163, %cst_111 {dimension_numbers = #tpu.dot_dimension_numbers<[1], [0], [0], [1], [0, 0, 1, 1], [], []>} : vector<4x4xf32>, vector<4x288xf32>, vector<4x288xf32> -> vector<4x288xf32>
    %165 = arith.addf %160, %164 : vector<4x288xf32>
    %c6_112 = arith.constant 6 : index
    %c0_113 = arith.constant 0 : index
    %c0_114 = arith.constant 0 : index
    %166 = vector.load %arg12[%c6_112, %c0_113, %c0_114] : memref<9x4x4xf32, #tpu.memory_space<vmem>>, vector<1x4x4xf32>
    %167 = vector.shape_cast %166 : vector<1x4x4xf32> to vector<4x4xf32>
    %168 = vector.extract_strided_slice %134 {offsets = [0, 36], sizes = [4, 288], strides = [1, 1]} : vector<4x384xf32> to vector<4x288xf32>
    %cst_115 = arith.constant dense<0.000000e+00> : vector<4x288xf32>
    %169 = tpu.matmul %167, %168, %cst_115 {dimension_numbers = #tpu.dot_dimension_numbers<[1], [0], [0], [1], [0, 0, 1, 1], [], []>} : vector<4x4xf32>, vector<4x288xf32>, vector<4x288xf32> -> vector<4x288xf32>
    %170 = arith.addf %165, %169 : vector<4x288xf32>
    %c7_116 = arith.constant 7 : index
    %c0_117 = arith.constant 0 : index
    %c0_118 = arith.constant 0 : index
    %171 = vector.load %arg12[%c7_116, %c0_117, %c0_118] : memref<9x4x4xf32, #tpu.memory_space<vmem>>, vector<1x4x4xf32>
    %172 = vector.shape_cast %171 : vector<1x4x4xf32> to vector<4x4xf32>
    %173 = vector.extract_strided_slice %134 {offsets = [0, 37], sizes = [4, 288], strides = [1, 1]} : vector<4x384xf32> to vector<4x288xf32>
    %cst_119 = arith.constant dense<0.000000e+00> : vector<4x288xf32>
    %174 = tpu.matmul %172, %173, %cst_119 {dimension_numbers = #tpu.dot_dimension_numbers<[1], [0], [0], [1], [0, 0, 1, 1], [], []>} : vector<4x4xf32>, vector<4x288xf32>, vector<4x288xf32> -> vector<4x288xf32>
    %175 = arith.addf %170, %174 : vector<4x288xf32>
    %c8_120 = arith.constant 8 : index
    %c0_121 = arith.constant 0 : index
    %c0_122 = arith.constant 0 : index
    %176 = vector.load %arg12[%c8_120, %c0_121, %c0_122] : memref<9x4x4xf32, #tpu.memory_space<vmem>>, vector<1x4x4xf32>
    %177 = vector.shape_cast %176 : vector<1x4x4xf32> to vector<4x4xf32>
    %178 = vector.extract_strided_slice %134 {offsets = [0, 38], sizes = [4, 288], strides = [1, 1]} : vector<4x384xf32> to vector<4x288xf32>
    %cst_123 = arith.constant dense<0.000000e+00> : vector<4x288xf32>
    %179 = tpu.matmul %177, %178, %cst_123 {dimension_numbers = #tpu.dot_dimension_numbers<[1], [0], [0], [1], [0, 0, 1, 1], [], []>} : vector<4x4xf32>, vector<4x288xf32>, vector<4x288xf32> -> vector<4x288xf32>
    %180 = arith.addf %175, %179 : vector<4x288xf32>
    %c0_124 = arith.constant 0 : index
    %c0_125 = arith.constant 0 : index
    %181 = vector.load %arg5[%c0_124, %c0_125] : memref<288x256xf32, #tpu.memory_space<vmem>>, vector<288x256xf32>
    %cst_126 = arith.constant dense<0.000000e+00> : vector<4x256xf32>
    %182 = tpu.matmul %180, %181, %cst_126 {dimension_numbers = #tpu.dot_dimension_numbers<[1], [0], [0], [1], [0, 0, 1, 1], [], []>} : vector<4x288xf32>, vector<288x256xf32>, vector<4x256xf32> -> vector<4x256xf32>
    %c0_127 = arith.constant 0 : index
    %c0_128 = arith.constant 0 : index
    %183 = vector.load %arg13[%c0_127, %c0_128] : memref<4x1xf32, #tpu.memory_space<vmem>>, vector<4x1xf32>
    %184 = vector.broadcast %183 : vector<4x1xf32> to vector<4x256xf32>
    %185 = arith.addf %182, %184 : vector<4x256xf32>
    %186 = arith.addf %185, %1 : vector<4x256xf32>
    %c0_129 = arith.constant 0 : index
    %c0_130 = arith.constant 0 : index
    %c0_131 = arith.constant 0 : index
    %187 = vector.load %arg14[%c0_129, %c0_130, %c0_131] : memref<1x4x256xf32, #tpu.memory_space<vmem>>, vector<1x4x256xf32>
    %188 = vector.shape_cast %187 : vector<1x4x256xf32> to vector<4x256xf32>
    %189 = vector.shape_cast %186 : vector<4x256xf32> to vector<1x4x256xf32>
    tpu.vector_store %arg14[%c0_129, %c0_130, %c0_131], %189 {strides = array<i32>} : memref<1x4x256xf32, #tpu.memory_space<vmem>>, vector<1x4x256xf32>,
    return
  }
  func.func @transform_0(%arg0: i32) -> (i32, i32, i32) {
    %c0_i32 = arith.constant 0 : i32
    %c0_i32_0 = arith.constant 0 : i32
    %c0_i32_1 = arith.constant 0 : i32
    return %arg0, %c0_i32, %c0_i32_0 : i32, i32, i32
  }
  func.func @transform_1(%arg0: i32) -> (i32, i32) {
    %c0_i32 = arith.constant 0 : i32
    %c0_i32_0 = arith.constant 0 : i32
    %c0_i32_1 = arith.constant 0 : i32
    return %c0_i32, %c0_i32_0 : i32, i32
  }
  func.func @transform_2(%arg0: i32) -> (i32, i32) {
    %c0_i32 = arith.constant 0 : i32
    %c0_i32_0 = arith.constant 0 : i32
    %c0_i32_1 = arith.constant 0 : i32
    return %c0_i32, %c0_i32_0 : i32, i32
  }
  func.func @transform_3(%arg0: i32) -> (i32, i32) {
    %c0_i32 = arith.constant 0 : i32
    %c0_i32_0 = arith.constant 0 : i32
    %c0_i32_1 = arith.constant 0 : i32
    return %c0_i32, %c0_i32_0 : i32, i32
  }
  func.func @transform_4(%arg0: i32) -> (i32, i32) {
    %c0_i32 = arith.constant 0 : i32
    %c0_i32_0 = arith.constant 0 : i32
    %c0_i32_1 = arith.constant 0 : i32
    return %c0_i32, %c0_i32_0 : i32, i32
  }
  func.func @transform_5(%arg0: i32) -> (i32, i32) {
    %c0_i32 = arith.constant 0 : i32
    %c0_i32_0 = arith.constant 0 : i32
    %c0_i32_1 = arith.constant 0 : i32
    return %c0_i32, %c0_i32_0 : i32, i32
  }
  func.func @transform_6(%arg0: i32) -> (i32, i32) {
    %c0_i32 = arith.constant 0 : i32
    %c0_i32_0 = arith.constant 0 : i32
    %c0_i32_1 = arith.constant 0 : i32
    return %c0_i32, %c0_i32_0 : i32, i32
  }
  func.func @transform_7(%arg0: i32) -> (i32, i32, i32) {
    %c0_i32 = arith.constant 0 : i32
    %c0_i32_0 = arith.constant 0 : i32
    %c0_i32_1 = arith.constant 0 : i32
    %c0_i32_2 = arith.constant 0 : i32
    return %c0_i32, %c0_i32_0, %c0_i32_1 : i32, i32, i32
  }
  func.func @transform_8(%arg0: i32) -> (i32, i32) {
    %c0_i32 = arith.constant 0 : i32
    %c0_i32_0 = arith.constant 0 : i32
    %c0_i32_1 = arith.constant 0 : i32
    return %c0_i32, %c0_i32_0 : i32, i32
  }
  func.func @transform_9(%arg0: i32) -> (i32, i32) {
    %c0_i32 = arith.constant 0 : i32
    %c0_i32_0 = arith.constant 0 : i32
    %c0_i32_1 = arith.constant 0 : i32
    return %c0_i32, %c0_i32_0 : i32, i32
  }
  func.func @transform_10(%arg0: i32) -> (i32, i32) {
    %c0_i32 = arith.constant 0 : i32
    %c0_i32_0 = arith.constant 0 : i32
    %c0_i32_1 = arith.constant 0 : i32
    return %c0_i32, %c0_i32_0 : i32, i32
  }
  func.func @transform_11(%arg0: i32) -> (i32, i32, i32) {
    %c0_i32 = arith.constant 0 : i32
    %c0_i32_0 = arith.constant 0 : i32
    %c0_i32_1 = arith.constant 0 : i32
    %c0_i32_2 = arith.constant 0 : i32
    return %c0_i32, %c0_i32_0, %c0_i32_1 : i32, i32, i32
  }
  func.func @transform_12(%arg0: i32) -> (i32, i32) {
    %c0_i32 = arith.constant 0 : i32
    %c0_i32_0 = arith.constant 0 : i32
    %c0_i32_1 = arith.constant 0 : i32
    return %c0_i32, %c0_i32_0 : i32, i32
  }
  func.func @transform_13(%arg0: i32) -> (i32, i32, i32) {
    %c0_i32 = arith.constant 0 : i32
    %c0_i32_0 = arith.constant 0 : i32
    %c0_i32_1 = arith.constant 0 : i32
    return %arg0, %c0_i32, %c0_i32_0 : i32, i32, i32
  }
}

</mosaic_0001>

<llo_original>
// kernel: residual_cnn_forward.1
$region0: #{residual_cnn_forward.1}
  #allocation0 [shape = 'u32[]', space=smem, size = 0x4, offset = 0x4, fixed_abs, tag = 'smem constant byte address 0x4 - core index']
  #allocation1 [shape = 'u32[144,128]{1,0:T(1,128)}', space=vmem, size = 0x12000, scoped, tag = 'internal scratch']
  %s0 = inlined_call_operand.vmem [shape: f32[2,4,256], index: 0, kind: input, shape index: {}]
  %s1 = inlined_call_operand.vmem [shape: f32[256,16], index: 1, kind: input, shape index: {}]
  %s2 = inlined_call_operand.vmem [shape: f32[16,256], index: 2, kind: input, shape index: {}]
  %s3 = inlined_call_operand.vmem [shape: f32[256,384], index: 3, kind: input, shape index: {}]
  %s4 = inlined_call_operand.vmem [shape: f32[288,256], index: 4, kind: input, shape index: {}]
  %s5 = inlined_call_operand.vmem [shape: f32[1,256], index: 5, kind: input, shape index: {}]
  %s6 = inlined_call_operand.vmem [shape: f32[1,256], index: 6, kind: input, shape index: {}]
  %s7 = inlined_call_operand.vmem [shape: f32[9,4,4], index: 7, kind: input, shape index: {}]
  %s8 = inlined_call_operand.vmem [shape: f32[4,1], index: 8, kind: input, shape index: {}]
  %s9 = inlined_call_operand.vmem [shape: f32[1,256], index: 9, kind: input, shape index: {}]
  %s10 = inlined_call_operand.vmem [shape: f32[1,256], index: 10, kind: input, shape index: {}]
  %s11 = inlined_call_operand.vmem [shape: f32[9,4,4], index: 11, kind: input, shape index: {}]
  %s12 = inlined_call_operand.vmem [shape: f32[4,1], index: 12, kind: input, shape index: {}]
  %s13 = inlined_call_operand.vmem [shape: f32[2,4,256], index: 13, kind: output, shape index: {}]
  %s14 = sld [smem:[#allocation0]]
  $region85: #{residual_cnn_forward.1} parent=0
    _
  %s16 = ssub.s32 1, %s14
  %s17 = scalar_select 0, %s16, %s14
  loop: start=0, step=1, limit=4
  $region2: #{residual_cnn_forward.1} parent=0 // loop_pre_header
    _
  $region3: #{residual_cnn_forward.1} parent=0 // loop_header
    %s19 = sphi 0, %s23
    %p20 = scmp.ge.s32.totalorder %s19, 4
    %s29 = sphi 0, %s31
    %s32 = sphi 0, %s29
    %s33 = sphi 0, %s32
    %s49 = sphi 0, %s33
    %s53 = sphi 0, %s53
    %s55 = sphi 0, %s53
    %s56 = sphi 0, %s55
    %s70 = sphi 0, %s56
    %s74 = sphi 0, %s74
    %s76 = sphi 0, %s74
    %s77 = sphi 0, %s76
    %s91 = sphi 0, %s77
    %s95 = sphi 0, %s95
    %s97 = sphi 0, %s95
    %s98 = sphi 0, %s97
    %s112 = sphi 0, %s98
    %s116 = sphi 0, %s116
    %s118 = sphi 0, %s116
    %s119 = sphi 0, %s118
    %s133 = sphi 0, %s119
    %s137 = sphi 0, %s137
    %s139 = sphi 0, %s137
    %s140 = sphi 0, %s139
    %s154 = sphi 0, %s140
    %s158 = sphi 0, %s158
    %s160 = sphi 0, %s158
    %s161 = sphi 0, %s160
    %s175 = sphi 0, %s161
    %s179 = sphi 0, %s179
    %s181 = sphi 0, %s179
    %s182 = sphi 0, %s181
    %s196 = sphi 0, %s182
    %s200 = sphi 0, %s200
    %s202 = sphi 0, %s200
    %s203 = sphi 0, %s202
    %s217 = sphi 0, %s203
    %s221 = sphi 0, %s221
    %s223 = sphi 0, %s221
    %s224 = sphi 0, %s223
    %s238 = sphi 0, %s224
    %s242 = sphi 0, %s242
    %s244 = sphi 0, %s242
    %s245 = sphi 0, %s244
    %s259 = sphi 0, %s245
    %s263 = sphi 0, %s263
    %s265 = sphi 0, %s263
    %s266 = sphi 0, %s265
    %s280 = sphi 0, %s266
    %s284 = sphi 0, %s284
    %s286 = sphi 0, %s284
    %s287 = sphi 0, %s286
    %s301 = sphi 0, %s287
    %s307 = sphi 0, %s309
    %s310 = sphi 0, %s307
    %s311 = sphi 0, %s310
    %s327 = sphi 0, %s311
  $region4: #{residual_cnn_forward.1} parent=0 // loop_header_branch
    %22 = sbr.rel (%p20) target = $region8
  $region5: #{residual_cnn_forward.1} parent=0 // loop_body
    %s24 = ssub.s32 %s19, 1
    %s25 = ssub.s32 %s19, 2
    %s26 = sadd.s32 %s19, 1
    %s27 = ssub.s32 %s19, %s26
    %p28 = scmp.eq.s32.totalorder %s27, 0
    %s30 = sadd.s32 %s29, 1
    %s31 = scalar_select %p28, %s29, %s30
    %p34 = pneg %p28
    %p35 = scmp.eq.s32.totalorder %s19, 1
    %p36 = por %p34, %p35
    %p37 = scmp.ne.s32.totalorder %s29, %s32
    %p38 = scmp.eq.s32.totalorder %s19, 0
    %p39 = por %p37, %p38
    %p40 = scmp.ne.s32.totalorder %s29, %s32
    %p41 = scmp.eq.s32.totalorder %s24, 1
    %p42 = por %p40, %p41
    %p43 = scmp.ne.s32.totalorder %s32, %s33
    %p44 = scmp.eq.s32.totalorder %s24, 0
    %p45 = por %p43, %p44
    %p46 = scmp.ne.s32.totalorder %s32, %s33
    %p47 = scmp.eq.s32.totalorder %s25, 1
    %p48 = por %p46, %p47
    %p50 = scmp.ne.s32.totalorder %s33, %s49
    %p51 = scmp.eq.s32.totalorder %s25, 0
    %p52 = por %p50, %p51
    %s54 = sadd.s32 %s53, 1
    %p57 = scmp.eq.s32.totalorder %s19, 1
    %p58 = scmp.ne.s32.totalorder %s53, %s55
    %p59 = scmp.eq.s32.totalorder %s19, 0
    %p60 = por %p58, %p59
    %p61 = scmp.ne.s32.totalorder %s53, %s55
    %p62 = scmp.eq.s32.totalorder %s24, 1
    %p63 = por %p61, %p62
    %p64 = scmp.ne.s32.totalorder %s55, %s56
    %p65 = scmp.eq.s32.totalorder %s24, 0
    %p66 = por %p64, %p65
    %p67 = scmp.ne.s32.totalorder %s55, %s56
    %p68 = scmp.eq.s32.totalorder %s25, 1
    %p69 = por %p67, %p68
    %p71 = scmp.ne.s32.totalorder %s56, %s70
    %p72 = scmp.eq.s32.totalorder %s25, 0
    %p73 = por %p71, %p72
    %s75 = sadd.s32 %s74, 1
    %p78 = scmp.eq.s32.totalorder %s19, 1
    %p79 = scmp.ne.s32.totalorder %s74, %s76
    %p80 = scmp.eq.s32.totalorder %s19, 0
    %p81 = por %p79, %p80
    %p82 = scmp.ne.s32.totalorder %s74, %s76
    %p83 = scmp.eq.s32.totalorder %s24, 1
    %p84 = por %p82, %p83
    %p85 = scmp.ne.s32.totalorder %s76, %s77
    %p86 = scmp.eq.s32.totalorder %s24, 0
    %p87 = por %p85, %p86
    %p88 = scmp.ne.s32.totalorder %s76, %s77
    %p89 = scmp.eq.s32.totalorder %s25, 1
    %p90 = por %p88, %p89
    %p92 = scmp.ne.s32.totalorder %s77, %s91
    %p93 = scmp.eq.s32.totalorder %s25, 0
    %p94 = por %p92, %p93
    %s96 = sadd.s32 %s95, 1
    %p99 = scmp.eq.s32.totalorder %s19, 1
    %p100 = scmp.ne.s32.totalorder %s95, %s97
    %p101 = scmp.eq.s32.totalorder %s19, 0
    %p102 = por %p100, %p101
    %p103 = scmp.ne.s32.totalorder %s95, %s97
    %p104 = scmp.eq.s32.totalorder %s24, 1
    %p105 = por %p103, %p104
    %p106 = scmp.ne.s32.totalorder %s97, %s98
    %p107 = scmp.eq.s32.totalorder %s24, 0
    %p108 = por %p106, %p107
    %p109 = scmp.ne.s32.totalorder %s97, %s98
    %p110 = scmp.eq.s32.totalorder %s25, 1
    %p111 = por %p109, %p110
    %p113 = scmp.ne.s32.totalorder %s98, %s112
    %p114 = scmp.eq.s32.totalorder %s25, 0
    %p115 = por %p113, %p114
    %s117 = sadd.s32 %s116, 1
    %p120 = scmp.eq.s32.totalorder %s19, 1
    %p121 = scmp.ne.s32.totalorder %s116, %s118
    %p122 = scmp.eq.s32.totalorder %s19, 0
    %p123 = por %p121, %p122
    %p124 = scmp.ne.s32.totalorder %s116, %s118
    %p125 = scmp.eq.s32.totalorder %s24, 1
    %p126 = por %p124, %p125
    %p127 = scmp.ne.s32.totalorder %s118, %s119
    %p128 = scmp.eq.s32.totalorder %s24, 0
    %p129 = por %p127, %p128
    %p130 = scmp.ne.s32.totalorder %s118, %s119
    %p131 = scmp.eq.s32.totalorder %s25, 1
    %p132 = por %p130, %p131
    %p134 = scmp.ne.s32.totalorder %s119, %s133
    %p135 = scmp.eq.s32.totalorder %s25, 0
    %p136 = por %p134, %p135
    %s138 = sadd.s32 %s137, 1
    %p141 = scmp.eq.s32.totalorder %s19, 1
    %p142 = scmp.ne.s32.totalorder %s137, %s139
    %p143 = scmp.eq.s32.totalorder %s19, 0
    %p144 = por %p142, %p143
    %p145 = scmp.ne.s32.totalorder %s137, %s139
    %p146 = scmp.eq.s32.totalorder %s24, 1
    %p147 = por %p145, %p146
    %p148 = scmp.ne.s32.totalorder %s139, %s140
    %p149 = scmp.eq.s32.totalorder %s24, 0
    %p150 = por %p148, %p149
    %p151 = scmp.ne.s32.totalorder %s139, %s140
    %p152 = scmp.eq.s32.totalorder %s25, 1
    %p153 = por %p151, %p152
    %p155 = scmp.ne.s32.totalorder %s140, %s154
    %p156 = scmp.eq.s32.totalorder %s25, 0
    %p157 = por %p155, %p156
    %s159 = sadd.s32 %s158, 1
    %p162 = scmp.eq.s32.totalorder %s19, 1
    %p163 = scmp.ne.s32.totalorder %s158, %s160
    %p164 = scmp.eq.s32.totalorder %s19, 0
    %p165 = por %p163, %p164
    %p166 = scmp.ne.s32.totalorder %s158, %s160
    %p167 = scmp.eq.s32.totalorder %s24, 1
    %p168 = por %p166, %p167
    %p169 = scmp.ne.s32.totalorder %s160, %s161
    %p170 = scmp.eq.s32.totalorder %s24, 0
    %p171 = por %p169, %p170
    %p172 = scmp.ne.s32.totalorder %s160, %s161
    %p173 = scmp.eq.s32.totalorder %s25, 1
    %p174 = por %p172, %p173
    %p176 = scmp.ne.s32.totalorder %s161, %s175
    %p177 = scmp.eq.s32.totalorder %s25, 0
    %p178 = por %p176, %p177
    %s180 = sadd.s32 %s179, 1
    %p183 = scmp.eq.s32.totalorder %s19, 1
    %p184 = scmp.ne.s32.totalorder %s179, %s181
    %p185 = scmp.eq.s32.totalorder %s19, 0
    %p186 = por %p184, %p185
    %p187 = scmp.ne.s32.totalorder %s179, %s181
    %p188 = scmp.eq.s32.totalorder %s24, 1
    %p189 = por %p187, %p188
    %p190 = scmp.ne.s32.totalorder %s181, %s182
    %p191 = scmp.eq.s32.totalorder %s24, 0
    %p192 = por %p190, %p191
    %p193 = scmp.ne.s32.totalorder %s181, %s182
    %p194 = scmp.eq.s32.totalorder %s25, 1
    %p195 = por %p193, %p194
    %p197 = scmp.ne.s32.totalorder %s182, %s196
    %p198 = scmp.eq.s32.totalorder %s25, 0
    %p199 = por %p197, %p198
    %s201 = sadd.s32 %s200, 1
    %p204 = scmp.eq.s32.totalorder %s19, 1
    %p205 = scmp.ne.s32.totalorder %s200, %s202
    %p206 = scmp.eq.s32.totalorder %s19, 0
    %p207 = por %p205, %p206
    %p208 = scmp.ne.s32.totalorder %s200, %s202
    %p209 = scmp.eq.s32.totalorder %s24, 1
    %p210 = por %p208, %p209
    %p211 = scmp.ne.s32.totalorder %s202, %s203
    %p212 = scmp.eq.s32.totalorder %s24, 0
    %p213 = por %p211, %p212
    %p214 = scmp.ne.s32.totalorder %s202, %s203
    %p215 = scmp.eq.s32.totalorder %s25, 1
    %p216 = por %p214, %p215
    %p218 = scmp.ne.s32.totalorder %s203, %s217
    %p219 = scmp.eq.s32.totalorder %s25, 0
    %p220 = por %p218, %p219
    %s222 = sadd.s32 %s221, 1
    %p225 = scmp.eq.s32.totalorder %s19, 1
    %p226 = scmp.ne.s32.totalorder %s221, %s223
    %p227 = scmp.eq.s32.totalorder %s19, 0
    %p228 = por %p226, %p227
    %p229 = scmp.ne.s32.totalorder %s221, %s223
    %p230 = scmp.eq.s32.totalorder %s24, 1
    %p231 = por %p229, %p230
    %p232 = scmp.ne.s32.totalorder %s223, %s224
    %p233 = scmp.eq.s32.totalorder %s24, 0
    %p234 = por %p232, %p233
    %p235 = scmp.ne.s32.totalorder %s223, %s224
    %p236 = scmp.eq.s32.totalorder %s25, 1
    %p237 = por %p235, %p236
    %p239 = scmp.ne.s32.totalorder %s224, %s238
    %p240 = scmp.eq.s32.totalorder %s25, 0
    %p241 = por %p239, %p240
    %s243 = sadd.s32 %s242, 1
    %p246 = scmp.eq.s32.totalorder %s19, 1
    %p247 = scmp.ne.s32.totalorder %s242, %s244
    %p248 = scmp.eq.s32.totalorder %s19, 0
    %p249 = por %p247, %p248
    %p250 = scmp.ne.s32.totalorder %s242, %s244
    %p251 = scmp.eq.s32.totalorder %s24, 1
    %p252 = por %p250, %p251
    %p253 = scmp.ne.s32.totalorder %s244, %s245
    %p254 = scmp.eq.s32.totalorder %s24, 0
    %p255 = por %p253, %p254
    %p256 = scmp.ne.s32.totalorder %s244, %s245
    %p257 = scmp.eq.s32.totalorder %s25, 1
    %p258 = por %p256, %p257
    %p260 = scmp.ne.s32.totalorder %s245, %s259
    %p261 = scmp.eq.s32.totalorder %s25, 0
    %p262 = por %p260, %p261
    %s264 = sadd.s32 %s263, 1
    %p267 = scmp.eq.s32.totalorder %s19, 1
    %p268 = scmp.ne.s32.totalorder %s263, %s265
    %p269 = scmp.eq.s32.totalorder %s19, 0
    %p270 = por %p268, %p269
    %p271 = scmp.ne.s32.totalorder %s263, %s265
    %p272 = scmp.eq.s32.totalorder %s24, 1
    %p273 = por %p271, %p272
    %p274 = scmp.ne.s32.totalorder %s265, %s266
    %p275 = scmp.eq.s32.totalorder %s24, 0
    %p276 = por %p274, %p275
    %p277 = scmp.ne.s32.totalorder %s265, %s266
    %p278 = scmp.eq.s32.totalorder %s25, 1
    %p279 = por %p277, %p278
    %p281 = scmp.ne.s32.totalorder %s266, %s280
    %p282 = scmp.eq.s32.totalorder %s25, 0
    %p283 = por %p281, %p282
    %s285 = sadd.s32 %s284, 1
    %p288 = scmp.eq.s32.totalorder %s19, 1
    %p289 = scmp.ne.s32.totalorder %s284, %s286
    %p290 = scmp.eq.s32.totalorder %s19, 0
    %p291 = por %p289, %p290
    %p292 = scmp.ne.s32.totalorder %s284, %s286
    %p293 = scmp.eq.s32.totalorder %s24, 1
    %p294 = por %p292, %p293
    %p295 = scmp.ne.s32.totalorder %s286, %s287
    %p296 = scmp.eq.s32.totalorder %s24, 0
    %p297 = por %p295, %p296
    %p298 = scmp.ne.s32.totalorder %s286, %s287
    %p299 = scmp.eq.s32.totalorder %s25, 1
    %p300 = por %p298, %p299
    %p302 = scmp.ne.s32.totalorder %s287, %s301
    %p303 = scmp.eq.s32.totalorder %s25, 0
    %p304 = por %p302, %p303
    %s305 = ssub.s32 %s19, %s26
    %p306 = scmp.eq.s32.totalorder %s305, 0
    %s308 = sadd.s32 %s307, 1
    %s309 = scalar_select %p306, %s307, %s308
    %p312 = pneg %p306
    %p313 = scmp.eq.s32.totalorder %s19, 1
    %p314 = por %p312, %p313
    %p315 = scmp.ne.s32.totalorder %s307, %s310
    %p316 = scmp.eq.s32.totalorder %s19, 0
    %p317 = por %p315, %p316
    %p318 = scmp.ne.s32.totalorder %s307, %s310
    %p319 = scmp.eq.s32.totalorder %s24, 1
    %p320 = por %p318, %p319
    %p321 = scmp.ne.s32.totalorder %s310, %s311
    %p322 = scmp.eq.s32.totalorder %s24, 0
    %p323 = por %p321, %p322
    %p324 = scmp.ne.s32.totalorder %s310, %s311
    %p325 = scmp.eq.s32.totalorder %s25, 1
    %p326 = por %p324, %p325
    %p328 = scmp.ne.s32.totalorder %s311, %s327
    %p329 = scmp.eq.s32.totalorder %s25, 0
    %p330 = por %p328, %p329
    %p331 = scmp.le.s32.totalorder 1, %s19
    %p332 = scmp.lt.s32.totalorder %s19, 3
    %p333 = pnand %p331, %p332
    %p334 = pneg %p333
    // Predicated region
    $region9: #{residual_cnn_forward.1} parent=5 // pred_check
      _
    $region10: #{residual_cnn_forward.1} parent=5 // pred_check_branch
      %336 = sbr.rel (%p333) target = $region12
    $region11: #{residual_cnn_forward.1} parent=5 // pred_region
      %s337 = ssub.s32 %s19, 1
      // Predicated region
      $region13: #{residual_cnn_forward.1} parent=11 // pred_check
        %p338 = pneg %p66
      $region14: #{residual_cnn_forward.1} parent=11 // pred_check_branch
        %340 = sbr.rel (%p338) target = $region16
      $region15: #{residual_cnn_forward.1} parent=11 // pred_region
        _
      $region16: #{residual_cnn_forward.1} parent=11 // pred_fallthru
        _
      // Predicated region
      $region17: #{residual_cnn_forward.1} parent=11 // pred_check
        %p341 = pneg %p87
      $region18: #{residual_cnn_forward.1} parent=11 // pred_check_branch
        %343 = sbr.rel (%p341) target = $region20
      $region19: #{residual_cnn_forward.1} parent=11 // pred_region
        _
      $region20: #{residual_cnn_forward.1} parent=11 // pred_fallthru
        _
      // Predicated region
      $region21: #{residual_cnn_forward.1} parent=11 // pred_check
        %p344 = pneg %p108
      $region22: #{residual_cnn_forward.1} parent=11 // pred_check_branch
        %346 = sbr.rel (%p344) target = $region24
      $region23: #{residual_cnn_forward.1} parent=11 // pred_region
        _
      $region24: #{residual_cnn_forward.1} parent=11 // pred_fallthru
        _
      // Predicated region
      $region25: #{residual_cnn_forward.1} parent=11 // pred_check
        %p347 = pneg %p129
      $region26: #{residual_cnn_forward.1} parent=11 // pred_check_branch
        %349 = sbr.rel (%p347) target = $region28
      $region27: #{residual_cnn_forward.1} parent=11 // pred_region
        _
      $region28: #{residual_cnn_forward.1} parent=11 // pred_fallthru
        _
      // Predicated region
      $region29: #{residual_cnn_forward.1} parent=11 // pred_check
        %p350 = pneg %p150
      $region30: #{residual_cnn_forward.1} parent=11 // pred_check_branch
        %352 = sbr.rel (%p350) target = $region32
      $region31: #{residual_cnn_forward.1} parent=11 // pred_region
        _
      $region32: #{residual_cnn_forward.1} parent=11 // pred_fallthru
        _
      // Predicated region
      $region33: #{residual_cnn_forward.1} parent=11 // pred_check
        %p353 = pneg %p171
      $region34: #{residual_cnn_forward.1} parent=11 // pred_check_branch
        %355 = sbr.rel (%p353) target = $region36
      $region35: #{residual_cnn_forward.1} parent=11 // pred_region
        _
      $region36: #{residual_cnn_forward.1} parent=11 // pred_fallthru
        _
      // Predicated region
      $region37: #{residual_cnn_forward.1} parent=11 // pred_check
        %p356 = pneg %p192
      $region38: #{residual_cnn_forward.1} parent=11 // pred_check_branch
        %358 = sbr.rel (%p356) target = $region40
      $region39: #{residual_cnn_forward.1} parent=11 // pred_region
        _
      $region40: #{residual_cnn_forward.1} parent=11 // pred_fallthru
        _
      // Predicated region
      $region41: #{residual_cnn_forward.1} parent=11 // pred_check
        %p359 = pneg %p213
      $region42: #{residual_cnn_forward.1} parent=11 // pred_check_branch
        %361 = sbr.rel (%p359) target = $region44
      $region43: #{residual_cnn_forward.1} parent=11 // pred_region
        _
      $region44: #{residual_cnn_forward.1} parent=11 // pred_fallthru
        _
      // Predicated region
      $region45: #{residual_cnn_forward.1} parent=11 // pred_check
        %p362 = pneg %p234
      $region46: #{residual_cnn_forward.1} parent=11 // pred_check_branch
        %364 = sbr.rel (%p362) target = $region48
      $region47: #{residual_cnn_forward.1} parent=11 // pred_region
        _
      $region48: #{residual_cnn_forward.1} parent=11 // pred_fallthru
        _
      // Predicated region
      $region49: #{residual_cnn_forward.1} parent=11 // pred_check
        %p365 = pneg %p255
      $region50: #{residual_cnn_forward.1} parent=11 // pred_check_branch
        %367 = sbr.rel (%p365) target = $region52
      $region51: #{residual_cnn_forward.1} parent=11 // pred_region
        _
      $region52: #{residual_cnn_forward.1} parent=11 // pred_fallthru
        _
      // Predicated region
      $region53: #{residual_cnn_forward.1} parent=11 // pred_check
        %p368 = pneg %p276
      $region54: #{residual_cnn_forward.1} parent=11 // pred_check_branch
        %370 = sbr.rel (%p368) target = $region56
      $region55: #{residual_cnn_forward.1} parent=11 // pred_region
        _
      $region56: #{residual_cnn_forward.1} parent=11 // pred_fallthru
        _
      // Predicated region
      $region57: #{residual_cnn_forward.1} parent=11 // pred_check
        %p371 = pneg %p297
      $region58: #{residual_cnn_forward.1} parent=11 // pred_check_branch
        %373 = sbr.rel (%p371) target = $region60
      $region59: #{residual_cnn_forward.1} parent=11 // pred_region
        _
      $region60: #{residual_cnn_forward.1} parent=11 // pred_fallthru
        _
    $region12: #{residual_cnn_forward.1} parent=5 // pred_fallthru
      _
    %p374 = scmp.lt.s32.totalorder %s19, 2
    // Predicated region
    $region61: #{residual_cnn_forward.1} parent=5 // pred_check
      %p375 = pneg %p374
    $region62: #{residual_cnn_forward.1} parent=5 // pred_check_branch
      %377 = sbr.rel (%p375) target = $region64
    $region63: #{residual_cnn_forward.1} parent=5 // pred_region
      // Predicated region
      $region65: #{residual_cnn_forward.1} parent=63 // pred_check
        %p378 = pneg %p39
      $region66: #{residual_cnn_forward.1} parent=63 // pred_check_branch
        %380 = sbr.rel (%p378) target = $region68
      $region67: #{residual_cnn_forward.1} parent=63 // pred_region
        %p381 = scmp.lt.s32.totalorder %s19, 1
        %s382 = scalar_select %p381, %s19, 1
        %s383 = smul.addr %s382, 2
        %s384 = smul.addr %s383, 4
        %s385 = scalar_lea.vmem %s0, %s384
      $region68: #{residual_cnn_forward.1} parent=63 // pred_fallthru
        _
    $region64: #{residual_cnn_forward.1} parent=5 // pred_fallthru
      _
    %p386 = scmp.le.s32.totalorder 1, %s19
    %p387 = scmp.lt.s32.totalorder %s19, 3
    %p388 = pnand %p386, %p387
    %p389 = pneg %p388
    // Predicated region
    $region69: #{residual_cnn_forward.1} parent=5 // pred_check
      _
    $region70: #{residual_cnn_forward.1} parent=5 // pred_check_branch
      %391 = sbr.rel (%p388) target = $region72
    $region71: #{residual_cnn_forward.1} parent=5 // pred_region
      %s392 = ssub.s32 %s19, 1
      %p393 = scmp.lt.s32.totalorder %s24, 1
      %s394 = scalar_select %p393, %s24, 1
      %s395 = smul.addr %s394, 2
      %s396 = smul.addr %s395, 4
      %s397 = scalar_lea.vmem %s0, %s396
      %p398 = pneg %p45
      %p399 = pneg %p42
      %p400 = pneg %p66
      %p401 = pneg %p63
      %p402 = pneg %p87
      %p403 = pneg %p84
      %p404 = pneg %p108
      %p405 = pneg %p105
      %p406 = pneg %p129
      %p407 = pneg %p126
      %p408 = pneg %p150
      %p409 = pneg %p147
      %p410 = pneg %p171
      %p411 = pneg %p168
      %p412 = pneg %p192
      %p413 = pneg %p189
      %p414 = pneg %p213
      %p415 = pneg %p210
      %p416 = pneg %p234
      %p417 = pneg %p231
      %p418 = pneg %p255
      %p419 = pneg %p252
      %p420 = pneg %p276
      %p421 = pneg %p273
      %p422 = pneg %p297
      %p423 = pneg %p294
      %p424 = pneg %p323
      %p425 = pneg %p320
      %p426 = scmp.lt.s32.totalorder %s24, 1
      %s427 = scalar_select %p426, %s24, 1
      %s428 = smul.addr %s427, 2
      %s429 = smul.addr %s428, 4
      %s430 = scalar_lea.vmem %s13, %s429
      %p431 = scmp.lt.s32.totalorder %s24, 1
      %s432 = scalar_select %p431, %s24, 1
      %s433 = smul.addr %s432, 2
      %s434 = smul.addr %s433, 4
      %s435 = scalar_lea.vmem %s0, %s434
      %p436 = scmp.lt.s32.totalorder %s24, 1
      %s437 = scalar_select %p436, %s24, 1
      %s438 = smul.addr %s437, 2
      %s439 = smul.addr %s438, 4
      %s440 = scalar_lea.vmem %s13, %s439
      %v441 = vld [vmem:[%s435] sm:$0xff]
      %v442 = vld [vmem:[%s1] sm:$0xff]
      %v443 = vld [vmem:[%s1 + $0x8] sm:$0xff]
      %v444 = vld [vmem:[%s1 + $0x10] sm:$0xff]
      %v445 = vld [vmem:[%s1 + $0x18] sm:$0xff]
      %v446 = vld [vmem:[%s1 + $0x20] sm:$0xff]
      %v447 = vld [vmem:[%s1 + $0x28] sm:$0xff]
      %v448 = vld [vmem:[%s1 + $0x30] sm:$0xff]
      %v449 = vld [vmem:[%s1 + $0x38] sm:$0xff]
      %v450 = vld [vmem:[%s1 + $0x40] sm:$0xff]
      %v451 = vld [vmem:[%s1 + $0x48] sm:$0xff]
      %v452 = vld [vmem:[%s1 + $0x50] sm:$0xff]
      %v453 = vld [vmem:[%s1 + $0x58] sm:$0xff]
      %v454 = vld [vmem:[%s1 + $0x60] sm:$0xff]
      %v455 = vld [vmem:[%s1 + $0x68] sm:$0xff]
      %v456 = vld [vmem:[%s1 + $0x70] sm:$0xff]
      %v457 = vld [vmem:[%s1 + $0x78] sm:$0xff]
      %v458 = vld [vmem:[%s1 + $0x80] sm:$0xff]
      %v459 = vld [vmem:[%s1 + $0x88] sm:$0xff]
      %v460 = vld [vmem:[%s1 + $0x90] sm:$0xff]
      %v461 = vld [vmem:[%s1 + $0x98] sm:$0xff]
      %v462 = vld [vmem:[%s1 + $0xa0] sm:$0xff]
      %v463 = vld [vmem:[%s1 + $0xa8] sm:$0xff]
      %v464 = vld [vmem:[%s1 + $0xb0] sm:$0xff]
      %v465 = vld [vmem:[%s1 + $0xb8] sm:$0xff]
      %v466 = vld [vmem:[%s1 + $0xc0] sm:$0xff]
      %v467 = vld [vmem:[%s1 + $0xc8] sm:$0xff]
      %v468 = vld [vmem:[%s1 + $0xd0] sm:$0xff]
      %v469 = vld [vmem:[%s1 + $0xd8] sm:$0xff]
      %v470 = vld [vmem:[%s1 + $0xe0] sm:$0xff]
      %v471 = vld [vmem:[%s1 + $0xe8] sm:$0xff]
      %v472 = vld [vmem:[%s1 + $0xf0] sm:$0xff]
      %v473 = vld [vmem:[%s1 + $0xf8] sm:$0xff]
      %v475 = vcombine.high %v441, %v441
      %477 = vmatprep.subr.mxu0 0.0
      %478 = vmatpush1.msra.mxu0 %v442
      %479 = vmatprep.subr.mxu0 0.0
      %480 = vmatpush1.msra.mxu0 %v443
      %481 = vmatprep.subr.mxu0 0.0
      %482 = vmatpush1.msra.mxu0 %v444
      %483 = vmatprep.subr.mxu0 0.0
      %484 = vmatpush1.msra.mxu0 %v445
      %485 = vmatprep.subr.mxu0 0.0
      %486 = vmatpush1.msra.mxu0 %v446
      %487 = vmatprep.subr.mxu0 0.0
      %488 = vmatpush1.msra.mxu0 %v447
      %489 = vmatprep.subr.mxu0 0.0
      %490 = vmatpush1.msra.mxu0 %v448
      %491 = vmatprep.subr.mxu0 0.0
      %492 = vmatpush1.msra.mxu0 %v449
      %493 = vmatprep.subr.mxu0 0.0
      %494 = vmatpush1.msra.mxu0 %v450
      %495 = vmatprep.subr.mxu0 0.0
      %496 = vmatpush1.msra.mxu0 %v451
      %497 = vmatprep.subr.mxu0 0.0
      %498 = vmatpush1.msra.mxu0 %v452
      %499 = vmatprep.subr.mxu0 0.0
      %500 = vmatpush1.msra.mxu0 %v453
      %501 = vmatprep.subr.mxu0 0.0
      %502 = vmatpush1.msra.mxu0 %v454
      %503 = vmatprep.subr.mxu0 0.0
      %504 = vmatpush1.msra.mxu0 %v455
      %505 = vmatprep.subr.mxu0 0.0
      %506 = vmatpush1.msra.mxu0 %v456
      %507 = vmatprep.subr.mxu0 0.0
      %508 = vmatpush1.msra.mxu0 %v457
      %509 = vmatprep.subr.mxu0 0.0
      %510 = vmatpush1.msra.mxu0 %v458
      %511 = vmatprep.subr.mxu0 0.0
      %512 = vmatpush1.msra.mxu0 %v459
      %513 = vmatprep.subr.mxu0 0.0
      %514 = vmatpush1.msra.mxu0 %v460
      %515 = vmatprep.subr.mxu0 0.0
      %516 = vmatpush1.msra.mxu0 %v461
      %517 = vmatprep.subr.mxu0 0.0
      %518 = vmatpush1.msra.mxu0 %v462
      %519 = vmatprep.subr.mxu0 0.0
      %520 = vmatpush1.msra.mxu0 %v463
      %521 = vmatprep.subr.mxu0 0.0
      %522 = vmatpush1.msra.mxu0 %v464
      %523 = vmatprep.subr.mxu0 0.0
      %524 = vmatpush1.msra.mxu0 %v465
      %525 = vmatprep.subr.mxu0 0.0
      %526 = vmatpush1.msra.mxu0 %v466
      %527 = vmatprep.subr.mxu0 0.0
      %528 = vmatpush1.msra.mxu0 %v467
      %529 = vmatprep.subr.mxu0 0.0
      %530 = vmatpush1.msra.mxu0 %v468
      %531 = vmatprep.subr.mxu0 0.0
      %532 = vmatpush1.msra.mxu0 %v469
      %533 = vmatprep.subr.mxu0 0.0
      %534 = vmatpush1.msra.mxu0 %v470
      %535 = vmatprep.subr.mxu0 0.0
      %536 = vmatpush1.msra.mxu0 %v471
      %537 = vmatprep.subr.mxu0 0.0
      %538 = vmatpush1.msra.mxu0 %v472
      %539 = vmatprep.subr.mxu0 0.0
      %540 = vmatpush1.msra.mxu0 %v473
      %541 = vmatprep.mubr.f32.mxu0 %v475
      %542 = vmatmul.mubr.f32.gmra.mrb[0].mxu0 %v441
      %v543 = vpop.f32.mrb[0].mxu0
      %v544 = vadd.f32 0.0, %v543
      %v545 = vpop.f32.mrb[0].mxu0
      %546 = vdwg.mxu0
      %v547 = vmul.f32 %v441, %v441
      %v549 = vcombine.high %v547, %v547
      %551 = vmatprep.subr.mxu0 0.0
      %552 = vmatpush1.msra.mxu0 %v442
      %553 = vmatprep.subr.mxu0 0.0
      %554 = vmatpush1.msra.mxu0 %v443
      %555 = vmatprep.subr.mxu0 0.0
      %556 = vmatpush1.msra.mxu0 %v444
      %557 = vmatprep.subr.mxu0 0.0
      %558 = vmatpush1.msra.mxu0 %v445
      %559 = vmatprep.subr.mxu0 0.0
      %560 = vmatpush1.msra.mxu0 %v446
      %561 = vmatprep.subr.mxu0 0.0
      %562 = vmatpush1.msra.mxu0 %v447
      %563 = vmatprep.subr.mxu0 0.0
      %564 = vmatpush1.msra.mxu0 %v448
      %565 = vmatprep.subr.mxu0 0.0
      %566 = vmatpush1.msra.mxu0 %v449
      %567 = vmatprep.subr.mxu0 0.0
      %568 = vmatpush1.msra.mxu0 %v450
      %569 = vmatprep.subr.mxu0 0.0
      %570 = vmatpush1.msra.mxu0 %v451
      %571 = vmatprep.subr.mxu0 0.0
      %572 = vmatpush1.msra.mxu0 %v452
      %573 = vmatprep.subr.mxu0 0.0
      %574 = vmatpush1.msra.mxu0 %v453
      %575 = vmatprep.subr.mxu0 0.0
      %576 = vmatpush1.msra.mxu0 %v454
      %577 = vmatprep.subr.mxu0 0.0
      %578 = vmatpush1.msra.mxu0 %v455
      %579 = vmatprep.subr.mxu0 0.0
      %580 = vmatpush1.msra.mxu0 %v456
      %581 = vmatprep.subr.mxu0 0.0
      %582 = vmatpush1.msra.mxu0 %v457
      %583 = vmatprep.subr.mxu0 0.0
      %584 = vmatpush1.msra.mxu0 %v458
      %585 = vmatprep.subr.mxu0 0.0
      %586 = vmatpush1.msra.mxu0 %v459
      %587 = vmatprep.subr.mxu0 0.0
      %588 = vmatpush1.msra.mxu0 %v460
      %589 = vmatprep.subr.mxu0 0.0
      %590 = vmatpush1.msra.mxu0 %v461
      %591 = vmatprep.subr.mxu0 0.0
      %592 = vmatpush1.msra.mxu0 %v462
      %593 = vmatprep.subr.mxu0 0.0
      %594 = vmatpush1.msra.mxu0 %v463
      %595 = vmatprep.subr.mxu0 0.0
      %596 = vmatpush1.msra.mxu0 %v464
      %597 = vmatprep.subr.mxu0 0.0
      %598 = vmatpush1.msra.mxu0 %v465
      %599 = vmatprep.subr.mxu0 0.0
      %600 = vmatpush1.msra.mxu0 %v466
      %601 = vmatprep.subr.mxu0 0.0
      %602 = vmatpush1.msra.mxu0 %v467
      %603 = vmatprep.subr.mxu0 0.0
      %604 = vmatpush1.msra.mxu0 %v468
      %605 = vmatprep.subr.mxu0 0.0
      %606 = vmatpush1.msra.mxu0 %v469
      %607 = vmatprep.subr.mxu0 0.0
      %608 = vmatpush1.msra.mxu0 %v470
      %609 = vmatprep.subr.mxu0 0.0
      %610 = vmatpush1.msra.mxu0 %v471
      %611 = vmatprep.subr.mxu0 0.0
      %612 = vmatpush1.msra.mxu0 %v472
      %613 = vmatprep.subr.mxu0 0.0
      %614 = vmatpush1.msra.mxu0 %v473
      %615 = vmatprep.mubr.f32.mxu0 %v549
      %616 = vmatmul.mubr.f32.gmra.mrb[0].mxu0 %v547
      %v617 = vpop.f32.mrb[0].mxu0
      %v618 = vadd.f32 0.0, %v617
      %v619 = vpop.f32.mrb[0].mxu0
      %620 = vdwg.mxu0
      %v621 = vmul.f32 %v544, 0.0625
      %v622 = vmul.f32 %v618, 0.0625
      %v623 = vmul.f32 %v621, %v621
      %v624 = vsub.f32 %v622, %v623
      %v625 = vadd.f32 %v624, 1e-05
      %v626 = vrsqrt.pop %v625
      %v627 = vld [vmem:[%s2] sm:$0xff]
      %v628 = vld [vmem:[%s2 + $0x8] sm:$0xff]
      %v629 = vld [vmem:[%s2 + $0x10] sm:$0xff]
      %v630 = vld [vmem:[%s2 + $0x18] sm:$0xff]
      %vm631 = vcmask 130048
      %v633 = vsel %vm631, %v621, 0
      %635 = vmatprep.subr.mxu0 %v628
      %636 = vmatpush1.msra.mxu0 %v627
      %637 = vmatprep.subr.mxu0 %v630
      %638 = vmatpush1.msra.mxu0 %v629
      %639 = vmatprep.subr.mxu0 0.0
      %640 = vmatpush1.msra.mxu0 0.0
      %641 = vmatprep.subr.mxu0 0.0
      %642 = vmatpush1.msra.mxu0 0.0
      %643 = vmatprep.subr.mxu0 0.0
      %644 = vmatpush1.msra.mxu0 0.0
      %645 = vmatprep.subr.mxu0 0.0
      %646 = vmatpush1.msra.mxu0 0.0
      %647 = vmatprep.subr.mxu0 0.0
      %648 = vmatpush1.msra.mxu0 0.0
      %649 = vmatprep.subr.mxu0 0.0
      %650 = vmatpush1.msra.mxu0 0.0
      %651 = vmatprep.subr.mxu0 0.0
      %652 = vmatpush1.msra.mxu0 0.0
      %653 = vmatprep.subr.mxu0 0.0
      %654 = vmatpush1.msra.mxu0 0.0
      %655 = vmatprep.subr.mxu0 0.0
      %656 = vmatpush1.msra.mxu0 0.0
      %657 = vmatprep.subr.mxu0 0.0
      %658 = vmatpush1.msra.mxu0 0.0
      %659 = vmatprep.subr.mxu0 0.0
      %660 = vmatpush1.msra.mxu0 0.0
      %661 = vmatprep.subr.mxu0 0.0
      %662 = vmatpush1.msra.mxu0 0.0
      %663 = vmatprep.subr.mxu0 0.0
      %664 = vmatpush1.msra.mxu0 0.0
      %665 = vmatprep.subr.mxu0 0.0
      %666 = vmatpush1.msra.mxu0 0.0
      %667 = vmatprep.subr.mxu0 0.0
      %668 = vmatpush1.msra.mxu0 0.0
      %669 = vmatprep.subr.mxu0 0.0
      %670 = vmatpush1.msra.mxu0 0.0
      %671 = vmatprep.subr.mxu0 0.0
      %672 = vmatpush1.msra.mxu0 0.0
      %673 = vmatprep.subr.mxu0 0.0
      %674 = vmatpush1.msra.mxu0 0.0
      %675 = vmatprep.subr.mxu0 0.0
      %676 = vmatpush1.msra.mxu0 0.0
      %677 = vmatprep.subr.mxu0 0.0
      %678 = vmatpush1.msra.mxu0 0.0
      %679 = vmatprep.subr.mxu0 0.0
      %680 = vmatpush1.msra.mxu0 0.0
      %681 = vmatprep.subr.mxu0 0.0
      %682 = vmatpush1.msra.mxu0 0.0
      %683 = vmatprep.subr.mxu0 0.0
      %684 = vmatpush1.msra.mxu0 0.0
      %685 = vmatprep.subr.mxu0 0.0
      %686 = vmatpush1.msra.mxu0 0.0
      %687 = vmatprep.subr.mxu0 0.0
      %688 = vmatpush1.msra.mxu0 0.0
      %689 = vmatprep.subr.mxu0 0.0
      %690 = vmatpush1.msra.mxu0 0.0
      %691 = vmatprep.subr.mxu0 0.0
      %692 = vmatpush1.msra.mxu0 0.0
      %693 = vmatprep.subr.mxu0 0.0
      %694 = vmatpush1.msra.mxu0 0.0
      %695 = vmatprep.subr.mxu0 0.0
      %696 = vmatpush1.msra.mxu0 0.0
      %697 = vmatprep.subr.mxu0 0.0
      %698 = vmatpush1.msra.mxu0 0.0
      %699 = vmatprep.mubr.f32.mxu0 0.0
      %700 = vmatmul.mubr.f32.gmra.mrb[0].mxu0 %v633
      %v701 = vpop.f32.mrb[0].mxu0
      %v702 = vadd.f32 0.0, %v701
      %v703 = vpop.f32.mrb[0].mxu0
      %v704 = vadd.f32 0.0, %v703
      %705 = vdwg.mxu0
      %v707 = vsel %vm631, %v626, 0
      %709 = vmatprep.subr.mxu0 %v628
      %710 = vmatpush1.msra.mxu0 %v627
      %711 = vmatprep.subr.mxu0 %v630
      %712 = vmatpush1.msra.mxu0 %v629
      %713 = vmatprep.subr.mxu0 0.0
      %714 = vmatpush1.msra.mxu0 0.0
      %715 = vmatprep.subr.mxu0 0.0
      %716 = vmatpush1.msra.mxu0 0.0
      %717 = vmatprep.subr.mxu0 0.0
      %718 = vmatpush1.msra.mxu0 0.0
      %719 = vmatprep.subr.mxu0 0.0
      %720 = vmatpush1.msra.mxu0 0.0
      %721 = vmatprep.subr.mxu0 0.0
      %722 = vmatpush1.msra.mxu0 0.0
      %723 = vmatprep.subr.mxu0 0.0
      %724 = vmatpush1.msra.mxu0 0.0
      %725 = vmatprep.subr.mxu0 0.0
      %726 = vmatpush1.msra.mxu0 0.0
      %727 = vmatprep.subr.mxu0 0.0
      %728 = vmatpush1.msra.mxu0 0.0
      %729 = vmatprep.subr.mxu0 0.0
      %730 = vmatpush1.msra.mxu0 0.0
      %731 = vmatprep.subr.mxu0 0.0
      %732 = vmatpush1.msra.mxu0 0.0
      %733 = vmatprep.subr.mxu0 0.0
      %734 = vmatpush1.msra.mxu0 0.0
      %735 = vmatprep.subr.mxu0 0.0
      %736 = vmatpush1.msra.mxu0 0.0
      %737 = vmatprep.subr.mxu0 0.0
      %738 = vmatpush1.msra.mxu0 0.0
      %739 = vmatprep.subr.mxu0 0.0
      %740 = vmatpush1.msra.mxu0 0.0
      %741 = vmatprep.subr.mxu0 0.0
      %742 = vmatpush1.msra.mxu0 0.0
      %743 = vmatprep.subr.mxu0 0.0
      %744 = vmatpush1.msra.mxu0 0.0
      %745 = vmatprep.subr.mxu0 0.0
      %746 = vmatpush1.msra.mxu0 0.0
      %747 = vmatprep.subr.mxu0 0.0
      %748 = vmatpush1.msra.mxu0 0.0
      %749 = vmatprep.subr.mxu0 0.0
      %750 = vmatpush1.msra.mxu0 0.0
      %751 = vmatprep.subr.mxu0 0.0
      %752 = vmatpush1.msra.mxu0 0.0
      %753 = vmatprep.subr.mxu0 0.0
      %754 = vmatpush1.msra.mxu0 0.0
      %755 = vmatprep.subr.mxu0 0.0
      %756 = vmatpush1.msra.mxu0 0.0
      %757 = vmatprep.subr.mxu0 0.0
      %758 = vmatpush1.msra.mxu0 0.0
      %759 = vmatprep.subr.mxu0 0.0
      %760 = vmatpush1.msra.mxu0 0.0
      %761 = vmatprep.subr.mxu0 0.0
      %762 = vmatpush1.msra.mxu0 0.0
      %763 = vmatprep.subr.mxu0 0.0
      %764 = vmatpush1.msra.mxu0 0.0
      %765 = vmatprep.subr.mxu0 0.0
      %766 = vmatpush1.msra.mxu0 0.0
      %767 = vmatprep.subr.mxu0 0.0
      %768 = vmatpush1.msra.mxu0 0.0
      %769 = vmatprep.subr.mxu0 0.0
      %770 = vmatpush1.msra.mxu0 0.0
      %771 = vmatprep.subr.mxu0 0.0
      %772 = vmatpush1.msra.mxu0 0.0
      %773 = vmatprep.mubr.f32.mxu0 0.0
      %774 = vmatmul.mubr.f32.gmra.mrb[0].mxu0 %v707
      %v775 = vpop.f32.mrb[0].mxu0
      %v776 = vadd.f32 0.0, %v775
      %v777 = vpop.f32.mrb[0].mxu0
      %v778 = vadd.f32 0.0, %v777
      %779 = vdwg.mxu0
      %v782 = vcombine.low %v702, %v704
      %v784 = vsub.f32 %v441, %v782
      %v787 = vcombine.low %v776, %v778
      %v789 = vmul.f32 %v784, %v787
      %v790 = vld [vmem:[%s5] sm:$0x3]
      %v792 = vlaneseq
      %v793 = vshrl.u32 %v792, 7
      %v794 = vsub.s32 0, %v793
      %v795 = vrot.slane %v790, %v794
      %v796 = vlaneseq
      %v797 = vshrl.u32 %v796, 7
      %v798 = vsub.s32 1, %v797
      %v799 = vrot.slane %v790, %v798
      %v800 = vcombine.low %v795, %v799
      %v802 = vmul.f32 %v789, %v800
      %v803 = vld [vmem:[%s6] sm:$0x3]
      %v805 = vlaneseq
      %v806 = vshrl.u32 %v805, 7
      %v807 = vsub.s32 0, %v806
      %v808 = vrot.slane %v803, %v807
      %v809 = vlaneseq
      %v810 = vshrl.u32 %v809, 7
      %v811 = vsub.s32 1, %v810
      %v812 = vrot.slane %v803, %v811
      %v813 = vcombine.low %v808, %v812
      %v815 = vadd.f32 %v802, %v813
      %v816 = vmul.f32 %v815, %v815
      %v817 = vmul.f32 %v815, %v816
      %v818 = vmul.f32 %v817, 0.044715
      %v819 = vadd.f32 %v815, %v818
      %v820 = vmul.f32 %v819, 0.7978846
      %v821 = vtanh.pop %v820
      %v822 = vadd.f32 %v821, 1.0
      %v823 = vmul.f32 %v822, 0.5
      %v824 = vmul.f32 %v815, %v823
      %v825 = vld [vmem:[%s3] sm:$0xff]
      %v826 = vld [vmem:[%s3 + $0x8] sm:$0xff]
      %v827 = vld [vmem:[%s3 + $0x10] sm:$0xff]
      %v828 = vld [vmem:[%s3 + $0x18] sm:$0xff]
      %v829 = vld [vmem:[%s3 + $0x20] sm:$0xff]
      %v830 = vld [vmem:[%s3 + $0x28] sm:$0xff]
      %v831 = vld [vmem:[%s3 + $0x30] sm:$0xff]
      %v832 = vld [vmem:[%s3 + $0x38] sm:$0xff]
      %v833 = vld [vmem:[%s3 + $0x40] sm:$0xff]
      %v834 = vld [vmem:[%s3 + $0x48] sm:$0xff]
      %v835 = vld [vmem:[%s3 + $0x50] sm:$0xff]
      %v836 = vld [vmem:[%s3 + $0x58] sm:$0xff]
      %v837 = vld [vmem:[%s3 + $0x60] sm:$0xff]
      %v838 = vld [vmem:[%s3 + $0x68] sm:$0xff]
      %v839 = vld [vmem:[%s3 + $0x70] sm:$0xff]
      %v840 = vld [vmem:[%s3 + $0x78] sm:$0xff]
      %v841 = vld [vmem:[%s3 + $0x80] sm:$0xff]
      %v842 = vld [vmem:[%s3 + $0x88] sm:$0xff]
      %v843 = vld [vmem:[%s3 + $0x90] sm:$0xff]
      %v844 = vld [vmem:[%s3 + $0x98] sm:$0xff]
      %v845 = vld [vmem:[%s3 + $0xa0] sm:$0xff]
      %v846 = vld [vmem:[%s3 + $0xa8] sm:$0xff]
      %v847 = vld [vmem:[%s3 + $0xb0] sm:$0xff]
      %v848 = vld [vmem:[%s3 + $0xb8] sm:$0xff]
      %v849 = vld [vmem:[%s3 + $0xc0] sm:$0xff]
      %v850 = vld [vmem:[%s3 + $0xc8] sm:$0xff]
      %v851 = vld [vmem:[%s3 + $0xd0] sm:$0xff]
      %v852 = vld [vmem:[%s3 + $0xd8] sm:$0xff]
      %v853 = vld [vmem:[%s3 + $0xe0] sm:$0xff]
      %v854 = vld [vmem:[%s3 + $0xe8] sm:$0xff]
      %v855 = vld [vmem:[%s3 + $0xf0] sm:$0xff]
      %v856 = vld [vmem:[%s3 + $0xf8] sm:$0xff]
      %v857 = vld [vmem:[%s3 + $0x100] sm:$0xff]
      %v858 = vld [vmem:[%s3 + $0x108] sm:$0xff]
      %v859 = vld [vmem:[%s3 + $0x110] sm:$0xff]
      %v860 = vld [vmem:[%s3 + $0x118] sm:$0xff]
      %v861 = vld [vmem:[%s3 + $0x120] sm:$0xff]
      %v862 = vld [vmem:[%s3 + $0x128] sm:$0xff]
      %v863 = vld [vmem:[%s3 + $0x130] sm:$0xff]
      %v864 = vld [vmem:[%s3 + $0x138] sm:$0xff]
      %v865 = vld [vmem:[%s3 + $0x140] sm:$0xff]
      %v866 = vld [vmem:[%s3 + $0x148] sm:$0xff]
      %v867 = vld [vmem:[%s3 + $0x150] sm:$0xff]
      %v868 = vld [vmem:[%s3 + $0x158] sm:$0xff]
      %v869 = vld [vmem:[%s3 + $0x160] sm:$0xff]
      %v870 = vld [vmem:[%s3 + $0x168] sm:$0xff]
      %v871 = vld [vmem:[%s3 + $0x170] sm:$0xff]
      %v872 = vld [vmem:[%s3 + $0x178] sm:$0xff]
      %v873 = vld [vmem:[%s3 + $0x180] sm:$0xff]
      %v874 = vld [vmem:[%s3 + $0x188] sm:$0xff]
      %v875 = vld [vmem:[%s3 + $0x190] sm:$0xff]
      %v876 = vld [vmem:[%s3 + $0x198] sm:$0xff]
      %v877 = vld [vmem:[%s3 + $0x1a0] sm:$0xff]
      %v878 = vld [vmem:[%s3 + $0x1a8] sm:$0xff]
      %v879 = vld [vmem:[%s3 + $0x1b0] sm:$0xff]
      %v880 = vld [vmem:[%s3 + $0x1b8] sm:$0xff]
      %v881 = vld [vmem:[%s3 + $0x1c0] sm:$0xff]
      %v882 = vld [vmem:[%s3 + $0x1c8] sm:$0xff]
      %v883 = vld [vmem:[%s3 + $0x1d0] sm:$0xff]
      %v884 = vld [vmem:[%s3 + $0x1d8] sm:$0xff]
      %v885 = vld [vmem:[%s3 + $0x1e0] sm:$0xff]
      %v886 = vld [vmem:[%s3 + $0x1e8] sm:$0xff]
      %v887 = vld [vmem:[%s3 + $0x1f0] sm:$0xff]
      %v888 = vld [vmem:[%s3 + $0x1f8] sm:$0xff]
      %v889 = vld [vmem:[%s3 + $0x200] sm:$0xff]
      %v890 = vld [vmem:[%s3 + $0x208] sm:$0xff]
      %v891 = vld [vmem:[%s3 + $0x210] sm:$0xff]
      %v892 = vld [vmem:[%s3 + $0x218] sm:$0xff]
      %v893 = vld [vmem:[%s3 + $0x220] sm:$0xff]
      %v894 = vld [vmem:[%s3 + $0x228] sm:$0xff]
      %v895 = vld [vmem:[%s3 + $0x230] sm:$0xff]
      %v896 = vld [vmem:[%s3 + $0x238] sm:$0xff]
      %v897 = vld [vmem:[%s3 + $0x240] sm:$0xff]
      %v898 = vld [vmem:[%s3 + $0x248] sm:$0xff]
      %v899 = vld [vmem:[%s3 + $0x250] sm:$0xff]
      %v900 = vld [vmem:[%s3 + $0x258] sm:$0xff]
      %v901 = vld [vmem:[%s3 + $0x260] sm:$0xff]
      %v902 = vld [vmem:[%s3 + $0x268] sm:$0xff]
      %v903 = vld [vmem:[%s3 + $0x270] sm:$0xff]
      %v904 = vld [vmem:[%s3 + $0x278] sm:$0xff]
      %v905 = vld [vmem:[%s3 + $0x280] sm:$0xff]
      %v906 = vld [vmem:[%s3 + $0x288] sm:$0xff]
      %v907 = vld [vmem:[%s3 + $0x290] sm:$0xff]
      %v908 = vld [vmem:[%s3 + $0x298] sm:$0xff]
      %v909 = vld [vmem:[%s3 + $0x2a0] sm:$0xff]
      %v910 = vld [vmem:[%s3 + $0x2a8] sm:$0xff]
      %v911 = vld [vmem:[%s3 + $0x2b0] sm:$0xff]
      %v912 = vld [vmem:[%s3 + $0x2b8] sm:$0xff]
      %v913 = vld [vmem:[%s3 + $0x2c0] sm:$0xff]
      %v914 = vld [vmem:[%s3 + $0x2c8] sm:$0xff]
      %v915 = vld [vmem:[%s3 + $0x2d0] sm:$0xff]
      %v916 = vld [vmem:[%s3 + $0x2d8] sm:$0xff]
      %v917 = vld [vmem:[%s3 + $0x2e0] sm:$0xff]
      %v918 = vld [vmem:[%s3 + $0x2e8] sm:$0xff]
      %v919 = vld [vmem:[%s3 + $0x2f0] sm:$0xff]
      %v920 = vld [vmem:[%s3 + $0x2f8] sm:$0xff]
      %v922 = vcombine.high %v824, %v824
      %924 = vmatprep.subr.mxu0 %v826
      %925 = vmatpush1.msra.mxu0 %v825
      %926 = vmatprep.subr.mxu0 %v829
      %927 = vmatpush1.msra.mxu0 %v828
      %928 = vmatprep.subr.mxu0 %v832
      %929 = vmatpush1.msra.mxu0 %v831
      %930 = vmatprep.subr.mxu0 %v835
      %931 = vmatpush1.msra.mxu0 %v834
      %932 = vmatprep.subr.mxu0 %v838
      %933 = vmatpush1.msra.mxu0 %v837
      %934 = vmatprep.subr.mxu0 %v841
      %935 = vmatpush1.msra.mxu0 %v840
      %936 = vmatprep.subr.mxu0 %v844
      %937 = vmatpush1.msra.mxu0 %v843
      %938 = vmatprep.subr.mxu0 %v847
      %939 = vmatpush1.msra.mxu0 %v846
      %940 = vmatprep.subr.mxu0 %v850
      %941 = vmatpush1.msra.mxu0 %v849
      %942 = vmatprep.subr.mxu0 %v853
      %943 = vmatpush1.msra.mxu0 %v852
      %944 = vmatprep.subr.mxu0 %v856
      %945 = vmatpush1.msra.mxu0 %v855
      %946 = vmatprep.subr.mxu0 %v859
      %947 = vmatpush1.msra.mxu0 %v858
      %948 = vmatprep.subr.mxu0 %v862
      %949 = vmatpush1.msra.mxu0 %v861
      %950 = vmatprep.subr.mxu0 %v865
      %951 = vmatpush1.msra.mxu0 %v864
      %952 = vmatprep.subr.mxu0 %v868
      %953 = vmatpush1.msra.mxu0 %v867
      %954 = vmatprep.subr.mxu0 %v871
      %955 = vmatpush1.msra.mxu0 %v870
      %956 = vmatprep.subr.mxu0 %v874
      %957 = vmatpush1.msra.mxu0 %v873
      %958 = vmatprep.subr.mxu0 %v877
      %959 = vmatpush1.msra.mxu0 %v876
      %960 = vmatprep.subr.mxu0 %v880
      %961 = vmatpush1.msra.mxu0 %v879
      %962 = vmatprep.subr.mxu0 %v883
      %963 = vmatpush1.msra.mxu0 %v882
      %964 = vmatprep.subr.mxu0 %v886
      %965 = vmatpush1.msra.mxu0 %v885
      %966 = vmatprep.subr.mxu0 %v889
      %967 = vmatpush1.msra.mxu0 %v888
      %968 = vmatprep.subr.mxu0 %v892
      %969 = vmatpush1.msra.mxu0 %v891
      %970 = vmatprep.subr.mxu0 %v895
      %971 = vmatpush1.msra.mxu0 %v894
      %972 = vmatprep.subr.mxu0 %v898
      %973 = vmatpush1.msra.mxu0 %v897
      %974 = vmatprep.subr.mxu0 %v901
      %975 = vmatpush1.msra.mxu0 %v900
      %976 = vmatprep.subr.mxu0 %v904
      %977 = vmatpush1.msra.mxu0 %v903
      %978 = vmatprep.subr.mxu0 %v907
      %979 = vmatpush1.msra.mxu0 %v906
      %980 = vmatprep.subr.mxu0 %v910
      %981 = vmatpush1.msra.mxu0 %v909
      %982 = vmatprep.subr.mxu0 %v913
      %983 = vmatpush1.msra.mxu0 %v912
      %984 = vmatprep.subr.mxu0 %v916
      %985 = vmatpush1.msra.mxu0 %v915
      %986 = vmatprep.subr.mxu0 %v919
      %987 = vmatpush1.msra.mxu0 %v918
      %988 = vmatprep.mubr.f32.mxu0 %v922
      %989 = vmatmul.mubr.f32.gmra.mrb[0].mxu0 %v824
      %v990 = vpop.f32.mrb[0].mxu0
      %v991 = vadd.f32 0.0, %v990
      %v992 = vpop.f32.mrb[0].mxu0
      %v993 = vadd.f32 0.0, %v992
      %994 = vdwg.mxu0
      %995 = vmatprep.subr.mxu0 0.0
      %996 = vmatpush1.msra.mxu0 %v827
      %997 = vmatprep.subr.mxu0 0.0
      %998 = vmatpush1.msra.mxu0 %v830
      %999 = vmatprep.subr.mxu0 0.0
      %1000 = vmatpush1.msra.mxu0 %v833
      %1001 = vmatprep.subr.mxu0 0.0
      %1002 = vmatpush1.msra.mxu0 %v836
      %1003 = vmatprep.subr.mxu0 0.0
      %1004 = vmatpush1.msra.mxu0 %v839
      %1005 = vmatprep.subr.mxu0 0.0
      %1006 = vmatpush1.msra.mxu0 %v842
      %1007 = vmatprep.subr.mxu0 0.0
      %1008 = vmatpush1.msra.mxu0 %v845
      %1009 = vmatprep.subr.mxu0 0.0
      %1010 = vmatpush1.msra.mxu0 %v848
      %1011 = vmatprep.subr.mxu0 0.0
      %1012 = vmatpush1.msra.mxu0 %v851
      %1013 = vmatprep.subr.mxu0 0.0
      %1014 = vmatpush1.msra.mxu0 %v854
      %1015 = vmatprep.subr.mxu0 0.0
      %1016 = vmatpush1.msra.mxu0 %v857
      %1017 = vmatprep.subr.mxu0 0.0
      %1018 = vmatpush1.msra.mxu0 %v860
      %1019 = vmatprep.subr.mxu0 0.0
      %1020 = vmatpush1.msra.mxu0 %v863
      %1021 = vmatprep.subr.mxu0 0.0
      %1022 = vmatpush1.msra.mxu0 %v866
      %1023 = vmatprep.subr.mxu0 0.0
      %1024 = vmatpush1.msra.mxu0 %v869
      %1025 = vmatprep.subr.mxu0 0.0
      %1026 = vmatpush1.msra.mxu0 %v872
      %1027 = vmatprep.subr.mxu0 0.0
      %1028 = vmatpush1.msra.mxu0 %v875
      %1029 = vmatprep.subr.mxu0 0.0
      %1030 = vmatpush1.msra.mxu0 %v878
      %1031 = vmatprep.subr.mxu0 0.0
      %1032 = vmatpush1.msra.mxu0 %v881
      %1033 = vmatprep.subr.mxu0 0.0
      %1034 = vmatpush1.msra.mxu0 %v884
      %1035 = vmatprep.subr.mxu0 0.0
      %1036 = vmatpush1.msra.mxu0 %v887
      %1037 = vmatprep.subr.mxu0 0.0
      %1038 = vmatpush1.msra.mxu0 %v890
      %1039 = vmatprep.subr.mxu0 0.0
      %1040 = vmatpush1.msra.mxu0 %v893
      %1041 = vmatprep.subr.mxu0 0.0
      %1042 = vmatpush1.msra.mxu0 %v896
      %1043 = vmatprep.subr.mxu0 0.0
      %1044 = vmatpush1.msra.mxu0 %v899
      %1045 = vmatprep.subr.mxu0 0.0
      %1046 = vmatpush1.msra.mxu0 %v902
      %1047 = vmatprep.subr.mxu0 0.0
      %1048 = vmatpush1.msra.mxu0 %v905
      %1049 = vmatprep.subr.mxu0 0.0
      %1050 = vmatpush1.msra.mxu0 %v908
      %1051 = vmatprep.subr.mxu0 0.0
      %1052 = vmatpush1.msra.mxu0 %v911
      %1053 = vmatprep.subr.mxu0 0.0
      %1054 = vmatpush1.msra.mxu0 %v914
      %1055 = vmatprep.subr.mxu0 0.0
      %1056 = vmatpush1.msra.mxu0 %v917
      %1057 = vmatprep.subr.mxu0 0.0
      %1058 = vmatpush1.msra.mxu0 %v920
      %1059 = vmatprep.mubr.f32.mxu0 %v922
      %1060 = vmatmul.mubr.f32.gmra.mrb[0].mxu0 %v824
      %v1061 = vpop.f32.mrb[0].mxu0
      %v1062 = vadd.f32 0.0, %v1061
      %v1063 = vpop.f32.mrb[0].mxu0
      %1064 = vdwg.mxu0
      %v1065 = vld [vmem:[%s7] sm:$0xf]
      %s1066 = scalar_lea.vmem %s7, 4
      %v1067 = vld [vmem:[%s1066] sm:$0xf]
      %1071 = vrot.lane.b32.xlu0 %v991, 127
      %v1072 = vpop.permute.xlu0 %1071
      %1073 = vrot.lane.b32.xlu0 %v993, 127
      %v1074 = vpop.permute.xlu0 %1073
      %1075 = vrot.lane.b32.xlu0 %v1062, 127
      %v1076 = vpop.permute.xlu0 %1075
      %vm1077 = vcmask 1039360
      %v1078 = vsel %vm1077, %v1072, %v1074
      %v1079 = vsel %vm1077, %v1074, %v1076
      %vm1080 = vcmask 31744
      %v1082 = vsel %vm1080, %v1067, 0
      %vm1084 = vcmask 1043456
      %v1085 = vsel %vm1084, %v1078, 0
      %v1087 = vsel %vm1084, %v1079, 0
      %v1089 = vsel %vm1084, %v1076, 0
      %1091 = vmatprep.subr.mxu0 %v1087
      %1092 = vmatpush1.msra.mxu0 %v1085
      %1093 = vmatprep.subr.mxu0 0.0
      %1094 = vmatpush1.msra.mxu0 0.0
      %1095 = vmatprep.subr.mxu0 0.0
      %1096 = vmatpush1.msra.mxu0 0.0
      %1097 = vmatprep.subr.mxu0 0.0
      %1098 = vmatpush1.msra.mxu0 0.0
      %1099 = vmatprep.subr.mxu0 0.0
      %1100 = vmatpush1.msra.mxu0 0.0
      %1101 = vmatprep.subr.mxu0 0.0
      %1102 = vmatpush1.msra.mxu0 0.0
      %1103 = vmatprep.subr.mxu0 0.0
      %1104 = vmatpush1.msra.mxu0 0.0
      %1105 = vmatprep.subr.mxu0 0.0
      %1106 = vmatpush1.msra.mxu0 0.0
      %1107 = vmatprep.subr.mxu0 0.0
      %1108 = vmatpush1.msra.mxu0 0.0
      %1109 = vmatprep.subr.mxu0 0.0
      %1110 = vmatpush1.msra.mxu0 0.0
      %1111 = vmatprep.subr.mxu0 0.0
      %1112 = vmatpush1.msra.mxu0 0.0
      %1113 = vmatprep.subr.mxu0 0.0
      %1114 = vmatpush1.msra.mxu0 0.0
      %1115 = vmatprep.subr.mxu0 0.0
      %1116 = vmatpush1.msra.mxu0 0.0
      %1117 = vmatprep.subr.mxu0 0.0
      %1118 = vmatpush1.msra.mxu0 0.0
      %1119 = vmatprep.subr.mxu0 0.0
      %1120 = vmatpush1.msra.mxu0 0.0
      %1121 = vmatprep.subr.mxu0 0.0
      %1122 = vmatpush1.msra.mxu0 0.0
      %1123 = vmatprep.subr.mxu0 0.0
      %1124 = vmatpush1.msra.mxu0 0.0
      %1125 = vmatprep.subr.mxu0 0.0
      %1126 = vmatpush1.msra.mxu0 0.0
      %1127 = vmatprep.subr.mxu0 0.0
      %1128 = vmatpush1.msra.mxu0 0.0
      %1129 = vmatprep.subr.mxu0 0.0
      %1130 = vmatpush1.msra.mxu0 0.0
      %1131 = vmatprep.subr.mxu0 0.0
      %1132 = vmatpush1.msra.mxu0 0.0
      %1133 = vmatprep.subr.mxu0 0.0
      %1134 = vmatpush1.msra.mxu0 0.0
      %1135 = vmatprep.subr.mxu0 0.0
      %1136 = vmatpush1.msra.mxu0 0.0
      %1137 = vmatprep.subr.mxu0 0.0
      %1138 = vmatpush1.msra.mxu0 0.0
      %1139 = vmatprep.subr.mxu0 0.0
      %1140 = vmatpush1.msra.mxu0 0.0
      %1141 = vmatprep.subr.mxu0 0.0
      %1142 = vmatpush1.msra.mxu0 0.0
      %1143 = vmatprep.subr.mxu0 0.0
      %1144 = vmatpush1.msra.mxu0 0.0
      %1145 = vmatprep.subr.mxu0 0.0
      %1146 = vmatpush1.msra.mxu0 0.0
      %1147 = vmatprep.subr.mxu0 0.0
      %1148 = vmatpush1.msra.mxu0 0.0
      %1149 = vmatprep.subr.mxu0 0.0
      %1150 = vmatpush1.msra.mxu0 0.0
      %1151 = vmatprep.subr.mxu0 0.0
      %1152 = vmatpush1.msra.mxu0 0.0
      %1153 = vmatprep.subr.mxu0 0.0
      %1154 = vmatpush1.msra.mxu0 0.0
      %1155 = vmatprep.mubr.f32.mxu0 0.0
      %1156 = vmatmul.mubr.f32.gmra.mrb[0].mxu0 %v1082
      %v1157 = vpop.f32.mrb[0].mxu0
      %v1158 = vadd.f32 0.0, %v1157
      %v1159 = vpop.f32.mrb[0].mxu0
      %v1160 = vadd.f32 0.0, %v1159
      %1161 = vdwg.mxu0
      %1162 = vmatprep.subr.mxu0 0.0
      %1163 = vmatpush1.msra.mxu0 %v1089
      %1164 = vmatprep.subr.mxu0 0.0
      %1165 = vmatpush1.msra.mxu0 0.0
      %1166 = vmatprep.subr.mxu0 0.0
      %1167 = vmatpush1.msra.mxu0 0.0
      %1168 = vmatprep.subr.mxu0 0.0
      %1169 = vmatpush1.msra.mxu0 0.0
      %1170 = vmatprep.subr.mxu0 0.0
      %1171 = vmatpush1.msra.mxu0 0.0
      %1172 = vmatprep.subr.mxu0 0.0
      %1173 = vmatpush1.msra.mxu0 0.0
      %1174 = vmatprep.subr.mxu0 0.0
      %1175 = vmatpush1.msra.mxu0 0.0
      %1176 = vmatprep.subr.mxu0 0.0
      %1177 = vmatpush1.msra.mxu0 0.0
      %1178 = vmatprep.subr.mxu0 0.0
      %1179 = vmatpush1.msra.mxu0 0.0
      %1180 = vmatprep.subr.mxu0 0.0
      %1181 = vmatpush1.msra.mxu0 0.0
      %1182 = vmatprep.subr.mxu0 0.0
      %1183 = vmatpush1.msra.mxu0 0.0
      %1184 = vmatprep.subr.mxu0 0.0
      %1185 = vmatpush1.msra.mxu0 0.0
      %1186 = vmatprep.subr.mxu0 0.0
      %1187 = vmatpush1.msra.mxu0 0.0
      %1188 = vmatprep.subr.mxu0 0.0
      %1189 = vmatpush1.msra.mxu0 0.0
      %1190 = vmatprep.subr.mxu0 0.0
      %1191 = vmatpush1.msra.mxu0 0.0
      %1192 = vmatprep.subr.mxu0 0.0
      %1193 = vmatpush1.msra.mxu0 0.0
      %1194 = vmatprep.subr.mxu0 0.0
      %1195 = vmatpush1.msra.mxu0 0.0
      %1196 = vmatprep.subr.mxu0 0.0
      %1197 = vmatpush1.msra.mxu0 0.0
      %1198 = vmatprep.subr.mxu0 0.0
      %1199 = vmatpush1.msra.mxu0 0.0
      %1200 = vmatprep.subr.mxu0 0.0
      %1201 = vmatpush1.msra.mxu0 0.0
      %1202 = vmatprep.subr.mxu0 0.0
      %1203 = vmatpush1.msra.mxu0 0.0
      %1204 = vmatprep.subr.mxu0 0.0
      %1205 = vmatpush1.msra.mxu0 0.0
      %1206 = vmatprep.subr.mxu0 0.0
      %1207 = vmatpush1.msra.mxu0 0.0
      %1208 = vmatprep.subr.mxu0 0.0
      %1209 = vmatpush1.msra.mxu0 0.0
      %1210 = vmatprep.subr.mxu0 0.0
      %1211 = vmatpush1.msra.mxu0 0.0
      %1212 = vmatprep.subr.mxu0 0.0
      %1213 = vmatpush1.msra.mxu0 0.0
      %1214 = vmatprep.subr.mxu0 0.0
      %1215 = vmatpush1.msra.mxu0 0.0
      %1216 = vmatprep.subr.mxu0 0.0
      %1217 = vmatpush1.msra.mxu0 0.0
      %1218 = vmatprep.subr.mxu0 0.0
      %1219 = vmatpush1.msra.mxu0 0.0
      %1220 = vmatprep.subr.mxu0 0.0
      %1221 = vmatpush1.msra.mxu0 0.0
      %1222 = vmatprep.subr.mxu0 0.0
      %1223 = vmatpush1.msra.mxu0 0.0
      %1224 = vmatprep.subr.mxu0 0.0
      %1225 = vmatpush1.msra.mxu0 0.0
      %1226 = vmatprep.mubr.f32.mxu0 0.0
      %1227 = vmatmul.mubr.f32.gmra.mrb[0].mxu0 %v1082
      %v1228 = vpop.f32.mrb[0].mxu0
      %v1229 = vadd.f32 0.0, %v1228
      %v1230 = vpop.f32.mrb[0].mxu0
      %1231 = vdwg.mxu0
      %v1233 = vsel %vm1080, %v1065, 0
      %v1235 = vsel %vm1084, %v991, 0
      %v1237 = vsel %vm1084, %v993, 0
      %v1239 = vsel %vm1084, %v1062, 0
      %1241 = vmatprep.subr.mxu0 %v1237
      %1242 = vmatpush1.msra.mxu0 %v1235
      %1243 = vmatprep.subr.mxu0 0.0
      %1244 = vmatpush1.msra.mxu0 0.0
      %1245 = vmatprep.subr.mxu0 0.0
      %1246 = vmatpush1.msra.mxu0 0.0
      %1247 = vmatprep.subr.mxu0 0.0
      %1248 = vmatpush1.msra.mxu0 0.0
      %1249 = vmatprep.subr.mxu0 0.0
      %1250 = vmatpush1.msra.mxu0 0.0
      %1251 = vmatprep.subr.mxu0 0.0
      %1252 = vmatpush1.msra.mxu0 0.0
      %1253 = vmatprep.subr.mxu0 0.0
      %1254 = vmatpush1.msra.mxu0 0.0
      %1255 = vmatprep.subr.mxu0 0.0
      %1256 = vmatpush1.msra.mxu0 0.0
      %1257 = vmatprep.subr.mxu0 0.0
      %1258 = vmatpush1.msra.mxu0 0.0
      %1259 = vmatprep.subr.mxu0 0.0
      %1260 = vmatpush1.msra.mxu0 0.0
      %1261 = vmatprep.subr.mxu0 0.0
      %1262 = vmatpush1.msra.mxu0 0.0
      %1263 = vmatprep.subr.mxu0 0.0
      %1264 = vmatpush1.msra.mxu0 0.0
      %1265 = vmatprep.subr.mxu0 0.0
      %1266 = vmatpush1.msra.mxu0 0.0
      %1267 = vmatprep.subr.mxu0 0.0
      %1268 = vmatpush1.msra.mxu0 0.0
      %1269 = vmatprep.subr.mxu0 0.0
      %1270 = vmatpush1.msra.mxu0 0.0
      %1271 = vmatprep.subr.mxu0 0.0
      %1272 = vmatpush1.msra.mxu0 0.0
      %1273 = vmatprep.subr.mxu0 0.0
      %1274 = vmatpush1.msra.mxu0 0.0
      %1275 = vmatprep.subr.mxu0 0.0
      %1276 = vmatpush1.msra.mxu0 0.0
      %1277 = vmatprep.subr.mxu0 0.0
      %1278 = vmatpush1.msra.mxu0 0.0
      %1279 = vmatprep.subr.mxu0 0.0
      %1280 = vmatpush1.msra.mxu0 0.0
      %1281 = vmatprep.subr.mxu0 0.0
      %1282 = vmatpush1.msra.mxu0 0.0
      %1283 = vmatprep.subr.mxu0 0.0
      %1284 = vmatpush1.msra.mxu0 0.0
      %1285 = vmatprep.subr.mxu0 0.0
      %1286 = vmatpush1.msra.mxu0 0.0
      %1287 = vmatprep.subr.mxu0 0.0
      %1288 = vmatpush1.msra.mxu0 0.0
      %1289 = vmatprep.subr.mxu0 0.0
      %1290 = vmatpush1.msra.mxu0 0.0
      %1291 = vmatprep.subr.mxu0 0.0
      %1292 = vmatpush1.msra.mxu0 0.0
      %1293 = vmatprep.subr.mxu0 0.0
      %1294 = vmatpush1.msra.mxu0 0.0
      %1295 = vmatprep.subr.mxu0 0.0
      %1296 = vmatpush1.msra.mxu0 0.0
      %1297 = vmatprep.subr.mxu0 0.0
      %1298 = vmatpush1.msra.mxu0 0.0
      %1299 = vmatprep.subr.mxu0 0.0
      %1300 = vmatpush1.msra.mxu0 0.0
      %1301 = vmatprep.subr.mxu0 0.0
      %1302 = vmatpush1.msra.mxu0 0.0
      %1303 = vmatprep.subr.mxu0 0.0
      %1304 = vmatpush1.msra.mxu0 0.0
      %1305 = vmatprep.mubr.f32.mxu0 0.0
      %1306 = vmatmul.mubr.f32.gmra.mrb[0].mxu0 %v1233
      %v1307 = vpop.f32.mrb[0].mxu0
      %v1308 = vadd.f32 %v1158, %v1307
      %v1309 = vpop.f32.mrb[0].mxu0
      %v1310 = vadd.f32 %v1160, %v1309
      %1311 = vdwg.mxu0
      %1312 = vmatprep.subr.mxu0 0.0
      %1313 = vmatpush1.msra.mxu0 %v1239
      %1314 = vmatprep.subr.mxu0 0.0
      %1315 = vmatpush1.msra.mxu0 0.0
      %1316 = vmatprep.subr.mxu0 0.0
      %1317 = vmatpush1.msra.mxu0 0.0
      %1318 = vmatprep.subr.mxu0 0.0
      %1319 = vmatpush1.msra.mxu0 0.0
      %1320 = vmatprep.subr.mxu0 0.0
      %1321 = vmatpush1.msra.mxu0 0.0
      %1322 = vmatprep.subr.mxu0 0.0
      %1323 = vmatpush1.msra.mxu0 0.0
      %1324 = vmatprep.subr.mxu0 0.0
      %1325 = vmatpush1.msra.mxu0 0.0
      %1326 = vmatprep.subr.mxu0 0.0
      %1327 = vmatpush1.msra.mxu0 0.0
      %1328 = vmatprep.subr.mxu0 0.0
      %1329 = vmatpush1.msra.mxu0 0.0
      %1330 = vmatprep.subr.mxu0 0.0
      %1331 = vmatpush1.msra.mxu0 0.0
      %1332 = vmatprep.subr.mxu0 0.0
      %1333 = vmatpush1.msra.mxu0 0.0
      %1334 = vmatprep.subr.mxu0 0.0
      %1335 = vmatpush1.msra.mxu0 0.0
      %1336 = vmatprep.subr.mxu0 0.0
      %1337 = vmatpush1.msra.mxu0 0.0
      %1338 = vmatprep.subr.mxu0 0.0
      %1339 = vmatpush1.msra.mxu0 0.0
      %1340 = vmatprep.subr.mxu0 0.0
      %1341 = vmatpush1.msra.mxu0 0.0
      %1342 = vmatprep.subr.mxu0 0.0
      %1343 = vmatpush1.msra.mxu0 0.0
      %1344 = vmatprep.subr.mxu0 0.0
      %1345 = vmatpush1.msra.mxu0 0.0
      %1346 = vmatprep.subr.mxu0 0.0
      %1347 = vmatpush1.msra.mxu0 0.0
      %1348 = vmatprep.subr.mxu0 0.0
      %1349 = vmatpush1.msra.mxu0 0.0
      %1350 = vmatprep.subr.mxu0 0.0
      %1351 = vmatpush1.msra.mxu0 0.0
      %1352 = vmatprep.subr.mxu0 0.0
      %1353 = vmatpush1.msra.mxu0 0.0
      %1354 = vmatprep.subr.mxu0 0.0
      %1355 = vmatpush1.msra.mxu0 0.0
      %1356 = vmatprep.subr.mxu0 0.0
      %1357 = vmatpush1.msra.mxu0 0.0
      %1358 = vmatprep.subr.mxu0 0.0
      %1359 = vmatpush1.msra.mxu0 0.0
      %1360 = vmatprep.subr.mxu0 0.0
      %1361 = vmatpush1.msra.mxu0 0.0
      %1362 = vmatprep.subr.mxu0 0.0
      %1363 = vmatpush1.msra.mxu0 0.0
      %1364 = vmatprep.subr.mxu0 0.0
      %1365 = vmatpush1.msra.mxu0 0.0
      %1366 = vmatprep.subr.mxu0 0.0
      %1367 = vmatpush1.msra.mxu0 0.0
      %1368 = vmatprep.subr.mxu0 0.0
      %1369 = vmatpush1.msra.mxu0 0.0
      %1370 = vmatprep.subr.mxu0 0.0
      %1371 = vmatpush1.msra.mxu0 0.0
      %1372 = vmatprep.subr.mxu0 0.0
      %1373 = vmatpush1.msra.mxu0 0.0
      %1374 = vmatprep.subr.mxu0 0.0
      %1375 = vmatpush1.msra.mxu0 0.0
      %1376 = vmatprep.mubr.f32.mxu0 0.0
      %1377 = vmatmul.mubr.f32.gmra.mrb[0].mxu0 %v1233
      %v1378 = vpop.f32.mrb[0].mxu0
      %v1379 = vadd.f32 %v1229, %v1378
      %v1380 = vpop.f32.mrb[0].mxu0
      %1381 = vdwg.mxu0
      %s1382 = scalar_lea.vmem %s7, 8
      %v1383 = vld [vmem:[%s1382] sm:$0xf]
      %1384 = vrot.lane.b32.xlu0 %v991, 126
      %v1385 = vpop.permute.xlu0 %1384
      %1386 = vrot.lane.b32.xlu0 %v993, 126
      %v1387 = vpop.permute.xlu0 %1386
      %1388 = vrot.lane.b32.xlu0 %v1062, 126
      %v1389 = vpop.permute.xlu0 %1388
      %vm1390 = vcmask 1031168
      %v1391 = vsel %vm1390, %v1385, %v1387
      %v1392 = vsel %vm1390, %v1387, %v1389
      %v1394 = vsel %vm1080, %v1383, 0
      %v1396 = vsel %vm1084, %v1391, 0
      %v1398 = vsel %vm1084, %v1392, 0
      %v1400 = vsel %vm1084, %v1389, 0
      %1402 = vmatprep.subr.mxu0 %v1398
      %1403 = vmatpush1.msra.mxu0 %v1396
      %1404 = vmatprep.subr.mxu0 0.0
      %1405 = vmatpush1.msra.mxu0 0.0
      %1406 = vmatprep.subr.mxu0 0.0
      %1407 = vmatpush1.msra.mxu0 0.0
      %1408 = vmatprep.subr.mxu0 0.0
      %1409 = vmatpush1.msra.mxu0 0.0
      %1410 = vmatprep.subr.mxu0 0.0
      %1411 = vmatpush1.msra.mxu0 0.0
      %1412 = vmatprep.subr.mxu0 0.0
      %1413 = vmatpush1.msra.mxu0 0.0
      %1414 = vmatprep.subr.mxu0 0.0
      %1415 = vmatpush1.msra.mxu0 0.0
      %1416 = vmatprep.subr.mxu0 0.0
      %1417 = vmatpush1.msra.mxu0 0.0
      %1418 = vmatprep.subr.mxu0 0.0
      %1419 = vmatpush1.msra.mxu0 0.0
      %1420 = vmatprep.subr.mxu0 0.0
      %1421 = vmatpush1.msra.mxu0 0.0
      %1422 = vmatprep.subr.mxu0 0.0
      %1423 = vmatpush1.msra.mxu0 0.0
      %1424 = vmatprep.subr.mxu0 0.0
      %1425 = vmatpush1.msra.mxu0 0.0
      %1426 = vmatprep.subr.mxu0 0.0
      %1427 = vmatpush1.msra.mxu0 0.0
      %1428 = vmatprep.subr.mxu0 0.0
      %1429 = vmatpush1.msra.mxu0 0.0
      %1430 = vmatprep.subr.mxu0 0.0
      %1431 = vmatpush1.msra.mxu0 0.0
      %1432 = vmatprep.subr.mxu0 0.0
      %1433 = vmatpush1.msra.mxu0 0.0
      %1434 = vmatprep.subr.mxu0 0.0
      %1435 = vmatpush1.msra.mxu0 0.0
      %1436 = vmatprep.subr.mxu0 0.0
      %1437 = vmatpush1.msra.mxu0 0.0
      %1438 = vmatprep.subr.mxu0 0.0
      %1439 = vmatpush1.msra.mxu0 0.0
      %1440 = vmatprep.subr.mxu0 0.0
      %1441 = vmatpush1.msra.mxu0 0.0
      %1442 = vmatprep.subr.mxu0 0.0
      %1443 = vmatpush1.msra.mxu0 0.0
      %1444 = vmatprep.subr.mxu0 0.0
      %1445 = vmatpush1.msra.mxu0 0.0
      %1446 = vmatprep.subr.mxu0 0.0
      %1447 = vmatpush1.msra.mxu0 0.0
      %1448 = vmatprep.subr.mxu0 0.0
      %1449 = vmatpush1.msra.mxu0 0.0
      %1450 = vmatprep.subr.mxu0 0.0
      %1451 = vmatpush1.msra.mxu0 0.0
      %1452 = vmatprep.subr.mxu0 0.0
      %1453 = vmatpush1.msra.mxu0 0.0
      %1454 = vmatprep.subr.mxu0 0.0
      %1455 = vmatpush1.msra.mxu0 0.0
      %1456 = vmatprep.subr.mxu0 0.0
      %1457 = vmatpush1.msra.mxu0 0.0
      %1458 = vmatprep.subr.mxu0 0.0
      %1459 = vmatpush1.msra.mxu0 0.0
      %1460 = vmatprep.subr.mxu0 0.0
      %1461 = vmatpush1.msra.mxu0 0.0
      %1462 = vmatprep.subr.mxu0 0.0
      %1463 = vmatpush1.msra.mxu0 0.0
      %1464 = vmatprep.subr.mxu0 0.0
      %1465 = vmatpush1.msra.mxu0 0.0
      %1466 = vmatprep.mubr.f32.mxu0 0.0
      %1467 = vmatmul.mubr.f32.gmra.mrb[0].mxu0 %v1394
      %v1468 = vpop.f32.mrb[0].mxu0
      %v1469 = vadd.f32 0.0, %v1468
      %v1470 = vpop.f32.mrb[0].mxu0
      %v1471 = vadd.f32 0.0, %v1470
      %1472 = vdwg.mxu0
      %1473 = vmatprep.subr.mxu0 0.0
      %1474 = vmatpush1.msra.mxu0 %v1400
      %1475 = vmatprep.subr.mxu0 0.0
      %1476 = vmatpush1.msra.mxu0 0.0
      %1477 = vmatprep.subr.mxu0 0.0
      %1478 = vmatpush1.msra.mxu0 0.0
      %1479 = vmatprep.subr.mxu0 0.0
      %1480 = vmatpush1.msra.mxu0 0.0
      %1481 = vmatprep.subr.mxu0 0.0
      %1482 = vmatpush1.msra.mxu0 0.0
      %1483 = vmatprep.subr.mxu0 0.0
      %1484 = vmatpush1.msra.mxu0 0.0
      %1485 = vmatprep.subr.mxu0 0.0
      %1486 = vmatpush1.msra.mxu0 0.0
      %1487 = vmatprep.subr.mxu0 0.0
      %1488 = vmatpush1.msra.mxu0 0.0
      %1489 = vmatprep.subr.mxu0 0.0
      %1490 = vmatpush1.msra.mxu0 0.0
      %1491 = vmatprep.subr.mxu0 0.0
      %1492 = vmatpush1.msra.mxu0 0.0
      %1493 = vmatprep.subr.mxu0 0.0
      %1494 = vmatpush1.msra.mxu0 0.0
      %1495 = vmatprep.subr.mxu0 0.0
      %1496 = vmatpush1.msra.mxu0 0.0
      %1497 = vmatprep.subr.mxu0 0.0
      %1498 = vmatpush1.msra.mxu0 0.0
      %1499 = vmatprep.subr.mxu0 0.0
      %1500 = vmatpush1.msra.mxu0 0.0
      %1501 = vmatprep.subr.mxu0 0.0
      %1502 = vmatpush1.msra.mxu0 0.0
      %1503 = vmatprep.subr.mxu0 0.0
      %1504 = vmatpush1.msra.mxu0 0.0
      %1505 = vmatprep.subr.mxu0 0.0
      %1506 = vmatpush1.msra.mxu0 0.0
      %1507 = vmatprep.subr.mxu0 0.0
      %1508 = vmatpush1.msra.mxu0 0.0
      %1509 = vmatprep.subr.mxu0 0.0
      %1510 = vmatpush1.msra.mxu0 0.0
      %1511 = vmatprep.subr.mxu0 0.0
      %1512 = vmatpush1.msra.mxu0 0.0
      %1513 = vmatprep.subr.mxu0 0.0
      %1514 = vmatpush1.msra.mxu0 0.0
      %1515 = vmatprep.subr.mxu0 0.0
      %1516 = vmatpush1.msra.mxu0 0.0
      %1517 = vmatprep.subr.mxu0 0.0
      %1518 = vmatpush1.msra.mxu0 0.0
      %1519 = vmatprep.subr.mxu0 0.0
      %1520 = vmatpush1.msra.mxu0 0.0
      %1521 = vmatprep.subr.mxu0 0.0
      %1522 = vmatpush1.msra.mxu0 0.0
      %1523 = vmatprep.subr.mxu0 0.0
      %1524 = vmatpush1.msra.mxu0 0.0
      %1525 = vmatprep.subr.mxu0 0.0
      %1526 = vmatpush1.msra.mxu0 0.0
      %1527 = vmatprep.subr.mxu0 0.0
      %1528 = vmatpush1.msra.mxu0 0.0
      %1529 = vmatprep.subr.mxu0 0.0
      %1530 = vmatpush1.msra.mxu0 0.0
      %1531 = vmatprep.subr.mxu0 0.0
      %1532 = vmatpush1.msra.mxu0 0.0
      %1533 = vmatprep.subr.mxu0 0.0
      %1534 = vmatpush1.msra.mxu0 0.0
      %1535 = vmatprep.subr.mxu0 0.0
      %1536 = vmatpush1.msra.mxu0 0.0
      %1537 = vmatprep.mubr.f32.mxu0 0.0
      %1538 = vmatmul.mubr.f32.gmra.mrb[0].mxu0 %v1394
      %v1539 = vpop.f32.mrb[0].mxu0
      %v1540 = vadd.f32 0.0, %v1539
      %v1541 = vpop.f32.mrb[0].mxu0
      %1542 = vdwg.mxu0
      %v1543 = vadd.f32 %v1308, %v1469
      %v1544 = vadd.f32 %v1310, %v1471
      %v1545 = vadd.f32 %v1379, %v1540
      %s1546 = scalar_lea.vmem %s7, 12
      %v1547 = vld [vmem:[%s1546] sm:$0xf]
      %1548 = vrot.lane.b32.xlu0 %v991, 110
      %v1549 = vpop.permute.xlu0 %1548
      %1550 = vrot.lane.b32.xlu0 %v993, 110
      %v1551 = vpop.permute.xlu0 %1550
      %1552 = vrot.lane.b32.xlu0 %v1062, 110
      %v1553 = vpop.permute.xlu0 %1552
      %vm1554 = vcmask 900096
      %v1555 = vsel %vm1554, %v1549, %v1551
      %v1556 = vsel %vm1554, %v1551, %v1553
      %v1558 = vsel %vm1080, %v1547, 0
      %v1560 = vsel %vm1084, %v1555, 0
      %v1562 = vsel %vm1084, %v1556, 0
      %v1564 = vsel %vm1084, %v1553, 0
      %1566 = vmatprep.subr.mxu0 %v1562
      %1567 = vmatpush1.msra.mxu0 %v1560
      %1568 = vmatprep.subr.mxu0 0.0
      %1569 = vmatpush1.msra.mxu0 0.0
      %1570 = vmatprep.subr.mxu0 0.0
      %1571 = vmatpush1.msra.mxu0 0.0
      %1572 = vmatprep.subr.mxu0 0.0
      %1573 = vmatpush1.msra.mxu0 0.0
      %1574 = vmatprep.subr.mxu0 0.0
      %1575 = vmatpush1.msra.mxu0 0.0
      %1576 = vmatprep.subr.mxu0 0.0
      %1577 = vmatpush1.msra.mxu0 0.0
      %1578 = vmatprep.subr.mxu0 0.0
      %1579 = vmatpush1.msra.mxu0 0.0
      %1580 = vmatprep.subr.mxu0 0.0
      %1581 = vmatpush1.msra.mxu0 0.0
      %1582 = vmatprep.subr.mxu0 0.0
      %1583 = vmatpush1.msra.mxu0 0.0
      %1584 = vmatprep.subr.mxu0 0.0
      %1585 = vmatpush1.msra.mxu0 0.0
      %1586 = vmatprep.subr.mxu0 0.0
      %1587 = vmatpush1.msra.mxu0 0.0
      %1588 = vmatprep.subr.mxu0 0.0
      %1589 = vmatpush1.msra.mxu0 0.0
      %1590 = vmatprep.subr.mxu0 0.0
      %1591 = vmatpush1.msra.mxu0 0.0
      %1592 = vmatprep.subr.mxu0 0.0
      %1593 = vmatpush1.msra.mxu0 0.0
      %1594 = vmatprep.subr.mxu0 0.0
      %1595 = vmatpush1.msra.mxu0 0.0
      %1596 = vmatprep.subr.mxu0 0.0
      %1597 = vmatpush1.msra.mxu0 0.0
      %1598 = vmatprep.subr.mxu0 0.0
      %1599 = vmatpush1.msra.mxu0 0.0
      %1600 = vmatprep.subr.mxu0 0.0
      %1601 = vmatpush1.msra.mxu0 0.0
      %1602 = vmatprep.subr.mxu0 0.0
      %1603 = vmatpush1.msra.mxu0 0.0
      %1604 = vmatprep.subr.mxu0 0.0
      %1605 = vmatpush1.msra.mxu0 0.0
      %1606 = vmatprep.subr.mxu0 0.0
      %1607 = vmatpush1.msra.mxu0 0.0
      %1608 = vmatprep.subr.mxu0 0.0
      %1609 = vmatpush1.msra.mxu0 0.0
      %1610 = vmatprep.subr.mxu0 0.0
      %1611 = vmatpush1.msra.mxu0 0.0
      %1612 = vmatprep.subr.mxu0 0.0
      %1613 = vmatpush1.msra.mxu0 0.0
      %1614 = vmatprep.subr.mxu0 0.0
      %1615 = vmatpush1.msra.mxu0 0.0
      %1616 = vmatprep.subr.mxu0 0.0
      %1617 = vmatpush1.msra.mxu0 0.0
      %1618 = vmatprep.subr.mxu0 0.0
      %1619 = vmatpush1.msra.mxu0 0.0
      %1620 = vmatprep.subr.mxu0 0.0
      %1621 = vmatpush1.msra.mxu0 0.0
      %1622 = vmatprep.subr.mxu0 0.0
      %1623 = vmatpush1.msra.mxu0 0.0
      %1624 = vmatprep.subr.mxu0 0.0
      %1625 = vmatpush1.msra.mxu0 0.0
      %1626 = vmatprep.subr.mxu0 0.0
      %1627 = vmatpush1.msra.mxu0 0.0
      %1628 = vmatprep.subr.mxu0 0.0
      %1629 = vmatpush1.msra.mxu0 0.0
      %1630 = vmatprep.mubr.f32.mxu0 0.0
      %1631 = vmatmul.mubr.f32.gmra.mrb[0].mxu0 %v1558
      %v1632 = vpop.f32.mrb[0].mxu0
      %v1633 = vadd.f32 0.0, %v1632
      %v1634 = vpop.f32.mrb[0].mxu0
      %v1635 = vadd.f32 0.0, %v1634
      %1636 = vdwg.mxu0
      %1637 = vmatprep.subr.mxu0 0.0
      %1638 = vmatpush1.msra.mxu0 %v1564
      %1639 = vmatprep.subr.mxu0 0.0
      %1640 = vmatpush1.msra.mxu0 0.0
      %1641 = vmatprep.subr.mxu0 0.0
      %1642 = vmatpush1.msra.mxu0 0.0
      %1643 = vmatprep.subr.mxu0 0.0
      %1644 = vmatpush1.msra.mxu0 0.0
      %1645 = vmatprep.subr.mxu0 0.0
      %1646 = vmatpush1.msra.mxu0 0.0
      %1647 = vmatprep.subr.mxu0 0.0
      %1648 = vmatpush1.msra.mxu0 0.0
      %1649 = vmatprep.subr.mxu0 0.0
      %1650 = vmatpush1.msra.mxu0 0.0
      %1651 = vmatprep.subr.mxu0 0.0
      %1652 = vmatpush1.msra.mxu0 0.0
      %1653 = vmatprep.subr.mxu0 0.0
      %1654 = vmatpush1.msra.mxu0 0.0
      %1655 = vmatprep.subr.mxu0 0.0
      %1656 = vmatpush1.msra.mxu0 0.0
      %1657 = vmatprep.subr.mxu0 0.0
      %1658 = vmatpush1.msra.mxu0 0.0
      %1659 = vmatprep.subr.mxu0 0.0
      %1660 = vmatpush1.msra.mxu0 0.0
      %1661 = vmatprep.subr.mxu0 0.0
      %1662 = vmatpush1.msra.mxu0 0.0
      %1663 = vmatprep.subr.mxu0 0.0
      %1664 = vmatpush1.msra.mxu0 0.0
      %1665 = vmatprep.subr.mxu0 0.0
      %1666 = vmatpush1.msra.mxu0 0.0
      %1667 = vmatprep.subr.mxu0 0.0
      %1668 = vmatpush1.msra.mxu0 0.0
      %1669 = vmatprep.subr.mxu0 0.0
      %1670 = vmatpush1.msra.mxu0 0.0
      %1671 = vmatprep.subr.mxu0 0.0
      %1672 = vmatpush1.msra.mxu0 0.0
      %1673 = vmatprep.subr.mxu0 0.0
      %1674 = vmatpush1.msra.mxu0 0.0
      %1675 = vmatprep.subr.mxu0 0.0
      %1676 = vmatpush1.msra.mxu0 0.0
      %1677 = vmatprep.subr.mxu0 0.0
      %1678 = vmatpush1.msra.mxu0 0.0
      %1679 = vmatprep.subr.mxu0 0.0
      %1680 = vmatpush1.msra.mxu0 0.0
      %1681 = vmatprep.subr.mxu0 0.0
      %1682 = vmatpush1.msra.mxu0 0.0
      %1683 = vmatprep.subr.mxu0 0.0
      %1684 = vmatpush1.msra.mxu0 0.0
      %1685 = vmatprep.subr.mxu0 0.0
      %1686 = vmatpush1.msra.mxu0 0.0
      %1687 = vmatprep.subr.mxu0 0.0
      %1688 = vmatpush1.msra.mxu0 0.0
      %1689 = vmatprep.subr.mxu0 0.0
      %1690 = vmatpush1.msra.mxu0 0.0
      %1691 = vmatprep.subr.mxu0 0.0
      %1692 = vmatpush1.msra.mxu0 0.0
      %1693 = vmatprep.subr.mxu0 0.0
      %1694 = vmatpush1.msra.mxu0 0.0
      %1695 = vmatprep.subr.mxu0 0.0
      %1696 = vmatpush1.msra.mxu0 0.0
      %1697 = vmatprep.subr.mxu0 0.0
      %1698 = vmatpush1.msra.mxu0 0.0
      %1699 = vmatprep.subr.mxu0 0.0
      %1700 = vmatpush1.msra.mxu0 0.0
      %1701 = vmatprep.mubr.f32.mxu0 0.0
      %1702 = vmatmul.mubr.f32.gmra.mrb[0].mxu0 %v1558
      %v1703 = vpop.f32.mrb[0].mxu0
      %v1704 = vadd.f32 0.0, %v1703
      %v1705 = vpop.f32.mrb[0].mxu0
      %1706 = vdwg.mxu0
      %v1707 = vadd.f32 %v1543, %v1633
      %v1708 = vadd.f32 %v1544, %v1635
      %v1709 = vadd.f32 %v1545, %v1704
      %s1710 = scalar_lea.vmem %s7, 16
      %v1711 = vld [vmem:[%s1710] sm:$0xf]
      %1712 = vrot.lane.b32.xlu0 %v991, 109
      %v1713 = vpop.permute.xlu0 %1712
      %1714 = vrot.lane.b32.xlu0 %v993, 109
      %v1715 = vpop.permute.xlu0 %1714
      %1716 = vrot.lane.b32.xlu0 %v1062, 109
      %v1717 = vpop.permute.xlu0 %1716
      %vm1718 = vcmask 891904
      %v1719 = vsel %vm1718, %v1713, %v1715
      %v1720 = vsel %vm1718, %v1715, %v1717
      %v1722 = vsel %vm1080, %v1711, 0
      %v1724 = vsel %vm1084, %v1719, 0
      %v1726 = vsel %vm1084, %v1720, 0
      %v1728 = vsel %vm1084, %v1717, 0
      %1730 = vmatprep.subr.mxu0 %v1726
      %1731 = vmatpush1.msra.mxu0 %v1724
      %1732 = vmatprep.subr.mxu0 0.0
      %1733 = vmatpush1.msra.mxu0 0.0
      %1734 = vmatprep.subr.mxu0 0.0
      %1735 = vmatpush1.msra.mxu0 0.0
      %1736 = vmatprep.subr.mxu0 0.0
      %1737 = vmatpush1.msra.mxu0 0.0
      %1738 = vmatprep.subr.mxu0 0.0
      %1739 = vmatpush1.msra.mxu0 0.0
      %1740 = vmatprep.subr.mxu0 0.0
      %1741 = vmatpush1.msra.mxu0 0.0
      %1742 = vmatprep.subr.mxu0 0.0
      %1743 = vmatpush1.msra.mxu0 0.0
      %1744 = vmatprep.subr.mxu0 0.0
      %1745 = vmatpush1.msra.mxu0 0.0
      %1746 = vmatprep.subr.mxu0 0.0
      %1747 = vmatpush1.msra.mxu0 0.0
      %1748 = vmatprep.subr.mxu0 0.0
      %1749 = vmatpush1.msra.mxu0 0.0
      %1750 = vmatprep.subr.mxu0 0.0
      %1751 = vmatpush1.msra.mxu0 0.0
      %1752 = vmatprep.subr.mxu0 0.0
      %1753 = vmatpush1.msra.mxu0 0.0
      %1754 = vmatprep.subr.mxu0 0.0
      %1755 = vmatpush1.msra.mxu0 0.0
      %1756 = vmatprep.subr.mxu0 0.0
      %1757 = vmatpush1.msra.mxu0 0.0
      %1758 = vmatprep.subr.mxu0 0.0
      %1759 = vmatpush1.msra.mxu0 0.0
      %1760 = vmatprep.subr.mxu0 0.0
      %1761 = vmatpush1.msra.mxu0 0.0
      %1762 = vmatprep.subr.mxu0 0.0
      %1763 = vmatpush1.msra.mxu0 0.0
      %1764 = vmatprep.subr.mxu0 0.0
      %1765 = vmatpush1.msra.mxu0 0.0
      %1766 = vmatprep.subr.mxu0 0.0
      %1767 = vmatpush1.msra.mxu0 0.0
      %1768 = vmatprep.subr.mxu0 0.0
      %1769 = vmatpush1.msra.mxu0 0.0
      %1770 = vmatprep.subr.mxu0 0.0
      %1771 = vmatpush1.msra.mxu0 0.0
      %1772 = vmatprep.subr.mxu0 0.0
      %1773 = vmatpush1.msra.mxu0 0.0
      %1774 = vmatprep.subr.mxu0 0.0
      %1775 = vmatpush1.msra.mxu0 0.0
      %1776 = vmatprep.subr.mxu0 0.0
      %1777 = vmatpush1.msra.mxu0 0.0
      %1778 = vmatprep.subr.mxu0 0.0
      %1779 = vmatpush1.msra.mxu0 0.0
      %1780 = vmatprep.subr.mxu0 0.0
      %1781 = vmatpush1.msra.mxu0 0.0
      %1782 = vmatprep.subr.mxu0 0.0
      %1783 = vmatpush1.msra.mxu0 0.0
      %1784 = vmatprep.subr.mxu0 0.0
      %1785 = vmatpush1.msra.mxu0 0.0
      %1786 = vmatprep.subr.mxu0 0.0
      %1787 = vmatpush1.msra.mxu0 0.0
      %1788 = vmatprep.subr.mxu0 0.0
      %1789 = vmatpush1.msra.mxu0 0.0
      %1790 = vmatprep.subr.mxu0 0.0
      %1791 = vmatpush1.msra.mxu0 0.0
      %1792 = vmatprep.subr.mxu0 0.0
      %1793 = vmatpush1.msra.mxu0 0.0
      %1794 = vmatprep.mubr.f32.mxu0 0.0
      %1795 = vmatmul.mubr.f32.gmra.mrb[0].mxu0 %v1722
      %v1796 = vpop.f32.mrb[0].mxu0
      %v1797 = vadd.f32 0.0, %v1796
      %v1798 = vpop.f32.mrb[0].mxu0
      %v1799 = vadd.f32 0.0, %v1798
      %1800 = vdwg.mxu0
      %1801 = vmatprep.subr.mxu0 0.0
      %1802 = vmatpush1.msra.mxu0 %v1728
      %1803 = vmatprep.subr.mxu0 0.0
      %1804 = vmatpush1.msra.mxu0 0.0
      %1805 = vmatprep.subr.mxu0 0.0
      %1806 = vmatpush1.msra.mxu0 0.0
      %1807 = vmatprep.subr.mxu0 0.0
      %1808 = vmatpush1.msra.mxu0 0.0
      %1809 = vmatprep.subr.mxu0 0.0
      %1810 = vmatpush1.msra.mxu0 0.0
      %1811 = vmatprep.subr.mxu0 0.0
      %1812 = vmatpush1.msra.mxu0 0.0
      %1813 = vmatprep.subr.mxu0 0.0
      %1814 = vmatpush1.msra.mxu0 0.0
      %1815 = vmatprep.subr.mxu0 0.0
      %1816 = vmatpush1.msra.mxu0 0.0
      %1817 = vmatprep.subr.mxu0 0.0
      %1818 = vmatpush1.msra.mxu0 0.0
      %1819 = vmatprep.subr.mxu0 0.0
      %1820 = vmatpush1.msra.mxu0 0.0
      %1821 = vmatprep.subr.mxu0 0.0
      %1822 = vmatpush1.msra.mxu0 0.0
      %1823 = vmatprep.subr.mxu0 0.0
      %1824 = vmatpush1.msra.mxu0 0.0
      %1825 = vmatprep.subr.mxu0 0.0
      %1826 = vmatpush1.msra.mxu0 0.0
      %1827 = vmatprep.subr.mxu0 0.0
      %1828 = vmatpush1.msra.mxu0 0.0
      %1829 = vmatprep.subr.mxu0 0.0
      %1830 = vmatpush1.msra.mxu0 0.0
      %1831 = vmatprep.subr.mxu0 0.0
      %1832 = vmatpush1.msra.mxu0 0.0
      %1833 = vmatprep.subr.mxu0 0.0
      %1834 = vmatpush1.msra.mxu0 0.0
      %1835 = vmatprep.subr.mxu0 0.0
      %1836 = vmatpush1.msra.mxu0 0.0
      %1837 = vmatprep.subr.mxu0 0.0
      %1838 = vmatpush1.msra.mxu0 0.0
      %1839 = vmatprep.subr.mxu0 0.0
      %1840 = vmatpush1.msra.mxu0 0.0
      %1841 = vmatprep.subr.mxu0 0.0
      %1842 = vmatpush1.msra.mxu0 0.0
      %1843 = vmatprep.subr.mxu0 0.0
      %1844 = vmatpush1.msra.mxu0 0.0
      %1845 = vmatprep.subr.mxu0 0.0
      %1846 = vmatpush1.msra.mxu0 0.0
      %1847 = vmatprep.subr.mxu0 0.0
      %1848 = vmatpush1.msra.mxu0 0.0
      %1849 = vmatprep.subr.mxu0 0.0
      %1850 = vmatpush1.msra.mxu0 0.0
      %1851 = vmatprep.subr.mxu0 0.0
      %1852 = vmatpush1.msra.mxu0 0.0
      %1853 = vmatprep.subr.mxu0 0.0
      %1854 = vmatpush1.msra.mxu0 0.0
      %1855 = vmatprep.subr.mxu0 0.0
      %1856 = vmatpush1.msra.mxu0 0.0
      %1857 = vmatprep.subr.mxu0 0.0
      %1858 = vmatpush1.msra.mxu0 0.0
      %1859 = vmatprep.subr.mxu0 0.0
      %1860 = vmatpush1.msra.mxu0 0.0
      %1861 = vmatprep.subr.mxu0 0.0
      %1862 = vmatpush1.msra.mxu0 0.0
      %1863 = vmatprep.subr.mxu0 0.0
      %1864 = vmatpush1.msra.mxu0 0.0
      %1865 = vmatprep.mubr.f32.mxu0 0.0
      %1866 = vmatmul.mubr.f32.gmra.mrb[0].mxu0 %v1722
      %v1867 = vpop.f32.mrb[0].mxu0
      %v1868 = vadd.f32 0.0, %v1867
      %v1869 = vpop.f32.mrb[0].mxu0
      %1870 = vdwg.mxu0
      %v1871 = vadd.f32 %v1707, %v1797
      %v1872 = vadd.f32 %v1708, %v1799
      %v1873 = vadd.f32 %v1709, %v1868
      %s1874 = scalar_lea.vmem %s7, 20
      %v1875 = vld [vmem:[%s1874] sm:$0xf]
      %1876 = vrot.lane.b32.xlu0 %v991, 108
      %v1877 = vpop.permute.xlu0 %1876
      %1878 = vrot.lane.b32.xlu0 %v993, 108
      %v1879 = vpop.permute.xlu0 %1878
      %1880 = vrot.lane.b32.xlu0 %v1062, 108
      %v1881 = vpop.permute.xlu0 %1880
      %vm1882 = vcmask 883712
      %v1883 = vsel %vm1882, %v1877, %v1879
      %v1884 = vsel %vm1882, %v1879, %v1881
      %v1886 = vsel %vm1080, %v1875, 0
      %v1888 = vsel %vm1084, %v1883, 0
      %v1890 = vsel %vm1084, %v1884, 0
      %v1892 = vsel %vm1084, %v1881, 0
      %1894 = vmatprep.subr.mxu0 %v1890
      %1895 = vmatpush1.msra.mxu0 %v1888
      %1896 = vmatprep.subr.mxu0 0.0
      %1897 = vmatpush1.msra.mxu0 0.0
      %1898 = vmatprep.subr.mxu0 0.0
      %1899 = vmatpush1.msra.mxu0 0.0
      %1900 = vmatprep.subr.mxu0 0.0
      %1901 = vmatpush1.msra.mxu0 0.0
      %1902 = vmatprep.subr.mxu0 0.0
      %1903 = vmatpush1.msra.mxu0 0.0
      %1904 = vmatprep.subr.mxu0 0.0
      %1905 = vmatpush1.msra.mxu0 0.0
      %1906 = vmatprep.subr.mxu0 0.0
      %1907 = vmatpush1.msra.mxu0 0.0
      %1908 = vmatprep.subr.mxu0 0.0
      %1909 = vmatpush1.msra.mxu0 0.0
      %1910 = vmatprep.subr.mxu0 0.0
      %1911 = vmatpush1.msra.mxu0 0.0
      %1912 = vmatprep.subr.mxu0 0.0
      %1913 = vmatpush1.msra.mxu0 0.0
      %1914 = vmatprep.subr.mxu0 0.0
      %1915 = vmatpush1.msra.mxu0 0.0
      %1916 = vmatprep.subr.mxu0 0.0
      %1917 = vmatpush1.msra.mxu0 0.0
      %1918 = vmatprep.subr.mxu0 0.0
      %1919 = vmatpush1.msra.mxu0 0.0
      %1920 = vmatprep.subr.mxu0 0.0
      %1921 = vmatpush1.msra.mxu0 0.0
      %1922 = vmatprep.subr.mxu0 0.0
      %1923 = vmatpush1.msra.mxu0 0.0
      %1924 = vmatprep.subr.mxu0 0.0
      %1925 = vmatpush1.msra.mxu0 0.0
      %1926 = vmatprep.subr.mxu0 0.0
      %1927 = vmatpush1.msra.mxu0 0.0
      %1928 = vmatprep.subr.mxu0 0.0
      %1929 = vmatpush1.msra.mxu0 0.0
      %1930 = vmatprep.subr.mxu0 0.0
      %1931 = vmatpush1.msra.mxu0 0.0
      %1932 = vmatprep.subr.mxu0 0.0
      %1933 = vmatpush1.msra.mxu0 0.0
      %1934 = vmatprep.subr.mxu0 0.0
      %1935 = vmatpush1.msra.mxu0 0.0
      %1936 = vmatprep.subr.mxu0 0.0
      %1937 = vmatpush1.msra.mxu0 0.0
      %1938 = vmatprep.subr.mxu0 0.0
      %1939 = vmatpush1.msra.mxu0 0.0
      %1940 = vmatprep.subr.mxu0 0.0
      %1941 = vmatpush1.msra.mxu0 0.0
      %1942 = vmatprep.subr.mxu0 0.0
      %1943 = vmatpush1.msra.mxu0 0.0
      %1944 = vmatprep.subr.mxu0 0.0
      %1945 = vmatpush1.msra.mxu0 0.0
      %1946 = vmatprep.subr.mxu0 0.0
      %1947 = vmatpush1.msra.mxu0 0.0
      %1948 = vmatprep.subr.mxu0 0.0
      %1949 = vmatpush1.msra.mxu0 0.0
      %1950 = vmatprep.subr.mxu0 0.0
      %1951 = vmatpush1.msra.mxu0 0.0
      %1952 = vmatprep.subr.mxu0 0.0
      %1953 = vmatpush1.msra.mxu0 0.0
      %1954 = vmatprep.subr.mxu0 0.0
      %1955 = vmatpush1.msra.mxu0 0.0
      %1956 = vmatprep.subr.mxu0 0.0
      %1957 = vmatpush1.msra.mxu0 0.0
      %1958 = vmatprep.mubr.f32.mxu0 0.0
      %1959 = vmatmul.mubr.f32.gmra.mrb[0].mxu0 %v1886
      %v1960 = vpop.f32.mrb[0].mxu0
      %v1961 = vadd.f32 0.0, %v1960
      %v1962 = vpop.f32.mrb[0].mxu0
      %v1963 = vadd.f32 0.0, %v1962
      %1964 = vdwg.mxu0
      %1965 = vmatprep.subr.mxu0 0.0
      %1966 = vmatpush1.msra.mxu0 %v1892
      %1967 = vmatprep.subr.mxu0 0.0
      %1968 = vmatpush1.msra.mxu0 0.0
      %1969 = vmatprep.subr.mxu0 0.0
      %1970 = vmatpush1.msra.mxu0 0.0
      %1971 = vmatprep.subr.mxu0 0.0
      %1972 = vmatpush1.msra.mxu0 0.0
      %1973 = vmatprep.subr.mxu0 0.0
      %1974 = vmatpush1.msra.mxu0 0.0
      %1975 = vmatprep.subr.mxu0 0.0
      %1976 = vmatpush1.msra.mxu0 0.0
      %1977 = vmatprep.subr.mxu0 0.0
      %1978 = vmatpush1.msra.mxu0 0.0
      %1979 = vmatprep.subr.mxu0 0.0
      %1980 = vmatpush1.msra.mxu0 0.0
      %1981 = vmatprep.subr.mxu0 0.0
      %1982 = vmatpush1.msra.mxu0 0.0
      %1983 = vmatprep.subr.mxu0 0.0
      %1984 = vmatpush1.msra.mxu0 0.0
      %1985 = vmatprep.subr.mxu0 0.0
      %1986 = vmatpush1.msra.mxu0 0.0
      %1987 = vmatprep.subr.mxu0 0.0
      %1988 = vmatpush1.msra.mxu0 0.0
      %1989 = vmatprep.subr.mxu0 0.0
      %1990 = vmatpush1.msra.mxu0 0.0
      %1991 = vmatprep.subr.mxu0 0.0
      %1992 = vmatpush1.msra.mxu0 0.0
      %1993 = vmatprep.subr.mxu0 0.0
      %1994 = vmatpush1.msra.mxu0 0.0
      %1995 = vmatprep.subr.mxu0 0.0
      %1996 = vmatpush1.msra.mxu0 0.0
      %1997 = vmatprep.subr.mxu0 0.0
      %1998 = vmatpush1.msra.mxu0 0.0
      %1999 = vmatprep.subr.mxu0 0.0
      %2000 = vmatpush1.msra.mxu0 0.0
      %2001 = vmatprep.subr.mxu0 0.0
      %2002 = vmatpush1.msra.mxu0 0.0
      %2003 = vmatprep.subr.mxu0 0.0
      %2004 = vmatpush1.msra.mxu0 0.0
      %2005 = vmatprep.subr.mxu0 0.0
      %2006 = vmatpush1.msra.mxu0 0.0
      %2007 = vmatprep.subr.mxu0 0.0
      %2008 = vmatpush1.msra.mxu0 0.0
      %2009 = vmatprep.subr.mxu0 0.0
      %2010 = vmatpush1.msra.mxu0 0.0
      %2011 = vmatprep.subr.mxu0 0.0
      %2012 = vmatpush1.msra.mxu0 0.0
      %2013 = vmatprep.subr.mxu0 0.0
      %2014 = vmatpush1.msra.mxu0 0.0
      %2015 = vmatprep.subr.mxu0 0.0
      %2016 = vmatpush1.msra.mxu0 0.0
      %2017 = vmatprep.subr.mxu0 0.0
      %2018 = vmatpush1.msra.mxu0 0.0
      %2019 = vmatprep.subr.mxu0 0.0
      %2020 = vmatpush1.msra.mxu0 0.0
      %2021 = vmatprep.subr.mxu0 0.0
      %2022 = vmatpush1.msra.mxu0 0.0
      %2023 = vmatprep.subr.mxu0 0.0
      %2024 = vmatpush1.msra.mxu0 0.0
      %2025 = vmatprep.subr.mxu0 0.0
      %2026 = vmatpush1.msra.mxu0 0.0
      %2027 = vmatprep.subr.mxu0 0.0
      %2028 = vmatpush1.msra.mxu0 0.0
      %2029 = vmatprep.mubr.f32.mxu0 0.0
      %2030 = vmatmul.mubr.f32.gmra.mrb[0].mxu0 %v1886
      %v2031 = vpop.f32.mrb[0].mxu0
      %v2032 = vadd.f32 0.0, %v2031
      %v2033 = vpop.f32.mrb[0].mxu0
      %2034 = vdwg.mxu0
      %v2035 = vadd.f32 %v1871, %v1961
      %v2036 = vadd.f32 %v1872, %v1963
      %v2037 = vadd.f32 %v1873, %v2032
      %s2038 = scalar_lea.vmem %s7, 24
      %v2039 = vld [vmem:[%s2038] sm:$0xf]
      %2040 = vrot.lane.b32.xlu0 %v991, 92
      %v2041 = vpop.permute.xlu0 %2040
      %2042 = vrot.lane.b32.xlu0 %v993, 92
      %v2043 = vpop.permute.xlu0 %2042
      %2044 = vrot.lane.b32.xlu0 %v1062, 92
      %v2045 = vpop.permute.xlu0 %2044
      %vm2046 = vcmask 752640
      %v2047 = vsel %vm2046, %v2041, %v2043
      %v2048 = vsel %vm2046, %v2043, %v2045
      %v2050 = vsel %vm1080, %v2039, 0
      %v2052 = vsel %vm1084, %v2047, 0
      %v2054 = vsel %vm1084, %v2048, 0
      %v2056 = vsel %vm1084, %v2045, 0
      %2058 = vmatprep.subr.mxu0 %v2054
      %2059 = vmatpush1.msra.mxu0 %v2052
      %2060 = vmatprep.subr.mxu0 0.0
      %2061 = vmatpush1.msra.mxu0 0.0
      %2062 = vmatprep.subr.mxu0 0.0
      %2063 = vmatpush1.msra.mxu0 0.0
      %2064 = vmatprep.subr.mxu0 0.0
      %2065 = vmatpush1.msra.mxu0 0.0
      %2066 = vmatprep.subr.mxu0 0.0
      %2067 = vmatpush1.msra.mxu0 0.0
      %2068 = vmatprep.subr.mxu0 0.0
      %2069 = vmatpush1.msra.mxu0 0.0
      %2070 = vmatprep.subr.mxu0 0.0
      %2071 = vmatpush1.msra.mxu0 0.0
      %2072 = vmatprep.subr.mxu0 0.0
      %2073 = vmatpush1.msra.mxu0 0.0
      %2074 = vmatprep.subr.mxu0 0.0
      %2075 = vmatpush1.msra.mxu0 0.0
      %2076 = vmatprep.subr.mxu0 0.0
      %2077 = vmatpush1.msra.mxu0 0.0
      %2078 = vmatprep.subr.mxu0 0.0
      %2079 = vmatpush1.msra.mxu0 0.0
      %2080 = vmatprep.subr.mxu0 0.0
      %2081 = vmatpush1.msra.mxu0 0.0
      %2082 = vmatprep.subr.mxu0 0.0
      %2083 = vmatpush1.msra.mxu0 0.0
      %2084 = vmatprep.subr.mxu0 0.0
      %2085 = vmatpush1.msra.mxu0 0.0
      %2086 = vmatprep.subr.mxu0 0.0
      %2087 = vmatpush1.msra.mxu0 0.0
      %2088 = vmatprep.subr.mxu0 0.0
      %2089 = vmatpush1.msra.mxu0 0.0
      %2090 = vmatprep.subr.mxu0 0.0
      %2091 = vmatpush1.msra.mxu0 0.0
      %2092 = vmatprep.subr.mxu0 0.0
      %2093 = vmatpush1.msra.mxu0 0.0
      %2094 = vmatprep.subr.mxu0 0.0
      %2095 = vmatpush1.msra.mxu0 0.0
      %2096 = vmatprep.subr.mxu0 0.0
      %2097 = vmatpush1.msra.mxu0 0.0
      %2098 = vmatprep.subr.mxu0 0.0
      %2099 = vmatpush1.msra.mxu0 0.0
      %2100 = vmatprep.subr.mxu0 0.0
      %2101 = vmatpush1.msra.mxu0 0.0
      %2102 = vmatprep.subr.mxu0 0.0
      %2103 = vmatpush1.msra.mxu0 0.0
      %2104 = vmatprep.subr.mxu0 0.0
      %2105 = vmatpush1.msra.mxu0 0.0
      %2106 = vmatprep.subr.mxu0 0.0
      %2107 = vmatpush1.msra.mxu0 0.0
      %2108 = vmatprep.subr.mxu0 0.0
      %2109 = vmatpush1.msra.mxu0 0.0
      %2110 = vmatprep.subr.mxu0 0.0
      %2111 = vmatpush1.msra.mxu0 0.0
      %2112 = vmatprep.subr.mxu0 0.0
      %2113 = vmatpush1.msra.mxu0 0.0
      %2114 = vmatprep.subr.mxu0 0.0
      %2115 = vmatpush1.msra.mxu0 0.0
      %2116 = vmatprep.subr.mxu0 0.0
      %2117 = vmatpush1.msra.mxu0 0.0
      %2118 = vmatprep.subr.mxu0 0.0
      %2119 = vmatpush1.msra.mxu0 0.0
      %2120 = vmatprep.subr.mxu0 0.0
      %2121 = vmatpush1.msra.mxu0 0.0
      %2122 = vmatprep.mubr.f32.mxu0 0.0
      %2123 = vmatmul.mubr.f32.gmra.mrb[0].mxu0 %v2050
      %v2124 = vpop.f32.mrb[0].mxu0
      %v2125 = vadd.f32 0.0, %v2124
      %v2126 = vpop.f32.mrb[0].mxu0
      %v2127 = vadd.f32 0.0, %v2126
      %2128 = vdwg.mxu0
      %2129 = vmatprep.subr.mxu0 0.0
      %2130 = vmatpush1.msra.mxu0 %v2056
      %2131 = vmatprep.subr.mxu0 0.0
      %2132 = vmatpush1.msra.mxu0 0.0
      %2133 = vmatprep.subr.mxu0 0.0
      %2134 = vmatpush1.msra.mxu0 0.0
      %2135 = vmatprep.subr.mxu0 0.0
      %2136 = vmatpush1.msra.mxu0 0.0
      %2137 = vmatprep.subr.mxu0 0.0
      %2138 = vmatpush1.msra.mxu0 0.0
      %2139 = vmatprep.subr.mxu0 0.0
      %2140 = vmatpush1.msra.mxu0 0.0
      %2141 = vmatprep.subr.mxu0 0.0
      %2142 = vmatpush1.msra.mxu0 0.0
      %2143 = vmatprep.subr.mxu0 0.0
      %2144 = vmatpush1.msra.mxu0 0.0
      %2145 = vmatprep.subr.mxu0 0.0
      %2146 = vmatpush1.msra.mxu0 0.0
      %2147 = vmatprep.subr.mxu0 0.0
      %2148 = vmatpush1.msra.mxu0 0.0
      %2149 = vmatprep.subr.mxu0 0.0
      %2150 = vmatpush1.msra.mxu0 0.0
      %2151 = vmatprep.subr.mxu0 0.0
      %2152 = vmatpush1.msra.mxu0 0.0
      %2153 = vmatprep.subr.mxu0 0.0
      %2154 = vmatpush1.msra.mxu0 0.0
      %2155 = vmatprep.subr.mxu0 0.0
      %2156 = vmatpush1.msra.mxu0 0.0
      %2157 = vmatprep.subr.mxu0 0.0
      %2158 = vmatpush1.msra.mxu0 0.0
      %2159 = vmatprep.subr.mxu0 0.0
      %2160 = vmatpush1.msra.mxu0 0.0
      %2161 = vmatprep.subr.mxu0 0.0
      %2162 = vmatpush1.msra.mxu0 0.0
      %2163 = vmatprep.subr.mxu0 0.0
      %2164 = vmatpush1.msra.mxu0 0.0
      %2165 = vmatprep.subr.mxu0 0.0
      %2166 = vmatpush1.msra.mxu0 0.0
      %2167 = vmatprep.subr.mxu0 0.0
      %2168 = vmatpush1.msra.mxu0 0.0
      %2169 = vmatprep.subr.mxu0 0.0
      %2170 = vmatpush1.msra.mxu0 0.0
      %2171 = vmatprep.subr.mxu0 0.0
      %2172 = vmatpush1.msra.mxu0 0.0
      %2173 = vmatprep.subr.mxu0 0.0
      %2174 = vmatpush1.msra.mxu0 0.0
      %2175 = vmatprep.subr.mxu0 0.0
      %2176 = vmatpush1.msra.mxu0 0.0
      %2177 = vmatprep.subr.mxu0 0.0
      %2178 = vmatpush1.msra.mxu0 0.0
      %2179 = vmatprep.subr.mxu0 0.0
      %2180 = vmatpush1.msra.mxu0 0.0
      %2181 = vmatprep.subr.mxu0 0.0
      %2182 = vmatpush1.msra.mxu0 0.0
      %2183 = vmatprep.subr.mxu0 0.0
      %2184 = vmatpush1.msra.mxu0 0.0
      %2185 = vmatprep.subr.mxu0 0.0
      %2186 = vmatpush1.msra.mxu0 0.0
      %2187 = vmatprep.subr.mxu0 0.0
      %2188 = vmatpush1.msra.mxu0 0.0
      %2189 = vmatprep.subr.mxu0 0.0
      %2190 = vmatpush1.msra.mxu0 0.0
      %2191 = vmatprep.subr.mxu0 0.0
      %2192 = vmatpush1.msra.mxu0 0.0
      %2193 = vmatprep.mubr.f32.mxu0 0.0
      %2194 = vmatmul.mubr.f32.gmra.mrb[0].mxu0 %v2050
      %v2195 = vpop.f32.mrb[0].mxu0
      %v2196 = vadd.f32 0.0, %v2195
      %v2197 = vpop.f32.mrb[0].mxu0
      %2198 = vdwg.mxu0
      %v2199 = vadd.f32 %v2035, %v2125
      %v2200 = vadd.f32 %v2036, %v2127
      %v2201 = vadd.f32 %v2037, %v2196
      %s2202 = scalar_lea.vmem %s7, 28
      %v2203 = vld [vmem:[%s2202] sm:$0xf]
      %2204 = vrot.lane.b32.xlu0 %v991, 91
      %v2205 = vpop.permute.xlu0 %2204
      %2206 = vrot.lane.b32.xlu0 %v993, 91
      %v2207 = vpop.permute.xlu0 %2206
      %2208 = vrot.lane.b32.xlu0 %v1062, 91
      %v2209 = vpop.permute.xlu0 %2208
      %vm2210 = vcmask 744448
      %v2211 = vsel %vm2210, %v2205, %v2207
      %v2212 = vsel %vm2210, %v2207, %v2209
      %v2214 = vsel %vm1080, %v2203, 0
      %v2216 = vsel %vm1084, %v2211, 0
      %v2218 = vsel %vm1084, %v2212, 0
      %v2220 = vsel %vm1084, %v2209, 0
      %2222 = vmatprep.subr.mxu0 %v2218
      %2223 = vmatpush1.msra.mxu0 %v2216
      %2224 = vmatprep.subr.mxu0 0.0
      %2225 = vmatpush1.msra.mxu0 0.0
      %2226 = vmatprep.subr.mxu0 0.0
      %2227 = vmatpush1.msra.mxu0 0.0
      %2228 = vmatprep.subr.mxu0 0.0
      %2229 = vmatpush1.msra.mxu0 0.0
      %2230 = vmatprep.subr.mxu0 0.0
      %2231 = vmatpush1.msra.mxu0 0.0
      %2232 = vmatprep.subr.mxu0 0.0
      %2233 = vmatpush1.msra.mxu0 0.0
      %2234 = vmatprep.subr.mxu0 0.0
      %2235 = vmatpush1.msra.mxu0 0.0
      %2236 = vmatprep.subr.mxu0 0.0
      %2237 = vmatpush1.msra.mxu0 0.0
      %2238 = vmatprep.subr.mxu0 0.0
      %2239 = vmatpush1.msra.mxu0 0.0
      %2240 = vmatprep.subr.mxu0 0.0
      %2241 = vmatpush1.msra.mxu0 0.0
      %2242 = vmatprep.subr.mxu0 0.0
      %2243 = vmatpush1.msra.mxu0 0.0
      %2244 = vmatprep.subr.mxu0 0.0
      %2245 = vmatpush1.msra.mxu0 0.0
      %2246 = vmatprep.subr.mxu0 0.0
      %2247 = vmatpush1.msra.mxu0 0.0
      %2248 = vmatprep.subr.mxu0 0.0
      %2249 = vmatpush1.msra.mxu0 0.0
      %2250 = vmatprep.subr.mxu0 0.0
      %2251 = vmatpush1.msra.mxu0 0.0
      %2252 = vmatprep.subr.mxu0 0.0
      %2253 = vmatpush1.msra.mxu0 0.0
      %2254 = vmatprep.subr.mxu0 0.0
      %2255 = vmatpush1.msra.mxu0 0.0
      %2256 = vmatprep.subr.mxu0 0.0
      %2257 = vmatpush1.msra.mxu0 0.0
      %2258 = vmatprep.subr.mxu0 0.0
      %2259 = vmatpush1.msra.mxu0 0.0
      %2260 = vmatprep.subr.mxu0 0.0
      %2261 = vmatpush1.msra.mxu0 0.0
      %2262 = vmatprep.subr.mxu0 0.0
      %2263 = vmatpush1.msra.mxu0 0.0
      %2264 = vmatprep.subr.mxu0 0.0
      %2265 = vmatpush1.msra.mxu0 0.0
      %2266 = vmatprep.subr.mxu0 0.0
      %2267 = vmatpush1.msra.mxu0 0.0
      %2268 = vmatprep.subr.mxu0 0.0
      %2269 = vmatpush1.msra.mxu0 0.0
      %2270 = vmatprep.subr.mxu0 0.0
      %2271 = vmatpush1.msra.mxu0 0.0
      %2272 = vmatprep.subr.mxu0 0.0
      %2273 = vmatpush1.msra.mxu0 0.0
      %2274 = vmatprep.subr.mxu0 0.0
      %2275 = vmatpush1.msra.mxu0 0.0
      %2276 = vmatprep.subr.mxu0 0.0
      %2277 = vmatpush1.msra.mxu0 0.0
      %2278 = vmatprep.subr.mxu0 0.0
      %2279 = vmatpush1.msra.mxu0 0.0
      %2280 = vmatprep.subr.mxu0 0.0
      %2281 = vmatpush1.msra.mxu0 0.0
      %2282 = vmatprep.subr.mxu0 0.0
      %2283 = vmatpush1.msra.mxu0 0.0
      %2284 = vmatprep.subr.mxu0 0.0
      %2285 = vmatpush1.msra.mxu0 0.0
      %2286 = vmatprep.mubr.f32.mxu0 0.0
      %2287 = vmatmul.mubr.f32.gmra.mrb[0].mxu0 %v2214
      %v2288 = vpop.f32.mrb[0].mxu0
      %v2289 = vadd.f32 0.0, %v2288
      %v2290 = vpop.f32.mrb[0].mxu0
      %v2291 = vadd.f32 0.0, %v2290
      %2292 = vdwg.mxu0
      %2293 = vmatprep.subr.mxu0 0.0
      %2294 = vmatpush1.msra.mxu0 %v2220
      %2295 = vmatprep.subr.mxu0 0.0
      %2296 = vmatpush1.msra.mxu0 0.0
      %2297 = vmatprep.subr.mxu0 0.0
      %2298 = vmatpush1.msra.mxu0 0.0
      %2299 = vmatprep.subr.mxu0 0.0
      %2300 = vmatpush1.msra.mxu0 0.0
      %2301 = vmatprep.subr.mxu0 0.0
      %2302 = vmatpush1.msra.mxu0 0.0
      %2303 = vmatprep.subr.mxu0 0.0
      %2304 = vmatpush1.msra.mxu0 0.0
      %2305 = vmatprep.subr.mxu0 0.0
      %2306 = vmatpush1.msra.mxu0 0.0
      %2307 = vmatprep.subr.mxu0 0.0
      %2308 = vmatpush1.msra.mxu0 0.0
      %2309 = vmatprep.subr.mxu0 0.0
      %2310 = vmatpush1.msra.mxu0 0.0
      %2311 = vmatprep.subr.mxu0 0.0
      %2312 = vmatpush1.msra.mxu0 0.0
      %2313 = vmatprep.subr.mxu0 0.0
      %2314 = vmatpush1.msra.mxu0 0.0
      %2315 = vmatprep.subr.mxu0 0.0
      %2316 = vmatpush1.msra.mxu0 0.0
      %2317 = vmatprep.subr.mxu0 0.0
      %2318 = vmatpush1.msra.mxu0 0.0
      %2319 = vmatprep.subr.mxu0 0.0
      %2320 = vmatpush1.msra.mxu0 0.0
      %2321 = vmatprep.subr.mxu0 0.0
      %2322 = vmatpush1.msra.mxu0 0.0
      %2323 = vmatprep.subr.mxu0 0.0
      %2324 = vmatpush1.msra.mxu0 0.0
      %2325 = vmatprep.subr.mxu0 0.0
      %2326 = vmatpush1.msra.mxu0 0.0
      %2327 = vmatprep.subr.mxu0 0.0
      %2328 = vmatpush1.msra.mxu0 0.0
      %2329 = vmatprep.subr.mxu0 0.0
      %2330 = vmatpush1.msra.mxu0 0.0
      %2331 = vmatprep.subr.mxu0 0.0
      %2332 = vmatpush1.msra.mxu0 0.0
      %2333 = vmatprep.subr.mxu0 0.0
      %2334 = vmatpush1.msra.mxu0 0.0
      %2335 = vmatprep.subr.mxu0 0.0
      %2336 = vmatpush1.msra.mxu0 0.0
      %2337 = vmatprep.subr.mxu0 0.0
      %2338 = vmatpush1.msra.mxu0 0.0
      %2339 = vmatprep.subr.mxu0 0.0
      %2340 = vmatpush1.msra.mxu0 0.0
      %2341 = vmatprep.subr.mxu0 0.0
      %2342 = vmatpush1.msra.mxu0 0.0
      %2343 = vmatprep.subr.mxu0 0.0
      %2344 = vmatpush1.msra.mxu0 0.0
      %2345 = vmatprep.subr.mxu0 0.0
      %2346 = vmatpush1.msra.mxu0 0.0
      %2347 = vmatprep.subr.mxu0 0.0
      %2348 = vmatpush1.msra.mxu0 0.0
      %2349 = vmatprep.subr.mxu0 0.0
      %2350 = vmatpush1.msra.mxu0 0.0
      %2351 = vmatprep.subr.mxu0 0.0
      %2352 = vmatpush1.msra.mxu0 0.0
      %2353 = vmatprep.subr.mxu0 0.0
      %2354 = vmatpush1.msra.mxu0 0.0
      %2355 = vmatprep.subr.mxu0 0.0
      %2356 = vmatpush1.msra.mxu0 0.0
      %2357 = vmatprep.mubr.f32.mxu0 0.0
      %2358 = vmatmul.mubr.f32.gmra.mrb[0].mxu0 %v2214
      %v2359 = vpop.f32.mrb[0].mxu0
      %v2360 = vadd.f32 0.0, %v2359
      %v2361 = vpop.f32.mrb[0].mxu0
      %2362 = vdwg.mxu0
      %v2363 = vadd.f32 %v2199, %v2289
      %v2364 = vadd.f32 %v2200, %v2291
      %v2365 = vadd.f32 %v2201, %v2360
      %s2366 = scalar_lea.vmem %s7, 32
      %v2367 = vld [vmem:[%s2366] sm:$0xf]
      %2368 = vrot.lane.b32.xlu0 %v991, 90
      %v2369 = vpop.permute.xlu0 %2368
      %2370 = vrot.lane.b32.xlu0 %v993, 90
      %v2371 = vpop.permute.xlu0 %2370
      %2372 = vrot.lane.b32.xlu0 %v1062, 90
      %v2373 = vpop.permute.xlu0 %2372
      %vm2374 = vcmask 736256
      %v2375 = vsel %vm2374, %v2369, %v2371
      %v2376 = vsel %vm2374, %v2371, %v2373
      %v2378 = vsel %vm1080, %v2367, 0
      %v2380 = vsel %vm1084, %v2375, 0
      %v2382 = vsel %vm1084, %v2376, 0
      %v2384 = vsel %vm1084, %v2373, 0
      %2386 = vmatprep.subr.mxu0 %v2382
      %2387 = vmatpush1.msra.mxu0 %v2380
      %2388 = vmatprep.subr.mxu0 0.0
      %2389 = vmatpush1.msra.mxu0 0.0
      %2390 = vmatprep.subr.mxu0 0.0
      %2391 = vmatpush1.msra.mxu0 0.0
      %2392 = vmatprep.subr.mxu0 0.0
      %2393 = vmatpush1.msra.mxu0 0.0
      %2394 = vmatprep.subr.mxu0 0.0
      %2395 = vmatpush1.msra.mxu0 0.0
      %2396 = vmatprep.subr.mxu0 0.0
      %2397 = vmatpush1.msra.mxu0 0.0
      %2398 = vmatprep.subr.mxu0 0.0
      %2399 = vmatpush1.msra.mxu0 0.0
      %2400 = vmatprep.subr.mxu0 0.0
      %2401 = vmatpush1.msra.mxu0 0.0
      %2402 = vmatprep.subr.mxu0 0.0
      %2403 = vmatpush1.msra.mxu0 0.0
      %2404 = vmatprep.subr.mxu0 0.0
      %2405 = vmatpush1.msra.mxu0 0.0
      %2406 = vmatprep.subr.mxu0 0.0
      %2407 = vmatpush1.msra.mxu0 0.0
      %2408 = vmatprep.subr.mxu0 0.0
      %2409 = vmatpush1.msra.mxu0 0.0
      %2410 = vmatprep.subr.mxu0 0.0
      %2411 = vmatpush1.msra.mxu0 0.0
      %2412 = vmatprep.subr.mxu0 0.0
      %2413 = vmatpush1.msra.mxu0 0.0
      %2414 = vmatprep.subr.mxu0 0.0
      %2415 = vmatpush1.msra.mxu0 0.0
      %2416 = vmatprep.subr.mxu0 0.0
      %2417 = vmatpush1.msra.mxu0 0.0
      %2418 = vmatprep.subr.mxu0 0.0
      %2419 = vmatpush1.msra.mxu0 0.0
      %2420 = vmatprep.subr.mxu0 0.0
      %2421 = vmatpush1.msra.mxu0 0.0
      %2422 = vmatprep.subr.mxu0 0.0
      %2423 = vmatpush1.msra.mxu0 0.0
      %2424 = vmatprep.subr.mxu0 0.0
      %2425 = vmatpush1.msra.mxu0 0.0
      %2426 = vmatprep.subr.mxu0 0.0
      %2427 = vmatpush1.msra.mxu0 0.0
      %2428 = vmatprep.subr.mxu0 0.0
      %2429 = vmatpush1.msra.mxu0 0.0
      %2430 = vmatprep.subr.mxu0 0.0
      %2431 = vmatpush1.msra.mxu0 0.0
      %2432 = vmatprep.subr.mxu0 0.0
      %2433 = vmatpush1.msra.mxu0 0.0
      %2434 = vmatprep.subr.mxu0 0.0
      %2435 = vmatpush1.msra.mxu0 0.0
      %2436 = vmatprep.subr.mxu0 0.0
      %2437 = vmatpush1.msra.mxu0 0.0
      %2438 = vmatprep.subr.mxu0 0.0
      %2439 = vmatpush1.msra.mxu0 0.0
      %2440 = vmatprep.subr.mxu0 0.0
      %2441 = vmatpush1.msra.mxu0 0.0
      %2442 = vmatprep.subr.mxu0 0.0
      %2443 = vmatpush1.msra.mxu0 0.0
      %2444 = vmatprep.subr.mxu0 0.0
      %2445 = vmatpush1.msra.mxu0 0.0
      %2446 = vmatprep.subr.mxu0 0.0
      %2447 = vmatpush1.msra.mxu0 0.0
      %2448 = vmatprep.subr.mxu0 0.0
      %2449 = vmatpush1.msra.mxu0 0.0
      %2450 = vmatprep.mubr.f32.mxu0 0.0
      %2451 = vmatmul.mubr.f32.gmra.mrb[0].mxu0 %v2378
      %v2452 = vpop.f32.mrb[0].mxu0
      %v2453 = vadd.f32 0.0, %v2452
      %v2454 = vpop.f32.mrb[0].mxu0
      %v2455 = vadd.f32 0.0, %v2454
      %2456 = vdwg.mxu0
      %2457 = vmatprep.subr.mxu0 0.0
      %2458 = vmatpush1.msra.mxu0 %v2384
      %2459 = vmatprep.subr.mxu0 0.0
      %2460 = vmatpush1.msra.mxu0 0.0
      %2461 = vmatprep.subr.mxu0 0.0
      %2462 = vmatpush1.msra.mxu0 0.0
      %2463 = vmatprep.subr.mxu0 0.0
      %2464 = vmatpush1.msra.mxu0 0.0
      %2465 = vmatprep.subr.mxu0 0.0
      %2466 = vmatpush1.msra.mxu0 0.0
      %2467 = vmatprep.subr.mxu0 0.0
      %2468 = vmatpush1.msra.mxu0 0.0
      %2469 = vmatprep.subr.mxu0 0.0
      %2470 = vmatpush1.msra.mxu0 0.0
      %2471 = vmatprep.subr.mxu0 0.0
      %2472 = vmatpush1.msra.mxu0 0.0
      %2473 = vmatprep.subr.mxu0 0.0
      %2474 = vmatpush1.msra.mxu0 0.0
      %2475 = vmatprep.subr.mxu0 0.0
      %2476 = vmatpush1.msra.mxu0 0.0
      %2477 = vmatprep.subr.mxu0 0.0
      %2478 = vmatpush1.msra.mxu0 0.0
      %2479 = vmatprep.subr.mxu0 0.0
      %2480 = vmatpush1.msra.mxu0 0.0
      %2481 = vmatprep.subr.mxu0 0.0
      %2482 = vmatpush1.msra.mxu0 0.0
      %2483 = vmatprep.subr.mxu0 0.0
      %2484 = vmatpush1.msra.mxu0 0.0
      %2485 = vmatprep.subr.mxu0 0.0
      %2486 = vmatpush1.msra.mxu0 0.0
      %2487 = vmatprep.subr.mxu0 0.0
      %2488 = vmatpush1.msra.mxu0 0.0
      %2489 = vmatprep.subr.mxu0 0.0
      %2490 = vmatpush1.msra.mxu0 0.0
      %2491 = vmatprep.subr.mxu0 0.0
      %2492 = vmatpush1.msra.mxu0 0.0
      %2493 = vmatprep.subr.mxu0 0.0
      %2494 = vmatpush1.msra.mxu0 0.0
      %2495 = vmatprep.subr.mxu0 0.0
      %2496 = vmatpush1.msra.mxu0 0.0
      %2497 = vmatprep.subr.mxu0 0.0
      %2498 = vmatpush1.msra.mxu0 0.0
      %2499 = vmatprep.subr.mxu0 0.0
      %2500 = vmatpush1.msra.mxu0 0.0
      %2501 = vmatprep.subr.mxu0 0.0
      %2502 = vmatpush1.msra.mxu0 0.0
      %2503 = vmatprep.subr.mxu0 0.0
      %2504 = vmatpush1.msra.mxu0 0.0
      %2505 = vmatprep.subr.mxu0 0.0
      %2506 = vmatpush1.msra.mxu0 0.0
      %2507 = vmatprep.subr.mxu0 0.0
      %2508 = vmatpush1.msra.mxu0 0.0
      %2509 = vmatprep.subr.mxu0 0.0
      %2510 = vmatpush1.msra.mxu0 0.0
      %2511 = vmatprep.subr.mxu0 0.0
      %2512 = vmatpush1.msra.mxu0 0.0
      %2513 = vmatprep.subr.mxu0 0.0
      %2514 = vmatpush1.msra.mxu0 0.0
      %2515 = vmatprep.subr.mxu0 0.0
      %2516 = vmatpush1.msra.mxu0 0.0
      %2517 = vmatprep.subr.mxu0 0.0
      %2518 = vmatpush1.msra.mxu0 0.0
      %2519 = vmatprep.subr.mxu0 0.0
      %2520 = vmatpush1.msra.mxu0 0.0
      %2521 = vmatprep.mubr.f32.mxu0 0.0
      %2522 = vmatmul.mubr.f32.gmra.mrb[0].mxu0 %v2378
      %v2523 = vpop.f32.mrb[0].mxu0
      %v2524 = vadd.f32 0.0, %v2523
      %v2525 = vpop.f32.mrb[0].mxu0
      %2526 = vdwg.mxu0
      %v2527 = vadd.f32 %v2363, %v2453
      %v2528 = vadd.f32 %v2364, %v2455
      %v2529 = vadd.f32 %v2365, %v2524
      %v2530 = vld [vmem:[%s4] sm:$0xff]
      %v2531 = vld [vmem:[%s4 + $0x8] sm:$0xff]
      %v2532 = vld [vmem:[%s4 + $0x10] sm:$0xff]
      %v2533 = vld [vmem:[%s4 + $0x18] sm:$0xff]
      %v2534 = vld [vmem:[%s4 + $0x20] sm:$0xff]
      %v2535 = vld [vmem:[%s4 + $0x28] sm:$0xff]
      %v2536 = vld [vmem:[%s4 + $0x30] sm:$0xff]
      %v2537 = vld [vmem:[%s4 + $0x38] sm:$0xff]
      %v2538 = vld [vmem:[%s4 + $0x40] sm:$0xff]
      %v2539 = vld [vmem:[%s4 + $0x48] sm:$0xff]
      %v2540 = vld [vmem:[%s4 + $0x50] sm:$0xff]
      %v2541 = vld [vmem:[%s4 + $0x58] sm:$0xff]
      %v2542 = vld [vmem:[%s4 + $0x60] sm:$0xff]
      %v2543 = vld [vmem:[%s4 + $0x68] sm:$0xff]
      %v2544 = vld [vmem:[%s4 + $0x70] sm:$0xff]
      %v2545 = vld [vmem:[%s4 + $0x78] sm:$0xff]
      %v2546 = vld [vmem:[%s4 + $0x80] sm:$0xff]
      %v2547 = vld [vmem:[%s4 + $0x88] sm:$0xff]
      %v2548 = vld [vmem:[%s4 + $0x90] sm:$0xff]
      %v2549 = vld [vmem:[%s4 + $0x98] sm:$0xff]
      %v2550 = vld [vmem:[%s4 + $0xa0] sm:$0xff]
      %v2551 = vld [vmem:[%s4 + $0xa8] sm:$0xff]
      %v2552 = vld [vmem:[%s4 + $0xb0] sm:$0xff]
      %v2553 = vld [vmem:[%s4 + $0xb8] sm:$0xff]
      %v2554 = vld [vmem:[%s4 + $0xc0] sm:$0xff]
      %v2555 = vld [vmem:[%s4 + $0xc8] sm:$0xff]
      %v2556 = vld [vmem:[%s4 + $0xd0] sm:$0xff]
      %v2557 = vld [vmem:[%s4 + $0xd8] sm:$0xff]
      %v2558 = vld [vmem:[%s4 + $0xe0] sm:$0xff]
      %v2559 = vld [vmem:[%s4 + $0xe8] sm:$0xff]
      %v2560 = vld [vmem:[%s4 + $0xf0] sm:$0xff]
      %v2561 = vld [vmem:[%s4 + $0xf8] sm:$0xff]
      %v2562 = vld [vmem:[%s4 + $0x100] sm:$0xff]
      %v2563 = vld [vmem:[%s4 + $0x108] sm:$0xff]
      %v2564 = vld [vmem:[%s4 + $0x110] sm:$0xff]
      %v2565 = vld [vmem:[%s4 + $0x118] sm:$0xff]
      %v2566 = vld [vmem:[%s4 + $0x120] sm:$0xff]
      %v2567 = vld [vmem:[%s4 + $0x128] sm:$0xff]
      %v2568 = vld [vmem:[%s4 + $0x130] sm:$0xff]
      %v2569 = vld [vmem:[%s4 + $0x138] sm:$0xff]
      %v2570 = vld [vmem:[%s4 + $0x140] sm:$0xff]
      %v2571 = vld [vmem:[%s4 + $0x148] sm:$0xff]
      %v2572 = vld [vmem:[%s4 + $0x150] sm:$0xff]
      %v2573 = vld [vmem:[%s4 + $0x158] sm:$0xff]
      %v2574 = vld [vmem:[%s4 + $0x160] sm:$0xff]
      %v2575 = vld [vmem:[%s4 + $0x168] sm:$0xff]
      %v2576 = vld [vmem:[%s4 + $0x170] sm:$0xff]
      %v2577 = vld [vmem:[%s4 + $0x178] sm:$0xff]
      %v2578 = vld [vmem:[%s4 + $0x180] sm:$0xff]
      %v2579 = vld [vmem:[%s4 + $0x188] sm:$0xff]
      %v2580 = vld [vmem:[%s4 + $0x190] sm:$0xff]
      %v2581 = vld [vmem:[%s4 + $0x198] sm:$0xff]
      %v2582 = vld [vmem:[%s4 + $0x1a0] sm:$0xff]
      %v2583 = vld [vmem:[%s4 + $0x1a8] sm:$0xff]
      %v2584 = vld [vmem:[%s4 + $0x1b0] sm:$0xff]
      %v2585 = vld [vmem:[%s4 + $0x1b8] sm:$0xff]
      %v2586 = vld [vmem:[%s4 + $0x1c0] sm:$0xff]
      %v2587 = vld [vmem:[%s4 + $0x1c8] sm:$0xff]
      %v2588 = vld [vmem:[%s4 + $0x1d0] sm:$0xff]
      %v2589 = vld [vmem:[%s4 + $0x1d8] sm:$0xff]
      %v2590 = vld [vmem:[%s4 + $0x1e0] sm:$0xff]
      %v2591 = vld [vmem:[%s4 + $0x1e8] sm:$0xff]
      %v2592 = vld [vmem:[%s4 + $0x1f0] sm:$0xff]
      %v2593 = vld [vmem:[%s4 + $0x1f8] sm:$0xff]
      %v2594 = vld [vmem:[%s4 + $0x200] sm:$0xff]
      %v2595 = vld [vmem:[%s4 + $0x208] sm:$0xff]
      %v2596 = vld [vmem:[%s4 + $0x210] sm:$0xff]
      %v2597 = vld [vmem:[%s4 + $0x218] sm:$0xff]
      %v2598 = vld [vmem:[%s4 + $0x220] sm:$0xff]
      %v2599 = vld [vmem:[%s4 + $0x228] sm:$0xff]
      %v2600 = vld [vmem:[%s4 + $0x230] sm:$0xff]
      %v2601 = vld [vmem:[%s4 + $0x238] sm:$0xff]
      %v2602 = vld [vmem:[%s8] sm:$0xf]
      %2604 = vset.pattern.permute.xlu0 0
      %2605 = vperm.xlu0 %2604, %v2602
      %v2606 = vpop.permute.xlu0 %2605
      %vm2608 = vcmask 261120
      %v2610 = vsel %vm2608, %v2529, 0
      %2612 = vmatprep.subr.mxu0 %v2531
      %2613 = vmatpush1.msra.mxu0 %v2530
      %2614 = vmatprep.subr.mxu0 %v2533
      %2615 = vmatpush1.msra.mxu0 %v2532
      %2616 = vmatprep.subr.mxu0 %v2535
      %2617 = vmatpush1.msra.mxu0 %v2534
      %2618 = vmatprep.subr.mxu0 %v2537
      %2619 = vmatpush1.msra.mxu0 %v2536
      %2620 = vmatprep.subr.mxu0 %v2539
      %2621 = vmatpush1.msra.mxu0 %v2538
      %2622 = vmatprep.subr.mxu0 %v2541
      %2623 = vmatpush1.msra.mxu0 %v2540
      %2624 = vmatprep.subr.mxu0 %v2543
      %2625 = vmatpush1.msra.mxu0 %v2542
      %2626 = vmatprep.subr.mxu0 %v2545
      %2627 = vmatpush1.msra.mxu0 %v2544
      %2628 = vmatprep.subr.mxu0 %v2547
      %2629 = vmatpush1.msra.mxu0 %v2546
      %2630 = vmatprep.subr.mxu0 %v2549
      %2631 = vmatpush1.msra.mxu0 %v2548
      %2632 = vmatprep.subr.mxu0 %v2551
      %2633 = vmatpush1.msra.mxu0 %v2550
      %2634 = vmatprep.subr.mxu0 %v2553
      %2635 = vmatpush1.msra.mxu0 %v2552
      %2636 = vmatprep.subr.mxu0 %v2555
      %2637 = vmatpush1.msra.mxu0 %v2554
      %2638 = vmatprep.subr.mxu0 %v2557
      %2639 = vmatpush1.msra.mxu0 %v2556
      %2640 = vmatprep.subr.mxu0 %v2559
      %2641 = vmatpush1.msra.mxu0 %v2558
      %2642 = vmatprep.subr.mxu0 %v2561
      %2643 = vmatpush1.msra.mxu0 %v2560
      %2644 = vmatprep.subr.mxu0 %v2563
      %2645 = vmatpush1.msra.mxu0 %v2562
      %2646 = vmatprep.subr.mxu0 %v2565
      %2647 = vmatpush1.msra.mxu0 %v2564
      %2648 = vmatprep.subr.mxu0 %v2567
      %2649 = vmatpush1.msra.mxu0 %v2566
      %2650 = vmatprep.subr.mxu0 %v2569
      %2651 = vmatpush1.msra.mxu0 %v2568
      %2652 = vmatprep.subr.mxu0 %v2571
      %2653 = vmatpush1.msra.mxu0 %v2570
      %2654 = vmatprep.subr.mxu0 %v2573
      %2655 = vmatpush1.msra.mxu0 %v2572
      %2656 = vmatprep.subr.mxu0 %v2575
      %2657 = vmatpush1.msra.mxu0 %v2574
      %2658 = vmatprep.subr.mxu0 %v2577
      %2659 = vmatpush1.msra.mxu0 %v2576
      %2660 = vmatprep.subr.mxu0 %v2579
      %2661 = vmatpush1.msra.mxu0 %v2578
      %2662 = vmatprep.subr.mxu0 %v2581
      %2663 = vmatpush1.msra.mxu0 %v2580
      %2664 = vmatprep.subr.mxu0 %v2583
      %2665 = vmatpush1.msra.mxu0 %v2582
      %2666 = vmatprep.subr.mxu0 %v2585
      %2667 = vmatpush1.msra.mxu0 %v2584
      %2668 = vmatprep.subr.mxu0 %v2587
      %2669 = vmatpush1.msra.mxu0 %v2586
      %2670 = vmatprep.subr.mxu0 %v2589
      %2671 = vmatpush1.msra.mxu0 %v2588
      %2672 = vmatprep.subr.mxu0 %v2591
      %2673 = vmatpush1.msra.mxu0 %v2590
      %2674 = vmatprep.subr.mxu0 %v2593
      %2675 = vmatpush1.msra.mxu0 %v2592
      %2676 = vmatprep.mubr.f32.mxu0 %v2528
      %2677 = vmatmul.mubr.f32.gmra.mrb[0].mxu0 %v2527
      %v2678 = vpop.f32.mrb[0].mxu0
      %v2679 = vadd.f32 %v2606, %v2678
      %v2680 = vpop.f32.mrb[0].mxu0
      %v2681 = vadd.f32 %v2606, %v2680
      %2682 = vdwg.mxu0
      %2683 = vmatprep.subr.mxu0 %v2595
      %2684 = vmatpush1.msra.mxu0 %v2594
      %2685 = vmatprep.subr.mxu0 %v2597
      %2686 = vmatpush1.msra.mxu0 %v2596
      %2687 = vmatprep.subr.mxu0 %v2599
      %2688 = vmatpush1.msra.mxu0 %v2598
      %2689 = vmatprep.subr.mxu0 %v2601
      %2690 = vmatpush1.msra.mxu0 %v2600
      %2691 = vmatprep.subr.mxu0 0.0
      %2692 = vmatpush1.msra.mxu0 0.0
      %2693 = vmatprep.subr.mxu0 0.0
      %2694 = vmatpush1.msra.mxu0 0.0
      %2695 = vmatprep.subr.mxu0 0.0
      %2696 = vmatpush1.msra.mxu0 0.0
      %2697 = vmatprep.subr.mxu0 0.0
      %2698 = vmatpush1.msra.mxu0 0.0
      %2699 = vmatprep.subr.mxu0 0.0
      %2700 = vmatpush1.msra.mxu0 0.0
      %2701 = vmatprep.subr.mxu0 0.0
      %2702 = vmatpush1.msra.mxu0 0.0
      %2703 = vmatprep.subr.mxu0 0.0
      %2704 = vmatpush1.msra.mxu0 0.0
      %2705 = vmatprep.subr.mxu0 0.0
      %2706 = vmatpush1.msra.mxu0 0.0
      %2707 = vmatprep.subr.mxu0 0.0
      %2708 = vmatpush1.msra.mxu0 0.0
      %2709 = vmatprep.subr.mxu0 0.0
      %2710 = vmatpush1.msra.mxu0 0.0
      %2711 = vmatprep.subr.mxu0 0.0
      %2712 = vmatpush1.msra.mxu0 0.0
      %2713 = vmatprep.subr.mxu0 0.0
      %2714 = vmatpush1.msra.mxu0 0.0
      %2715 = vmatprep.subr.mxu0 0.0
      %2716 = vmatpush1.msra.mxu0 0.0
      %2717 = vmatprep.subr.mxu0 0.0
      %2718 = vmatpush1.msra.mxu0 0.0
      %2719 = vmatprep.subr.mxu0 0.0
      %2720 = vmatpush1.msra.mxu0 0.0
      %2721 = vmatprep.subr.mxu0 0.0
      %2722 = vmatpush1.msra.mxu0 0.0
      %2723 = vmatprep.subr.mxu0 0.0
      %2724 = vmatpush1.msra.mxu0 0.0
      %2725 = vmatprep.subr.mxu0 0.0
      %2726 = vmatpush1.msra.mxu0 0.0
      %2727 = vmatprep.subr.mxu0 0.0
      %2728 = vmatpush1.msra.mxu0 0.0
      %2729 = vmatprep.subr.mxu0 0.0
      %2730 = vmatpush1.msra.mxu0 0.0
      %2731 = vmatprep.subr.mxu0 0.0
      %2732 = vmatpush1.msra.mxu0 0.0
      %2733 = vmatprep.subr.mxu0 0.0
      %2734 = vmatpush1.msra.mxu0 0.0
      %2735 = vmatprep.subr.mxu0 0.0
      %2736 = vmatpush1.msra.mxu0 0.0
      %2737 = vmatprep.subr.mxu0 0.0
      %2738 = vmatpush1.msra.mxu0 0.0
      %2739 = vmatprep.subr.mxu0 0.0
      %2740 = vmatpush1.msra.mxu0 0.0
      %2741 = vmatprep.subr.mxu0 0.0
      %2742 = vmatpush1.msra.mxu0 0.0
      %2743 = vmatprep.subr.mxu0 0.0
      %2744 = vmatpush1.msra.mxu0 0.0
      %2745 = vmatprep.subr.mxu0 0.0
      %2746 = vmatpush1.msra.mxu0 0.0
      %2747 = vmatprep.mubr.f32.mxu0 0.0
      %2748 = vmatmul.mubr.f32.gmra.mrb[0].mxu0 %v2610
      %v2749 = vpop.f32.mrb[0].mxu0
      %v2750 = vadd.f32 %v2679, %v2749
      %v2751 = vpop.f32.mrb[0].mxu0
      %v2752 = vadd.f32 %v2681, %v2751
      %2753 = vdwg.mxu0
      %2754 = vmatprep.subr.mxu0 0.0
      %2755 = vmatpush1.msra.mxu0 %v442
      %2756 = vmatprep.subr.mxu0 0.0
      %2757 = vmatpush1.msra.mxu0 %v443
      %2758 = vmatprep.subr.mxu0 0.0
      %2759 = vmatpush1.msra.mxu0 %v444
      %2760 = vmatprep.subr.mxu0 0.0
      %2761 = vmatpush1.msra.mxu0 %v445
      %2762 = vmatprep.subr.mxu0 0.0
      %2763 = vmatpush1.msra.mxu0 %v446
      %2764 = vmatprep.subr.mxu0 0.0
      %2765 = vmatpush1.msra.mxu0 %v447
      %2766 = vmatprep.subr.mxu0 0.0
      %2767 = vmatpush1.msra.mxu0 %v448
      %2768 = vmatprep.subr.mxu0 0.0
      %2769 = vmatpush1.msra.mxu0 %v449
      %2770 = vmatprep.subr.mxu0 0.0
      %2771 = vmatpush1.msra.mxu0 %v450
      %2772 = vmatprep.subr.mxu0 0.0
      %2773 = vmatpush1.msra.mxu0 %v451
      %2774 = vmatprep.subr.mxu0 0.0
      %2775 = vmatpush1.msra.mxu0 %v452
      %2776 = vmatprep.subr.mxu0 0.0
      %2777 = vmatpush1.msra.mxu0 %v453
      %2778 = vmatprep.subr.mxu0 0.0
      %2779 = vmatpush1.msra.mxu0 %v454
      %2780 = vmatprep.subr.mxu0 0.0
      %2781 = vmatpush1.msra.mxu0 %v455
      %2782 = vmatprep.subr.mxu0 0.0
      %2783 = vmatpush1.msra.mxu0 %v456
      %2784 = vmatprep.subr.mxu0 0.0
      %2785 = vmatpush1.msra.mxu0 %v457
      %2786 = vmatprep.subr.mxu0 0.0
      %2787 = vmatpush1.msra.mxu0 %v458
      %2788 = vmatprep.subr.mxu0 0.0
      %2789 = vmatpush1.msra.mxu0 %v459
      %2790 = vmatprep.subr.mxu0 0.0
      %2791 = vmatpush1.msra.mxu0 %v460
      %2792 = vmatprep.subr.mxu0 0.0
      %2793 = vmatpush1.msra.mxu0 %v461
      %2794 = vmatprep.subr.mxu0 0.0
      %2795 = vmatpush1.msra.mxu0 %v462
      %2796 = vmatprep.subr.mxu0 0.0
      %2797 = vmatpush1.msra.mxu0 %v463
      %2798 = vmatprep.subr.mxu0 0.0
      %2799 = vmatpush1.msra.mxu0 %v464
      %2800 = vmatprep.subr.mxu0 0.0
      %2801 = vmatpush1.msra.mxu0 %v465
      %2802 = vmatprep.subr.mxu0 0.0
      %2803 = vmatpush1.msra.mxu0 %v466
      %2804 = vmatprep.subr.mxu0 0.0
      %2805 = vmatpush1.msra.mxu0 %v467
      %2806 = vmatprep.subr.mxu0 0.0
      %2807 = vmatpush1.msra.mxu0 %v468
      %2808 = vmatprep.subr.mxu0 0.0
      %2809 = vmatpush1.msra.mxu0 %v469
      %2810 = vmatprep.subr.mxu0 0.0
      %2811 = vmatpush1.msra.mxu0 %v470
      %2812 = vmatprep.subr.mxu0 0.0
      %2813 = vmatpush1.msra.mxu0 %v471
      %2814 = vmatprep.subr.mxu0 0.0
      %2815 = vmatpush1.msra.mxu0 %v472
      %2816 = vmatprep.subr.mxu0 0.0
      %2817 = vmatpush1.msra.mxu0 %v473
      %2818 = vmatprep.mubr.f32.mxu0 %v2752
      %2819 = vmatmul.mubr.f32.gmra.mrb[0].mxu0 %v2750
      %v2820 = vpop.f32.mrb[0].mxu0
      %v2821 = vadd.f32 0.0, %v2820
      %v2822 = vpop.f32.mrb[0].mxu0
      %2823 = vdwg.mxu0
      %v2824 = vmul.f32 %v2750, %v2750
      %v2825 = vmul.f32 %v2752, %v2752
      %2826 = vmatprep.subr.mxu0 0.0
      %2827 = vmatpush1.msra.mxu0 %v442
      %2828 = vmatprep.subr.mxu0 0.0
      %2829 = vmatpush1.msra.mxu0 %v443
      %2830 = vmatprep.subr.mxu0 0.0
      %2831 = vmatpush1.msra.mxu0 %v444
      %2832 = vmatprep.subr.mxu0 0.0
      %2833 = vmatpush1.msra.mxu0 %v445
      %2834 = vmatprep.subr.mxu0 0.0
      %2835 = vmatpush1.msra.mxu0 %v446
      %2836 = vmatprep.subr.mxu0 0.0
      %2837 = vmatpush1.msra.mxu0 %v447
      %2838 = vmatprep.subr.mxu0 0.0
      %2839 = vmatpush1.msra.mxu0 %v448
      %2840 = vmatprep.subr.mxu0 0.0
      %2841 = vmatpush1.msra.mxu0 %v449
      %2842 = vmatprep.subr.mxu0 0.0
      %2843 = vmatpush1.msra.mxu0 %v450
      %2844 = vmatprep.subr.mxu0 0.0
      %2845 = vmatpush1.msra.mxu0 %v451
      %2846 = vmatprep.subr.mxu0 0.0
      %2847 = vmatpush1.msra.mxu0 %v452
      %2848 = vmatprep.subr.mxu0 0.0
      %2849 = vmatpush1.msra.mxu0 %v453
      %2850 = vmatprep.subr.mxu0 0.0
      %2851 = vmatpush1.msra.mxu0 %v454
      %2852 = vmatprep.subr.mxu0 0.0
      %2853 = vmatpush1.msra.mxu0 %v455
      %2854 = vmatprep.subr.mxu0 0.0
      %2855 = vmatpush1.msra.mxu0 %v456
      %2856 = vmatprep.subr.mxu0 0.0
      %2857 = vmatpush1.msra.mxu0 %v457
      %2858 = vmatprep.subr.mxu0 0.0
      %2859 = vmatpush1.msra.mxu0 %v458
      %2860 = vmatprep.subr.mxu0 0.0
      %2861 = vmatpush1.msra.mxu0 %v459
      %2862 = vmatprep.subr.mxu0 0.0
      %2863 = vmatpush1.msra.mxu0 %v460
      %2864 = vmatprep.subr.mxu0 0.0
      %2865 = vmatpush1.msra.mxu0 %v461
      %2866 = vmatprep.subr.mxu0 0.0
      %2867 = vmatpush1.msra.mxu0 %v462
      %2868 = vmatprep.subr.mxu0 0.0
      %2869 = vmatpush1.msra.mxu0 %v463
      %2870 = vmatprep.subr.mxu0 0.0
      %2871 = vmatpush1.msra.mxu0 %v464
      %2872 = vmatprep.subr.mxu0 0.0
      %2873 = vmatpush1.msra.mxu0 %v465
      %2874 = vmatprep.subr.mxu0 0.0
      %2875 = vmatpush1.msra.mxu0 %v466
      %2876 = vmatprep.subr.mxu0 0.0
      %2877 = vmatpush1.msra.mxu0 %v467
      %2878 = vmatprep.subr.mxu0 0.0
      %2879 = vmatpush1.msra.mxu0 %v468
      %2880 = vmatprep.subr.mxu0 0.0
      %2881 = vmatpush1.msra.mxu0 %v469
      %2882 = vmatprep.subr.mxu0 0.0
      %2883 = vmatpush1.msra.mxu0 %v470
      %2884 = vmatprep.subr.mxu0 0.0
      %2885 = vmatpush1.msra.mxu0 %v471
      %2886 = vmatprep.subr.mxu0 0.0
      %2887 = vmatpush1.msra.mxu0 %v472
      %2888 = vmatprep.subr.mxu0 0.0
      %2889 = vmatpush1.msra.mxu0 %v473
      %2890 = vmatprep.mubr.f32.mxu0 %v2825
      %2891 = vmatmul.mubr.f32.gmra.mrb[0].mxu0 %v2824
      %v2892 = vpop.f32.mrb[0].mxu0
      %v2893 = vadd.f32 0.0, %v2892
      %v2894 = vpop.f32.mrb[0].mxu0
      %2895 = vdwg.mxu0
      %v2896 = vmul.f32 %v2821, 0.0625
      %v2897 = vmul.f32 %v2893, 0.0625
      %v2898 = vmul.f32 %v2896, %v2896
      %v2899 = vsub.f32 %v2897, %v2898
      %v2900 = vadd.f32 %v2899, 1e-05
      %v2901 = vrsqrt.pop %v2900
      %v2903 = vsel %vm631, %v2896, 0
      %2905 = vmatprep.subr.mxu0 %v628
      %2906 = vmatpush1.msra.mxu0 %v627
      %2907 = vmatprep.subr.mxu0 %v630
      %2908 = vmatpush1.msra.mxu0 %v629
      %2909 = vmatprep.subr.mxu0 0.0
      %2910 = vmatpush1.msra.mxu0 0.0
      %2911 = vmatprep.subr.mxu0 0.0
      %2912 = vmatpush1.msra.mxu0 0.0
      %2913 = vmatprep.subr.mxu0 0.0
      %2914 = vmatpush1.msra.mxu0 0.0
      %2915 = vmatprep.subr.mxu0 0.0
      %2916 = vmatpush1.msra.mxu0 0.0
      %2917 = vmatprep.subr.mxu0 0.0
      %2918 = vmatpush1.msra.mxu0 0.0
      %2919 = vmatprep.subr.mxu0 0.0
      %2920 = vmatpush1.msra.mxu0 0.0
      %2921 = vmatprep.subr.mxu0 0.0
      %2922 = vmatpush1.msra.mxu0 0.0
      %2923 = vmatprep.subr.mxu0 0.0
      %2924 = vmatpush1.msra.mxu0 0.0
      %2925 = vmatprep.subr.mxu0 0.0
      %2926 = vmatpush1.msra.mxu0 0.0
      %2927 = vmatprep.subr.mxu0 0.0
      %2928 = vmatpush1.msra.mxu0 0.0
      %2929 = vmatprep.subr.mxu0 0.0
      %2930 = vmatpush1.msra.mxu0 0.0
      %2931 = vmatprep.subr.mxu0 0.0
      %2932 = vmatpush1.msra.mxu0 0.0
      %2933 = vmatprep.subr.mxu0 0.0
      %2934 = vmatpush1.msra.mxu0 0.0
      %2935 = vmatprep.subr.mxu0 0.0
      %2936 = vmatpush1.msra.mxu0 0.0
      %2937 = vmatprep.subr.mxu0 0.0
      %2938 = vmatpush1.msra.mxu0 0.0
      %2939 = vmatprep.subr.mxu0 0.0
      %2940 = vmatpush1.msra.mxu0 0.0
      %2941 = vmatprep.subr.mxu0 0.0
      %2942 = vmatpush1.msra.mxu0 0.0
      %2943 = vmatprep.subr.mxu0 0.0
      %2944 = vmatpush1.msra.mxu0 0.0
      %2945 = vmatprep.subr.mxu0 0.0
      %2946 = vmatpush1.msra.mxu0 0.0
      %2947 = vmatprep.subr.mxu0 0.0
      %2948 = vmatpush1.msra.mxu0 0.0
      %2949 = vmatprep.subr.mxu0 0.0
      %2950 = vmatpush1.msra.mxu0 0.0
      %2951 = vmatprep.subr.mxu0 0.0
      %2952 = vmatpush1.msra.mxu0 0.0
      %2953 = vmatprep.subr.mxu0 0.0
      %2954 = vmatpush1.msra.mxu0 0.0
      %2955 = vmatprep.subr.mxu0 0.0
      %2956 = vmatpush1.msra.mxu0 0.0
      %2957 = vmatprep.subr.mxu0 0.0
      %2958 = vmatpush1.msra.mxu0 0.0
      %2959 = vmatprep.subr.mxu0 0.0
      %2960 = vmatpush1.msra.mxu0 0.0
      %2961 = vmatprep.subr.mxu0 0.0
      %2962 = vmatpush1.msra.mxu0 0.0
      %2963 = vmatprep.subr.mxu0 0.0
      %2964 = vmatpush1.msra.mxu0 0.0
      %2965 = vmatprep.subr.mxu0 0.0
      %2966 = vmatpush1.msra.mxu0 0.0
      %2967 = vmatprep.subr.mxu0 0.0
      %2968 = vmatpush1.msra.mxu0 0.0
      %2969 = vmatprep.mubr.f32.mxu0 0.0
      %2970 = vmatmul.mubr.f32.gmra.mrb[0].mxu0 %v2903
      %v2971 = vpop.f32.mrb[0].mxu0
      %v2972 = vadd.f32 0.0, %v2971
      %v2973 = vpop.f32.mrb[0].mxu0
      %v2974 = vadd.f32 0.0, %v2973
      %2975 = vdwg.mxu0
      %v2977 = vsel %vm631, %v2901, 0
      %2979 = vmatprep.subr.mxu0 %v628
      %2980 = vmatpush1.msra.mxu0 %v627
      %2981 = vmatprep.subr.mxu0 %v630
      %2982 = vmatpush1.msra.mxu0 %v629
      %2983 = vmatprep.subr.mxu0 0.0
      %2984 = vmatpush1.msra.mxu0 0.0
      %2985 = vmatprep.subr.mxu0 0.0
      %2986 = vmatpush1.msra.mxu0 0.0
      %2987 = vmatprep.subr.mxu0 0.0
      %2988 = vmatpush1.msra.mxu0 0.0
      %2989 = vmatprep.subr.mxu0 0.0
      %2990 = vmatpush1.msra.mxu0 0.0
      %2991 = vmatprep.subr.mxu0 0.0
      %2992 = vmatpush1.msra.mxu0 0.0
      %2993 = vmatprep.subr.mxu0 0.0
      %2994 = vmatpush1.msra.mxu0 0.0
      %2995 = vmatprep.subr.mxu0 0.0
      %2996 = vmatpush1.msra.mxu0 0.0
      %2997 = vmatprep.subr.mxu0 0.0
      %2998 = vmatpush1.msra.mxu0 0.0
      %2999 = vmatprep.subr.mxu0 0.0
      %3000 = vmatpush1.msra.mxu0 0.0
      %3001 = vmatprep.subr.mxu0 0.0
      %3002 = vmatpush1.msra.mxu0 0.0
      %3003 = vmatprep.subr.mxu0 0.0
      %3004 = vmatpush1.msra.mxu0 0.0
      %3005 = vmatprep.subr.mxu0 0.0
      %3006 = vmatpush1.msra.mxu0 0.0
      %3007 = vmatprep.subr.mxu0 0.0
      %3008 = vmatpush1.msra.mxu0 0.0
      %3009 = vmatprep.subr.mxu0 0.0
      %3010 = vmatpush1.msra.mxu0 0.0
      %3011 = vmatprep.subr.mxu0 0.0
      %3012 = vmatpush1.msra.mxu0 0.0
      %3013 = vmatprep.subr.mxu0 0.0
      %3014 = vmatpush1.msra.mxu0 0.0
      %3015 = vmatprep.subr.mxu0 0.0
      %3016 = vmatpush1.msra.mxu0 0.0
      %3017 = vmatprep.subr.mxu0 0.0
      %3018 = vmatpush1.msra.mxu0 0.0
      %3019 = vmatprep.subr.mxu0 0.0
      %3020 = vmatpush1.msra.mxu0 0.0
      %3021 = vmatprep.subr.mxu0 0.0
      %3022 = vmatpush1.msra.mxu0 0.0
      %3023 = vmatprep.subr.mxu0 0.0
      %3024 = vmatpush1.msra.mxu0 0.0
      %3025 = vmatprep.subr.mxu0 0.0
      %3026 = vmatpush1.msra.mxu0 0.0
      %3027 = vmatprep.subr.mxu0 0.0
      %3028 = vmatpush1.msra.mxu0 0.0
      %3029 = vmatprep.subr.mxu0 0.0
      %3030 = vmatpush1.msra.mxu0 0.0
      %3031 = vmatprep.subr.mxu0 0.0
      %3032 = vmatpush1.msra.mxu0 0.0
      %3033 = vmatprep.subr.mxu0 0.0
      %3034 = vmatpush1.msra.mxu0 0.0
      %3035 = vmatprep.subr.mxu0 0.0
      %3036 = vmatpush1.msra.mxu0 0.0
      %3037 = vmatprep.subr.mxu0 0.0
      %3038 = vmatpush1.msra.mxu0 0.0
      %3039 = vmatprep.subr.mxu0 0.0
      %3040 = vmatpush1.msra.mxu0 0.0
      %3041 = vmatprep.subr.mxu0 0.0
      %3042 = vmatpush1.msra.mxu0 0.0
      %3043 = vmatprep.mubr.f32.mxu0 0.0
      %3044 = vmatmul.mubr.f32.gmra.mrb[0].mxu0 %v2977
      %v3045 = vpop.f32.mrb[0].mxu0
      %v3046 = vadd.f32 0.0, %v3045
      %v3047 = vpop.f32.mrb[0].mxu0
      %v3048 = vadd.f32 0.0, %v3047
      %3049 = vdwg.mxu0
      %v3050 = vsub.f32 %v2750, %v2972
      %v3051 = vsub.f32 %v2752, %v2974
      %v3052 = vmul.f32 %v3050, %v3046
      %v3053 = vmul.f32 %v3051, %v3048
      %v3054 = vld [vmem:[%s9] sm:$0x3]
      %v3056 = vlaneseq
      %v3057 = vshrl.u32 %v3056, 7
      %v3058 = vsub.s32 0, %v3057
      %v3059 = vrot.slane %v3054, %v3058
      %v3060 = vlaneseq
      %v3061 = vshrl.u32 %v3060, 7
      %v3062 = vsub.s32 1, %v3061
      %v3063 = vrot.slane %v3054, %v3062
      %v3066 = vmul.f32 %v3052, %v3059
      %v3067 = vmul.f32 %v3053, %v3063
      %v3068 = vld [vmem:[%s10] sm:$0x3]
      %v3070 = vlaneseq
      %v3071 = vshrl.u32 %v3070, 7
      %v3072 = vsub.s32 0, %v3071
      %v3073 = vrot.slane %v3068, %v3072
      %v3074 = vlaneseq
      %v3075 = vshrl.u32 %v3074, 7
      %v3076 = vsub.s32 1, %v3075
      %v3077 = vrot.slane %v3068, %v3076
      %v3080 = vadd.f32 %v3066, %v3073
      %v3081 = vadd.f32 %v3067, %v3077
      %v3082 = vmul.f32 %v3080, %v3080
      %v3083 = vmul.f32 %v3081, %v3081
      %v3084 = vmul.f32 %v3080, %v3082
      %v3085 = vmul.f32 %v3081, %v3083
      %v3086 = vmul.f32 %v3084, 0.044715
      %v3087 = vmul.f32 %v3085, 0.044715
      %v3088 = vadd.f32 %v3080, %v3086
      %v3089 = vadd.f32 %v3081, %v3087
      %v3090 = vmul.f32 %v3088, 0.7978846
      %v3091 = vmul.f32 %v3089, 0.7978846
      %v3092 = vtanh.pop %v3090
      %v3093 = vtanh.pop %v3091
      %v3094 = vadd.f32 %v3092, 1.0
      %v3095 = vadd.f32 %v3093, 1.0
      %v3096 = vmul.f32 %v3094, 0.5
      %v3097 = vmul.f32 %v3095, 0.5
      %v3098 = vmul.f32 %v3080, %v3096
      %v3099 = vmul.f32 %v3081, %v3097
      %3100 = vmatprep.subr.mxu0 %v826
      %3101 = vmatpush1.msra.mxu0 %v825
      %3102 = vmatprep.subr.mxu0 %v829
      %3103 = vmatpush1.msra.mxu0 %v828
      %3104 = vmatprep.subr.mxu0 %v832
      %3105 = vmatpush1.msra.mxu0 %v831
      %3106 = vmatprep.subr.mxu0 %v835
      %3107 = vmatpush1.msra.mxu0 %v834
      %3108 = vmatprep.subr.mxu0 %v838
      %3109 = vmatpush1.msra.mxu0 %v837
      %3110 = vmatprep.subr.mxu0 %v841
      %3111 = vmatpush1.msra.mxu0 %v840
      %3112 = vmatprep.subr.mxu0 %v844
      %3113 = vmatpush1.msra.mxu0 %v843
      %3114 = vmatprep.subr.mxu0 %v847
      %3115 = vmatpush1.msra.mxu0 %v846
      %3116 = vmatprep.subr.mxu0 %v850
      %3117 = vmatpush1.msra.mxu0 %v849
      %3118 = vmatprep.subr.mxu0 %v853
      %3119 = vmatpush1.msra.mxu0 %v852
      %3120 = vmatprep.subr.mxu0 %v856
      %3121 = vmatpush1.msra.mxu0 %v855
      %3122 = vmatprep.subr.mxu0 %v859
      %3123 = vmatpush1.msra.mxu0 %v858
      %3124 = vmatprep.subr.mxu0 %v862
      %3125 = vmatpush1.msra.mxu0 %v861
      %3126 = vmatprep.subr.mxu0 %v865
      %3127 = vmatpush1.msra.mxu0 %v864
      %3128 = vmatprep.subr.mxu0 %v868
      %3129 = vmatpush1.msra.mxu0 %v867
      %3130 = vmatprep.subr.mxu0 %v871
      %3131 = vmatpush1.msra.mxu0 %v870
      %3132 = vmatprep.subr.mxu0 %v874
      %3133 = vmatpush1.msra.mxu0 %v873
      %3134 = vmatprep.subr.mxu0 %v877
      %3135 = vmatpush1.msra.mxu0 %v876
      %3136 = vmatprep.subr.mxu0 %v880
      %3137 = vmatpush1.msra.mxu0 %v879
      %3138 = vmatprep.subr.mxu0 %v883
      %3139 = vmatpush1.msra.mxu0 %v882
      %3140 = vmatprep.subr.mxu0 %v886
      %3141 = vmatpush1.msra.mxu0 %v885
      %3142 = vmatprep.subr.mxu0 %v889
      %3143 = vmatpush1.msra.mxu0 %v888
      %3144 = vmatprep.subr.mxu0 %v892
      %3145 = vmatpush1.msra.mxu0 %v891
      %3146 = vmatprep.subr.mxu0 %v895
      %3147 = vmatpush1.msra.mxu0 %v894
      %3148 = vmatprep.subr.mxu0 %v898
      %3149 = vmatpush1.msra.mxu0 %v897
      %3150 = vmatprep.subr.mxu0 %v901
      %3151 = vmatpush1.msra.mxu0 %v900
      %3152 = vmatprep.subr.mxu0 %v904
      %3153 = vmatpush1.msra.mxu0 %v903
      %3154 = vmatprep.subr.mxu0 %v907
      %3155 = vmatpush1.msra.mxu0 %v906
      %3156 = vmatprep.subr.mxu0 %v910
      %3157 = vmatpush1.msra.mxu0 %v909
      %3158 = vmatprep.subr.mxu0 %v913
      %3159 = vmatpush1.msra.mxu0 %v912
      %3160 = vmatprep.subr.mxu0 %v916
      %3161 = vmatpush1.msra.mxu0 %v915
      %3162 = vmatprep.subr.mxu0 %v919
      %3163 = vmatpush1.msra.mxu0 %v918
      %3164 = vmatprep.mubr.f32.mxu0 %v3099
      %3165 = vmatmul.mubr.f32.gmra.mrb[0].mxu0 %v3098
      %v3166 = vpop.f32.mrb[0].mxu0
      %v3167 = vadd.f32 0.0, %v3166
      %v3168 = vpop.f32.mrb[0].mxu0
      %v3169 = vadd.f32 0.0, %v3168
      %3170 = vdwg.mxu0
      %3171 = vmatprep.subr.mxu0 0.0
      %3172 = vmatpush1.msra.mxu0 %v827
      %3173 = vmatprep.subr.mxu0 0.0
      %3174 = vmatpush1.msra.mxu0 %v830
      %3175 = vmatprep.subr.mxu0 0.0
      %3176 = vmatpush1.msra.mxu0 %v833
      %3177 = vmatprep.subr.mxu0 0.0
      %3178 = vmatpush1.msra.mxu0 %v836
      %3179 = vmatprep.subr.mxu0 0.0
      %3180 = vmatpush1.msra.mxu0 %v839
      %3181 = vmatprep.subr.mxu0 0.0
      %3182 = vmatpush1.msra.mxu0 %v842
      %3183 = vmatprep.subr.mxu0 0.0
      %3184 = vmatpush1.msra.mxu0 %v845
      %3185 = vmatprep.subr.mxu0 0.0
      %3186 = vmatpush1.msra.mxu0 %v848
      %3187 = vmatprep.subr.mxu0 0.0
      %3188 = vmatpush1.msra.mxu0 %v851
      %3189 = vmatprep.subr.mxu0 0.0
      %3190 = vmatpush1.msra.mxu0 %v854
      %3191 = vmatprep.subr.mxu0 0.0
      %3192 = vmatpush1.msra.mxu0 %v857
      %3193 = vmatprep.subr.mxu0 0.0
      %3194 = vmatpush1.msra.mxu0 %v860
      %3195 = vmatprep.subr.mxu0 0.0
      %3196 = vmatpush1.msra.mxu0 %v863
      %3197 = vmatprep.subr.mxu0 0.0
      %3198 = vmatpush1.msra.mxu0 %v866
      %3199 = vmatprep.subr.mxu0 0.0
      %3200 = vmatpush1.msra.mxu0 %v869
      %3201 = vmatprep.subr.mxu0 0.0
      %3202 = vmatpush1.msra.mxu0 %v872
      %3203 = vmatprep.subr.mxu0 0.0
      %3204 = vmatpush1.msra.mxu0 %v875
      %3205 = vmatprep.subr.mxu0 0.0
      %3206 = vmatpush1.msra.mxu0 %v878
      %3207 = vmatprep.subr.mxu0 0.0
      %3208 = vmatpush1.msra.mxu0 %v881
      %3209 = vmatprep.subr.mxu0 0.0
      %3210 = vmatpush1.msra.mxu0 %v884
      %3211 = vmatprep.subr.mxu0 0.0
      %3212 = vmatpush1.msra.mxu0 %v887
      %3213 = vmatprep.subr.mxu0 0.0
      %3214 = vmatpush1.msra.mxu0 %v890
      %3215 = vmatprep.subr.mxu0 0.0
      %3216 = vmatpush1.msra.mxu0 %v893
      %3217 = vmatprep.subr.mxu0 0.0
      %3218 = vmatpush1.msra.mxu0 %v896
      %3219 = vmatprep.subr.mxu0 0.0
      %3220 = vmatpush1.msra.mxu0 %v899
      %3221 = vmatprep.subr.mxu0 0.0
      %3222 = vmatpush1.msra.mxu0 %v902
      %3223 = vmatprep.subr.mxu0 0.0
      %3224 = vmatpush1.msra.mxu0 %v905
      %3225 = vmatprep.subr.mxu0 0.0
      %3226 = vmatpush1.msra.mxu0 %v908
      %3227 = vmatprep.subr.mxu0 0.0
      %3228 = vmatpush1.msra.mxu0 %v911
      %3229 = vmatprep.subr.mxu0 0.0
      %3230 = vmatpush1.msra.mxu0 %v914
      %3231 = vmatprep.subr.mxu0 0.0
      %3232 = vmatpush1.msra.mxu0 %v917
      %3233 = vmatprep.subr.mxu0 0.0
      %3234 = vmatpush1.msra.mxu0 %v920
      %3235 = vmatprep.mubr.f32.mxu0 %v3099
      %3236 = vmatmul.mubr.f32.gmra.mrb[0].mxu0 %v3098
      %v3237 = vpop.f32.mrb[0].mxu0
      %v3238 = vadd.f32 0.0, %v3237
      %v3239 = vpop.f32.mrb[0].mxu0
      %3240 = vdwg.mxu0
      %v3241 = vld [vmem:[%s11] sm:$0xf]
      %s3242 = scalar_lea.vmem %s11, 4
      %v3243 = vld [vmem:[%s3242] sm:$0xf]
      %3247 = vrot.lane.b32.xlu0 %v3167, 127
      %v3248 = vpop.permute.xlu0 %3247
      %3249 = vrot.lane.b32.xlu0 %v3169, 127
      %v3250 = vpop.permute.xlu0 %3249
      %3251 = vrot.lane.b32.xlu0 %v3238, 127
      %v3252 = vpop.permute.xlu0 %3251
      %v3253 = vsel %vm1077, %v3248, %v3250
      %v3254 = vsel %vm1077, %v3250, %v3252
      %v3256 = vsel %vm1080, %v3243, 0
      %v3258 = vsel %vm1084, %v3253, 0
      %v3260 = vsel %vm1084, %v3254, 0
      %v3262 = vsel %vm1084, %v3252, 0
      %3264 = vmatprep.subr.mxu0 %v3260
      %3265 = vmatpush1.msra.mxu0 %v3258
      %3266 = vmatprep.subr.mxu0 0.0
      %3267 = vmatpush1.msra.mxu0 0.0
      %3268 = vmatprep.subr.mxu0 0.0
      %3269 = vmatpush1.msra.mxu0 0.0
      %3270 = vmatprep.subr.mxu0 0.0
      %3271 = vmatpush1.msra.mxu0 0.0
      %3272 = vmatprep.subr.mxu0 0.0
      %3273 = vmatpush1.msra.mxu0 0.0
      %3274 = vmatprep.subr.mxu0 0.0
      %3275 = vmatpush1.msra.mxu0 0.0
      %3276 = vmatprep.subr.mxu0 0.0
      %3277 = vmatpush1.msra.mxu0 0.0
      %3278 = vmatprep.subr.mxu0 0.0
      %3279 = vmatpush1.msra.mxu0 0.0
      %3280 = vmatprep.subr.mxu0 0.0
      %3281 = vmatpush1.msra.mxu0 0.0
      %3282 = vmatprep.subr.mxu0 0.0
      %3283 = vmatpush1.msra.mxu0 0.0
      %3284 = vmatprep.subr.mxu0 0.0
      %3285 = vmatpush1.msra.mxu0 0.0
      %3286 = vmatprep.subr.mxu0 0.0
      %3287 = vmatpush1.msra.mxu0 0.0
      %3288 = vmatprep.subr.mxu0 0.0
      %3289 = vmatpush1.msra.mxu0 0.0
      %3290 = vmatprep.subr.mxu0 0.0
      %3291 = vmatpush1.msra.mxu0 0.0
      %3292 = vmatprep.subr.mxu0 0.0
      %3293 = vmatpush1.msra.mxu0 0.0
      %3294 = vmatprep.subr.mxu0 0.0
      %3295 = vmatpush1.msra.mxu0 0.0
      %3296 = vmatprep.subr.mxu0 0.0
      %3297 = vmatpush1.msra.mxu0 0.0
      %3298 = vmatprep.subr.mxu0 0.0
      %3299 = vmatpush1.msra.mxu0 0.0
      %3300 = vmatprep.subr.mxu0 0.0
      %3301 = vmatpush1.msra.mxu0 0.0
      %3302 = vmatprep.subr.mxu0 0.0
      %3303 = vmatpush1.msra.mxu0 0.0
      %3304 = vmatprep.subr.mxu0 0.0
      %3305 = vmatpush1.msra.mxu0 0.0
      %3306 = vmatprep.subr.mxu0 0.0
      %3307 = vmatpush1.msra.mxu0 0.0
      %3308 = vmatprep.subr.mxu0 0.0
      %3309 = vmatpush1.msra.mxu0 0.0
      %3310 = vmatprep.subr.mxu0 0.0
      %3311 = vmatpush1.msra.mxu0 0.0
      %3312 = vmatprep.subr.mxu0 0.0
      %3313 = vmatpush1.msra.mxu0 0.0
      %3314 = vmatprep.subr.mxu0 0.0
      %3315 = vmatpush1.msra.mxu0 0.0
      %3316 = vmatprep.subr.mxu0 0.0
      %3317 = vmatpush1.msra.mxu0 0.0
      %3318 = vmatprep.subr.mxu0 0.0
      %3319 = vmatpush1.msra.mxu0 0.0
      %3320 = vmatprep.subr.mxu0 0.0
      %3321 = vmatpush1.msra.mxu0 0.0
      %3322 = vmatprep.subr.mxu0 0.0
      %3323 = vmatpush1.msra.mxu0 0.0
      %3324 = vmatprep.subr.mxu0 0.0
      %3325 = vmatpush1.msra.mxu0 0.0
      %3326 = vmatprep.subr.mxu0 0.0
      %3327 = vmatpush1.msra.mxu0 0.0
      %3328 = vmatprep.mubr.f32.mxu0 0.0
      %3329 = vmatmul.mubr.f32.gmra.mrb[0].mxu0 %v3256
      %v3330 = vpop.f32.mrb[0].mxu0
      %v3331 = vadd.f32 0.0, %v3330
      %v3332 = vpop.f32.mrb[0].mxu0
      %v3333 = vadd.f32 0.0, %v3332
      %3334 = vdwg.mxu0
      %3335 = vmatprep.subr.mxu0 0.0
      %3336 = vmatpush1.msra.mxu0 %v3262
      %3337 = vmatprep.subr.mxu0 0.0
      %3338 = vmatpush1.msra.mxu0 0.0
      %3339 = vmatprep.subr.mxu0 0.0
      %3340 = vmatpush1.msra.mxu0 0.0
      %3341 = vmatprep.subr.mxu0 0.0
      %3342 = vmatpush1.msra.mxu0 0.0
      %3343 = vmatprep.subr.mxu0 0.0
      %3344 = vmatpush1.msra.mxu0 0.0
      %3345 = vmatprep.subr.mxu0 0.0
      %3346 = vmatpush1.msra.mxu0 0.0
      %3347 = vmatprep.subr.mxu0 0.0
      %3348 = vmatpush1.msra.mxu0 0.0
      %3349 = vmatprep.subr.mxu0 0.0
      %3350 = vmatpush1.msra.mxu0 0.0
      %3351 = vmatprep.subr.mxu0 0.0
      %3352 = vmatpush1.msra.mxu0 0.0
      %3353 = vmatprep.subr.mxu0 0.0
      %3354 = vmatpush1.msra.mxu0 0.0
      %3355 = vmatprep.subr.mxu0 0.0
      %3356 = vmatpush1.msra.mxu0 0.0
      %3357 = vmatprep.subr.mxu0 0.0
      %3358 = vmatpush1.msra.mxu0 0.0
      %3359 = vmatprep.subr.mxu0 0.0
      %3360 = vmatpush1.msra.mxu0 0.0
      %3361 = vmatprep.subr.mxu0 0.0
      %3362 = vmatpush1.msra.mxu0 0.0
      %3363 = vmatprep.subr.mxu0 0.0
      %3364 = vmatpush1.msra.mxu0 0.0
      %3365 = vmatprep.subr.mxu0 0.0
      %3366 = vmatpush1.msra.mxu0 0.0
      %3367 = vmatprep.subr.mxu0 0.0
      %3368 = vmatpush1.msra.mxu0 0.0
      %3369 = vmatprep.subr.mxu0 0.0
      %3370 = vmatpush1.msra.mxu0 0.0
      %3371 = vmatprep.subr.mxu0 0.0
      %3372 = vmatpush1.msra.mxu0 0.0
      %3373 = vmatprep.subr.mxu0 0.0
      %3374 = vmatpush1.msra.mxu0 0.0
      %3375 = vmatprep.subr.mxu0 0.0
      %3376 = vmatpush1.msra.mxu0 0.0
      %3377 = vmatprep.subr.mxu0 0.0
      %3378 = vmatpush1.msra.mxu0 0.0
      %3379 = vmatprep.subr.mxu0 0.0
      %3380 = vmatpush1.msra.mxu0 0.0
      %3381 = vmatprep.subr.mxu0 0.0
      %3382 = vmatpush1.msra.mxu0 0.0
      %3383 = vmatprep.subr.mxu0 0.0
      %3384 = vmatpush1.msra.mxu0 0.0
      %3385 = vmatprep.subr.mxu0 0.0
      %3386 = vmatpush1.msra.mxu0 0.0
      %3387 = vmatprep.subr.mxu0 0.0
      %3388 = vmatpush1.msra.mxu0 0.0
      %3389 = vmatprep.subr.mxu0 0.0
      %3390 = vmatpush1.msra.mxu0 0.0
      %3391 = vmatprep.subr.mxu0 0.0
      %3392 = vmatpush1.msra.mxu0 0.0
      %3393 = vmatprep.subr.mxu0 0.0
      %3394 = vmatpush1.msra.mxu0 0.0
      %3395 = vmatprep.subr.mxu0 0.0
      %3396 = vmatpush1.msra.mxu0 0.0
      %3397 = vmatprep.subr.mxu0 0.0
      %3398 = vmatpush1.msra.mxu0 0.0
      %3399 = vmatprep.mubr.f32.mxu0 0.0
      %3400 = vmatmul.mubr.f32.gmra.mrb[0].mxu0 %v3256
      %v3401 = vpop.f32.mrb[0].mxu0
      %v3402 = vadd.f32 0.0, %v3401
      %v3403 = vpop.f32.mrb[0].mxu0
      %3404 = vdwg.mxu0
      %v3406 = vsel %vm1080, %v3241, 0
      %v3408 = vsel %vm1084, %v3167, 0
      %v3410 = vsel %vm1084, %v3169, 0
      %v3412 = vsel %vm1084, %v3238, 0
      %3414 = vmatprep.subr.mxu0 %v3410
      %3415 = vmatpush1.msra.mxu0 %v3408
      %3416 = vmatprep.subr.mxu0 0.0
      %3417 = vmatpush1.msra.mxu0 0.0
      %3418 = vmatprep.subr.mxu0 0.0
      %3419 = vmatpush1.msra.mxu0 0.0
      %3420 = vmatprep.subr.mxu0 0.0
      %3421 = vmatpush1.msra.mxu0 0.0
      %3422 = vmatprep.subr.mxu0 0.0
      %3423 = vmatpush1.msra.mxu0 0.0
      %3424 = vmatprep.subr.mxu0 0.0
      %3425 = vmatpush1.msra.mxu0 0.0
      %3426 = vmatprep.subr.mxu0 0.0
      %3427 = vmatpush1.msra.mxu0 0.0
      %3428 = vmatprep.subr.mxu0 0.0
      %3429 = vmatpush1.msra.mxu0 0.0
      %3430 = vmatprep.subr.mxu0 0.0
      %3431 = vmatpush1.msra.mxu0 0.0
      %3432 = vmatprep.subr.mxu0 0.0
      %3433 = vmatpush1.msra.mxu0 0.0
      %3434 = vmatprep.subr.mxu0 0.0
      %3435 = vmatpush1.msra.mxu0 0.0
      %3436 = vmatprep.subr.mxu0 0.0
      %3437 = vmatpush1.msra.mxu0 0.0
      %3438 = vmatprep.subr.mxu0 0.0
      %3439 = vmatpush1.msra.mxu0 0.0
      %3440 = vmatprep.subr.mxu0 0.0
      %3441 = vmatpush1.msra.mxu0 0.0
      %3442 = vmatprep.subr.mxu0 0.0
      %3443 = vmatpush1.msra.mxu0 0.0
      %3444 = vmatprep.subr.mxu0 0.0
      %3445 = vmatpush1.msra.mxu0 0.0
      %3446 = vmatprep.subr.mxu0 0.0
      %3447 = vmatpush1.msra.mxu0 0.0
      %3448 = vmatprep.subr.mxu0 0.0
      %3449 = vmatpush1.msra.mxu0 0.0
      %3450 = vmatprep.subr.mxu0 0.0
      %3451 = vmatpush1.msra.mxu0 0.0
      %3452 = vmatprep.subr.mxu0 0.0
      %3453 = vmatpush1.msra.mxu0 0.0
      %3454 = vmatprep.subr.mxu0 0.0
      %3455 = vmatpush1.msra.mxu0 0.0
      %3456 = vmatprep.subr.mxu0 0.0
      %3457 = vmatpush1.msra.mxu0 0.0
      %3458 = vmatprep.subr.mxu0 0.0
      %3459 = vmatpush1.msra.mxu0 0.0
      %3460 = vmatprep.subr.mxu0 0.0
      %3461 = vmatpush1.msra.mxu0 0.0
      %3462 = vmatprep.subr.mxu0 0.0
      %3463 = vmatpush1.msra.mxu0 0.0
      %3464 = vmatprep.subr.mxu0 0.0
      %3465 = vmatpush1.msra.mxu0 0.0
      %3466 = vmatprep.subr.mxu0 0.0
      %3467 = vmatpush1.msra.mxu0 0.0
      %3468 = vmatprep.subr.mxu0 0.0
      %3469 = vmatpush1.msra.mxu0 0.0
      %3470 = vmatprep.subr.mxu0 0.0
      %3471 = vmatpush1.msra.mxu0 0.0
      %3472 = vmatprep.subr.mxu0 0.0
      %3473 = vmatpush1.msra.mxu0 0.0
      %3474 = vmatprep.subr.mxu0 0.0
      %3475 = vmatpush1.msra.mxu0 0.0
      %3476 = vmatprep.subr.mxu0 0.0
      %3477 = vmatpush1.msra.mxu0 0.0
      %3478 = vmatprep.mubr.f32.mxu0 0.0
      %3479 = vmatmul.mubr.f32.gmra.mrb[0].mxu0 %v3406
      %v3480 = vpop.f32.mrb[0].mxu0
      %v3481 = vadd.f32 %v3331, %v3480
      %v3482 = vpop.f32.mrb[0].mxu0
      %v3483 = vadd.f32 %v3333, %v3482
      %3484 = vdwg.mxu0
      %3485 = vmatprep.subr.mxu0 0.0
      %3486 = vmatpush1.msra.mxu0 %v3412
      %3487 = vmatprep.subr.mxu0 0.0
      %3488 = vmatpush1.msra.mxu0 0.0
      %3489 = vmatprep.subr.mxu0 0.0
      %3490 = vmatpush1.msra.mxu0 0.0
      %3491 = vmatprep.subr.mxu0 0.0
      %3492 = vmatpush1.msra.mxu0 0.0
      %3493 = vmatprep.subr.mxu0 0.0
      %3494 = vmatpush1.msra.mxu0 0.0
      %3495 = vmatprep.subr.mxu0 0.0
      %3496 = vmatpush1.msra.mxu0 0.0
      %3497 = vmatprep.subr.mxu0 0.0
      %3498 = vmatpush1.msra.mxu0 0.0
      %3499 = vmatprep.subr.mxu0 0.0
      %3500 = vmatpush1.msra.mxu0 0.0
      %3501 = vmatprep.subr.mxu0 0.0
      %3502 = vmatpush1.msra.mxu0 0.0
      %3503 = vmatprep.subr.mxu0 0.0
      %3504 = vmatpush1.msra.mxu0 0.0
      %3505 = vmatprep.subr.mxu0 0.0
      %3506 = vmatpush1.msra.mxu0 0.0
      %3507 = vmatprep.subr.mxu0 0.0
      %3508 = vmatpush1.msra.mxu0 0.0
      %3509 = vmatprep.subr.mxu0 0.0
      %3510 = vmatpush1.msra.mxu0 0.0
      %3511 = vmatprep.subr.mxu0 0.0
      %3512 = vmatpush1.msra.mxu0 0.0
      %3513 = vmatprep.subr.mxu0 0.0
      %3514 = vmatpush1.msra.mxu0 0.0
      %3515 = vmatprep.subr.mxu0 0.0
      %3516 = vmatpush1.msra.mxu0 0.0
      %3517 = vmatprep.subr.mxu0 0.0
      %3518 = vmatpush1.msra.mxu0 0.0
      %3519 = vmatprep.subr.mxu0 0.0
      %3520 = vmatpush1.msra.mxu0 0.0
      %3521 = vmatprep.subr.mxu0 0.0
      %3522 = vmatpush1.msra.mxu0 0.0
      %3523 = vmatprep.subr.mxu0 0.0
      %3524 = vmatpush1.msra.mxu0 0.0
      %3525 = vmatprep.subr.mxu0 0.0
      %3526 = vmatpush1.msra.mxu0 0.0
      %3527 = vmatprep.subr.mxu0 0.0
      %3528 = vmatpush1.msra.mxu0 0.0
      %3529 = vmatprep.subr.mxu0 0.0
      %3530 = vmatpush1.msra.mxu0 0.0
      %3531 = vmatprep.subr.mxu0 0.0
      %3532 = vmatpush1.msra.mxu0 0.0
      %3533 = vmatprep.subr.mxu0 0.0
      %3534 = vmatpush1.msra.mxu0 0.0
      %3535 = vmatprep.subr.mxu0 0.0
      %3536 = vmatpush1.msra.mxu0 0.0
      %3537 = vmatprep.subr.mxu0 0.0
      %3538 = vmatpush1.msra.mxu0 0.0
      %3539 = vmatprep.subr.mxu0 0.0
      %3540 = vmatpush1.msra.mxu0 0.0
      %3541 = vmatprep.subr.mxu0 0.0
      %3542 = vmatpush1.msra.mxu0 0.0
      %3543 = vmatprep.subr.mxu0 0.0
      %3544 = vmatpush1.msra.mxu0 0.0
      %3545 = vmatprep.subr.mxu0 0.0
      %3546 = vmatpush1.msra.mxu0 0.0
      %3547 = vmatprep.subr.mxu0 0.0
      %3548 = vmatpush1.msra.mxu0 0.0
      %3549 = vmatprep.mubr.f32.mxu0 0.0
      %3550 = vmatmul.mubr.f32.gmra.mrb[0].mxu0 %v3406
      %v3551 = vpop.f32.mrb[0].mxu0
      %v3552 = vadd.f32 %v3402, %v3551
      %v3553 = vpop.f32.mrb[0].mxu0
      %3554 = vdwg.mxu0
      %s3555 = scalar_lea.vmem %s11, 8
      %v3556 = vld [vmem:[%s3555] sm:$0xf]
      %3557 = vrot.lane.b32.xlu0 %v3167, 126
      %v3558 = vpop.permute.xlu0 %3557
      %3559 = vrot.lane.b32.xlu0 %v3169, 126
      %v3560 = vpop.permute.xlu0 %3559
      %3561 = vrot.lane.b32.xlu0 %v3238, 126
      %v3562 = vpop.permute.xlu0 %3561
      %v3563 = vsel %vm1390, %v3558, %v3560
      %v3564 = vsel %vm1390, %v3560, %v3562
      %v3566 = vsel %vm1080, %v3556, 0
      %v3568 = vsel %vm1084, %v3563, 0
      %v3570 = vsel %vm1084, %v3564, 0
      %v3572 = vsel %vm1084, %v3562, 0
      %3574 = vmatprep.subr.mxu0 %v3570
      %3575 = vmatpush1.msra.mxu0 %v3568
      %3576 = vmatprep.subr.mxu0 0.0
      %3577 = vmatpush1.msra.mxu0 0.0
      %3578 = vmatprep.subr.mxu0 0.0
      %3579 = vmatpush1.msra.mxu0 0.0
      %3580 = vmatprep.subr.mxu0 0.0
      %3581 = vmatpush1.msra.mxu0 0.0
      %3582 = vmatprep.subr.mxu0 0.0
      %3583 = vmatpush1.msra.mxu0 0.0
      %3584 = vmatprep.subr.mxu0 0.0
      %3585 = vmatpush1.msra.mxu0 0.0
      %3586 = vmatprep.subr.mxu0 0.0
      %3587 = vmatpush1.msra.mxu0 0.0
      %3588 = vmatprep.subr.mxu0 0.0
      %3589 = vmatpush1.msra.mxu0 0.0
      %3590 = vmatprep.subr.mxu0 0.0
      %3591 = vmatpush1.msra.mxu0 0.0
      %3592 = vmatprep.subr.mxu0 0.0
      %3593 = vmatpush1.msra.mxu0 0.0
      %3594 = vmatprep.subr.mxu0 0.0
      %3595 = vmatpush1.msra.mxu0 0.0
      %3596 = vmatprep.subr.mxu0 0.0
      %3597 = vmatpush1.msra.mxu0 0.0
      %3598 = vmatprep.subr.mxu0 0.0
      %3599 = vmatpush1.msra.mxu0 0.0
      %3600 = vmatprep.subr.mxu0 0.0
      %3601 = vmatpush1.msra.mxu0 0.0
      %3602 = vmatprep.subr.mxu0 0.0
      %3603 = vmatpush1.msra.mxu0 0.0
      %3604 = vmatprep.subr.mxu0 0.0
      %3605 = vmatpush1.msra.mxu0 0.0
      %3606 = vmatprep.subr.mxu0 0.0
      %3607 = vmatpush1.msra.mxu0 0.0
      %3608 = vmatprep.subr.mxu0 0.0
      %3609 = vmatpush1.msra.mxu0 0.0
      %3610 = vmatprep.subr.mxu0 0.0
      %3611 = vmatpush1.msra.mxu0 0.0
      %3612 = vmatprep.subr.mxu0 0.0
      %3613 = vmatpush1.msra.mxu0 0.0
      %3614 = vmatprep.subr.mxu0 0.0
      %3615 = vmatpush1.msra.mxu0 0.0
      %3616 = vmatprep.subr.mxu0 0.0
      %3617 = vmatpush1.msra.mxu0 0.0
      %3618 = vmatprep.subr.mxu0 0.0
      %3619 = vmatpush1.msra.mxu0 0.0
      %3620 = vmatprep.subr.mxu0 0.0
      %3621 = vmatpush1.msra.mxu0 0.0
      %3622 = vmatprep.subr.mxu0 0.0
      %3623 = vmatpush1.msra.mxu0 0.0
      %3624 = vmatprep.subr.mxu0 0.0
      %3625 = vmatpush1.msra.mxu0 0.0
      %3626 = vmatprep.subr.mxu0 0.0
      %3627 = vmatpush1.msra.mxu0 0.0
      %3628 = vmatprep.subr.mxu0 0.0
      %3629 = vmatpush1.msra.mxu0 0.0
      %3630 = vmatprep.subr.mxu0 0.0
      %3631 = vmatpush1.msra.mxu0 0.0
      %3632 = vmatprep.subr.mxu0 0.0
      %3633 = vmatpush1.msra.mxu0 0.0
      %3634 = vmatprep.subr.mxu0 0.0
      %3635 = vmatpush1.msra.mxu0 0.0
      %3636 = vmatprep.subr.mxu0 0.0
      %3637 = vmatpush1.msra.mxu0 0.0
      %3638 = vmatprep.mubr.f32.mxu0 0.0
      %3639 = vmatmul.mubr.f32.gmra.mrb[0].mxu0 %v3566
      %v3640 = vpop.f32.mrb[0].mxu0
      %v3641 = vadd.f32 0.0, %v3640
      %v3642 = vpop.f32.mrb[0].mxu0
      %v3643 = vadd.f32 0.0, %v3642
      %3644 = vdwg.mxu0
      %3645 = vmatprep.subr.mxu0 0.0
      %3646 = vmatpush1.msra.mxu0 %v3572
      %3647 = vmatprep.subr.mxu0 0.0
      %3648 = vmatpush1.msra.mxu0 0.0
      %3649 = vmatprep.subr.mxu0 0.0
      %3650 = vmatpush1.msra.mxu0 0.0
      %3651 = vmatprep.subr.mxu0 0.0
      %3652 = vmatpush1.msra.mxu0 0.0
      %3653 = vmatprep.subr.mxu0 0.0
      %3654 = vmatpush1.msra.mxu0 0.0
      %3655 = vmatprep.subr.mxu0 0.0
      %3656 = vmatpush1.msra.mxu0 0.0
      %3657 = vmatprep.subr.mxu0 0.0
      %3658 = vmatpush1.msra.mxu0 0.0
      %3659 = vmatprep.subr.mxu0 0.0
      %3660 = vmatpush1.msra.mxu0 0.0
      %3661 = vmatprep.subr.mxu0 0.0
      %3662 = vmatpush1.msra.mxu0 0.0
      %3663 = vmatprep.subr.mxu0 0.0
      %3664 = vmatpush1.msra.mxu0 0.0
      %3665 = vmatprep.subr.mxu0 0.0
      %3666 = vmatpush1.msra.mxu0 0.0
      %3667 = vmatprep.subr.mxu0 0.0
      %3668 = vmatpush1.msra.mxu0 0.0
      %3669 = vmatprep.subr.mxu0 0.0
      %3670 = vmatpush1.msra.mxu0 0.0
      %3671 = vmatprep.subr.mxu0 0.0
      %3672 = vmatpush1.msra.mxu0 0.0
      %3673 = vmatprep.subr.mxu0 0.0
      %3674 = vmatpush1.msra.mxu0 0.0
      %3675 = vmatprep.subr.mxu0 0.0
      %3676 = vmatpush1.msra.mxu0 0.0
      %3677 = vmatprep.subr.mxu0 0.0
      %3678 = vmatpush1.msra.mxu0 0.0
      %3679 = vmatprep.subr.mxu0 0.0
      %3680 = vmatpush1.msra.mxu0 0.0
      %3681 = vmatprep.subr.mxu0 0.0
      %3682 = vmatpush1.msra.mxu0 0.0
      %3683 = vmatprep.subr.mxu0 0.0
      %3684 = vmatpush1.msra.mxu0 0.0
      %3685 = vmatprep.subr.mxu0 0.0
      %3686 = vmatpush1.msra.mxu0 0.0
      %3687 = vmatprep.subr.mxu0 0.0
      %3688 = vmatpush1.msra.mxu0 0.0
      %3689 = vmatprep.subr.mxu0 0.0
      %3690 = vmatpush1.msra.mxu0 0.0
      %3691 = vmatprep.subr.mxu0 0.0
      %3692 = vmatpush1.msra.mxu0 0.0
      %3693 = vmatprep.subr.mxu0 0.0
      %3694 = vmatpush1.msra.mxu0 0.0
      %3695 = vmatprep.subr.mxu0 0.0
      %3696 = vmatpush1.msra.mxu0 0.0
      %3697 = vmatprep.subr.mxu0 0.0
      %3698 = vmatpush1.msra.mxu0 0.0
      %3699 = vmatprep.subr.mxu0 0.0
      %3700 = vmatpush1.msra.mxu0 0.0
      %3701 = vmatprep.subr.mxu0 0.0
      %3702 = vmatpush1.msra.mxu0 0.0
      %3703 = vmatprep.subr.mxu0 0.0
      %3704 = vmatpush1.msra.mxu0 0.0
      %3705 = vmatprep.subr.mxu0 0.0
      %3706 = vmatpush1.msra.mxu0 0.0
      %3707 = vmatprep.subr.mxu0 0.0
      %3708 = vmatpush1.msra.mxu0 0.0
      %3709 = vmatprep.mubr.f32.mxu0 0.0
      %3710 = vmatmul.mubr.f32.gmra.mrb[0].mxu0 %v3566
      %v3711 = vpop.f32.mrb[0].mxu0
      %v3712 = vadd.f32 0.0, %v3711
      %v3713 = vpop.f32.mrb[0].mxu0
      %3714 = vdwg.mxu0
      %v3715 = vadd.f32 %v3481, %v3641
      %v3716 = vadd.f32 %v3483, %v3643
      %v3717 = vadd.f32 %v3552, %v3712
      %s3718 = scalar_lea.vmem %s11, 12
      %v3719 = vld [vmem:[%s3718] sm:$0xf]
      %3720 = vrot.lane.b32.xlu0 %v3167, 110
      %v3721 = vpop.permute.xlu0 %3720
      %3722 = vrot.lane.b32.xlu0 %v3169, 110
      %v3723 = vpop.permute.xlu0 %3722
      %3724 = vrot.lane.b32.xlu0 %v3238, 110
      %v3725 = vpop.permute.xlu0 %3724
      %v3726 = vsel %vm1554, %v3721, %v3723
      %v3727 = vsel %vm1554, %v3723, %v3725
      %v3729 = vsel %vm1080, %v3719, 0
      %v3731 = vsel %vm1084, %v3726, 0
      %v3733 = vsel %vm1084, %v3727, 0
      %v3735 = vsel %vm1084, %v3725, 0
      %3737 = vmatprep.subr.mxu0 %v3733
      %3738 = vmatpush1.msra.mxu0 %v3731
      %3739 = vmatprep.subr.mxu0 0.0
      %3740 = vmatpush1.msra.mxu0 0.0
      %3741 = vmatprep.subr.mxu0 0.0
      %3742 = vmatpush1.msra.mxu0 0.0
      %3743 = vmatprep.subr.mxu0 0.0
      %3744 = vmatpush1.msra.mxu0 0.0
      %3745 = vmatprep.subr.mxu0 0.0
      %3746 = vmatpush1.msra.mxu0 0.0
      %3747 = vmatprep.subr.mxu0 0.0
      %3748 = vmatpush1.msra.mxu0 0.0
      %3749 = vmatprep.subr.mxu0 0.0
      %3750 = vmatpush1.msra.mxu0 0.0
      %3751 = vmatprep.subr.mxu0 0.0
      %3752 = vmatpush1.msra.mxu0 0.0
      %3753 = vmatprep.subr.mxu0 0.0
      %3754 = vmatpush1.msra.mxu0 0.0
      %3755 = vmatprep.subr.mxu0 0.0
      %3756 = vmatpush1.msra.mxu0 0.0
      %3757 = vmatprep.subr.mxu0 0.0
      %3758 = vmatpush1.msra.mxu0 0.0
      %3759 = vmatprep.subr.mxu0 0.0
      %3760 = vmatpush1.msra.mxu0 0.0
      %3761 = vmatprep.subr.mxu0 0.0
      %3762 = vmatpush1.msra.mxu0 0.0
      %3763 = vmatprep.subr.mxu0 0.0
      %3764 = vmatpush1.msra.mxu0 0.0
      %3765 = vmatprep.subr.mxu0 0.0
      %3766 = vmatpush1.msra.mxu0 0.0
      %3767 = vmatprep.subr.mxu0 0.0
      %3768 = vmatpush1.msra.mxu0 0.0
      %3769 = vmatprep.subr.mxu0 0.0
      %3770 = vmatpush1.msra.mxu0 0.0
      %3771 = vmatprep.subr.mxu0 0.0
      %3772 = vmatpush1.msra.mxu0 0.0
      %3773 = vmatprep.subr.mxu0 0.0
      %3774 = vmatpush1.msra.mxu0 0.0
      %3775 = vmatprep.subr.mxu0 0.0
      %3776 = vmatpush1.msra.mxu0 0.0
      %3777 = vmatprep.subr.mxu0 0.0
      %3778 = vmatpush1.msra.mxu0 0.0
      %3779 = vmatprep.subr.mxu0 0.0
      %3780 = vmatpush1.msra.mxu0 0.0
      %3781 = vmatprep.subr.mxu0 0.0
      %3782 = vmatpush1.msra.mxu0 0.0
      %3783 = vmatprep.subr.mxu0 0.0
      %3784 = vmatpush1.msra.mxu0 0.0
      %3785 = vmatprep.subr.mxu0 0.0
      %3786 = vmatpush1.msra.mxu0 0.0
      %3787 = vmatprep.subr.mxu0 0.0
      %3788 = vmatpush1.msra.mxu0 0.0
      %3789 = vmatprep.subr.mxu0 0.0
      %3790 = vmatpush1.msra.mxu0 0.0
      %3791 = vmatprep.subr.mxu0 0.0
      %3792 = vmatpush1.msra.mxu0 0.0
      %3793 = vmatprep.subr.mxu0 0.0
      %3794 = vmatpush1.msra.mxu0 0.0
      %3795 = vmatprep.subr.mxu0 0.0
      %3796 = vmatpush1.msra.mxu0 0.0
      %3797 = vmatprep.subr.mxu0 0.0
      %3798 = vmatpush1.msra.mxu0 0.0
      %3799 = vmatprep.subr.mxu0 0.0
      %3800 = vmatpush1.msra.mxu0 0.0
      %3801 = vmatprep.mubr.f32.mxu0 0.0
      %3802 = vmatmul.mubr.f32.gmra.mrb[0].mxu0 %v3729
      %v3803 = vpop.f32.mrb[0].mxu0
      %v3804 = vadd.f32 0.0, %v3803
      %v3805 = vpop.f32.mrb[0].mxu0
      %v3806 = vadd.f32 0.0, %v3805
      %3807 = vdwg.mxu0
      %3808 = vmatprep.subr.mxu0 0.0
      %3809 = vmatpush1.msra.mxu0 %v3735
      %3810 = vmatprep.subr.mxu0 0.0
      %3811 = vmatpush1.msra.mxu0 0.0
      %3812 = vmatprep.subr.mxu0 0.0
      %3813 = vmatpush1.msra.mxu0 0.0
      %3814 = vmatprep.subr.mxu0 0.0
      %3815 = vmatpush1.msra.mxu0 0.0
      %3816 = vmatprep.subr.mxu0 0.0
      %3817 = vmatpush1.msra.mxu0 0.0
      %3818 = vmatprep.subr.mxu0 0.0
      %3819 = vmatpush1.msra.mxu0 0.0
      %3820 = vmatprep.subr.mxu0 0.0
      %3821 = vmatpush1.msra.mxu0 0.0
      %3822 = vmatprep.subr.mxu0 0.0
      %3823 = vmatpush1.msra.mxu0 0.0
      %3824 = vmatprep.subr.mxu0 0.0
      %3825 = vmatpush1.msra.mxu0 0.0
      %3826 = vmatprep.subr.mxu0 0.0
      %3827 = vmatpush1.msra.mxu0 0.0
      %3828 = vmatprep.subr.mxu0 0.0
      %3829 = vmatpush1.msra.mxu0 0.0
      %3830 = vmatprep.subr.mxu0 0.0
      %3831 = vmatpush1.msra.mxu0 0.0
      %3832 = vmatprep.subr.mxu0 0.0
      %3833 = vmatpush1.msra.mxu0 0.0
      %3834 = vmatprep.subr.mxu0 0.0
      %3835 = vmatpush1.msra.mxu0 0.0
      %3836 = vmatprep.subr.mxu0 0.0
      %3837 = vmatpush1.msra.mxu0 0.0
      %3838 = vmatprep.subr.mxu0 0.0
      %3839 = vmatpush1.msra.mxu0 0.0
      %3840 = vmatprep.subr.mxu0 0.0
      %3841 = vmatpush1.msra.mxu0 0.0
      %3842 = vmatprep.subr.mxu0 0.0
      %3843 = vmatpush1.msra.mxu0 0.0
      %3844 = vmatprep.subr.mxu0 0.0
      %3845 = vmatpush1.msra.mxu0 0.0
      %3846 = vmatprep.subr.mxu0 0.0
      %3847 = vmatpush1.msra.mxu0 0.0
      %3848 = vmatprep.subr.mxu0 0.0
      %3849 = vmatpush1.msra.mxu0 0.0
      %3850 = vmatprep.subr.mxu0 0.0
      %3851 = vmatpush1.msra.mxu0 0.0
      %3852 = vmatprep.subr.mxu0 0.0
      %3853 = vmatpush1.msra.mxu0 0.0
      %3854 = vmatprep.subr.mxu0 0.0
      %3855 = vmatpush1.msra.mxu0 0.0
      %3856 = vmatprep.subr.mxu0 0.0
      %3857 = vmatpush1.msra.mxu0 0.0
      %3858 = vmatprep.subr.mxu0 0.0
      %3859 = vmatpush1.msra.mxu0 0.0
      %3860 = vmatprep.subr.mxu0 0.0
      %3861 = vmatpush1.msra.mxu0 0.0
      %3862 = vmatprep.subr.mxu0 0.0
      %3863 = vmatpush1.msra.mxu0 0.0
      %3864 = vmatprep.subr.mxu0 0.0
      %3865 = vmatpush1.msra.mxu0 0.0
      %3866 = vmatprep.subr.mxu0 0.0
      %3867 = vmatpush1.msra.mxu0 0.0
      %3868 = vmatprep.subr.mxu0 0.0
      %3869 = vmatpush1.msra.mxu0 0.0
      %3870 = vmatprep.subr.mxu0 0.0
      %3871 = vmatpush1.msra.mxu0 0.0
      %3872 = vmatprep.mubr.f32.mxu0 0.0
      %3873 = vmatmul.mubr.f32.gmra.mrb[0].mxu0 %v3729
      %v3874 = vpop.f32.mrb[0].mxu0
      %v3875 = vadd.f32 0.0, %v3874
      %v3876 = vpop.f32.mrb[0].mxu0
      %3877 = vdwg.mxu0
      %v3878 = vadd.f32 %v3715, %v3804
      %v3879 = vadd.f32 %v3716, %v3806
      %v3880 = vadd.f32 %v3717, %v3875
      %s3881 = scalar_lea.vmem %s11, 16
      %v3882 = vld [vmem:[%s3881] sm:$0xf]
      %3883 = vrot.lane.b32.xlu0 %v3167, 109
      %v3884 = vpop.permute.xlu0 %3883
      %3885 = vrot.lane.b32.xlu0 %v3169, 109
      %v3886 = vpop.permute.xlu0 %3885
      %3887 = vrot.lane.b32.xlu0 %v3238, 109
      %v3888 = vpop.permute.xlu0 %3887
      %v3889 = vsel %vm1718, %v3884, %v3886
      %v3890 = vsel %vm1718, %v3886, %v3888
      %v3892 = vsel %vm1080, %v3882, 0
      %v3894 = vsel %vm1084, %v3889, 0
      %v3896 = vsel %vm1084, %v3890, 0
      %v3898 = vsel %vm1084, %v3888, 0
      %3900 = vmatprep.subr.mxu0 %v3896
      %3901 = vmatpush1.msra.mxu0 %v3894
      %3902 = vmatprep.subr.mxu0 0.0
      %3903 = vmatpush1.msra.mxu0 0.0
      %3904 = vmatprep.subr.mxu0 0.0
      %3905 = vmatpush1.msra.mxu0 0.0
      %3906 = vmatprep.subr.mxu0 0.0
      %3907 = vmatpush1.msra.mxu0 0.0
      %3908 = vmatprep.subr.mxu0 0.0
      %3909 = vmatpush1.msra.mxu0 0.0
      %3910 = vmatprep.subr.mxu0 0.0
      %3911 = vmatpush1.msra.mxu0 0.0
      %3912 = vmatprep.subr.mxu0 0.0
      %3913 = vmatpush1.msra.mxu0 0.0
      %3914 = vmatprep.subr.mxu0 0.0
      %3915 = vmatpush1.msra.mxu0 0.0
      %3916 = vmatprep.subr.mxu0 0.0
      %3917 = vmatpush1.msra.mxu0 0.0
      %3918 = vmatprep.subr.mxu0 0.0
      %3919 = vmatpush1.msra.mxu0 0.0
      %3920 = vmatprep.subr.mxu0 0.0
      %3921 = vmatpush1.msra.mxu0 0.0
      %3922 = vmatprep.subr.mxu0 0.0
      %3923 = vmatpush1.msra.mxu0 0.0
      %3924 = vmatprep.subr.mxu0 0.0
      %3925 = vmatpush1.msra.mxu0 0.0
      %3926 = vmatprep.subr.mxu0 0.0
      %3927 = vmatpush1.msra.mxu0 0.0
      %3928 = vmatprep.subr.mxu0 0.0
      %3929 = vmatpush1.msra.mxu0 0.0
      %3930 = vmatprep.subr.mxu0 0.0
      %3931 = vmatpush1.msra.mxu0 0.0
      %3932 = vmatprep.subr.mxu0 0.0
      %3933 = vmatpush1.msra.mxu0 0.0
      %3934 = vmatprep.subr.mxu0 0.0
      %3935 = vmatpush1.msra.mxu0 0.0
      %3936 = vmatprep.subr.mxu0 0.0
      %3937 = vmatpush1.msra.mxu0 0.0
      %3938 = vmatprep.subr.mxu0 0.0
      %3939 = vmatpush1.msra.mxu0 0.0
      %3940 = vmatprep.subr.mxu0 0.0
      %3941 = vmatpush1.msra.mxu0 0.0
      %3942 = vmatprep.subr.mxu0 0.0
      %3943 = vmatpush1.msra.mxu0 0.0
      %3944 = vmatprep.subr.mxu0 0.0
      %3945 = vmatpush1.msra.mxu0 0.0
      %3946 = vmatprep.subr.mxu0 0.0
      %3947 = vmatpush1.msra.mxu0 0.0
      %3948 = vmatprep.subr.mxu0 0.0
      %3949 = vmatpush1.msra.mxu0 0.0
      %3950 = vmatprep.subr.mxu0 0.0
      %3951 = vmatpush1.msra.mxu0 0.0
      %3952 = vmatprep.subr.mxu0 0.0
      %3953 = vmatpush1.msra.mxu0 0.0
      %3954 = vmatprep.subr.mxu0 0.0
      %3955 = vmatpush1.msra.mxu0 0.0
      %3956 = vmatprep.subr.mxu0 0.0
      %3957 = vmatpush1.msra.mxu0 0.0
      %3958 = vmatprep.subr.mxu0 0.0
      %3959 = vmatpush1.msra.mxu0 0.0
      %3960 = vmatprep.subr.mxu0 0.0
      %3961 = vmatpush1.msra.mxu0 0.0
      %3962 = vmatprep.subr.mxu0 0.0
      %3963 = vmatpush1.msra.mxu0 0.0
      %3964 = vmatprep.mubr.f32.mxu0 0.0
      %3965 = vmatmul.mubr.f32.gmra.mrb[0].mxu0 %v3892
      %v3966 = vpop.f32.mrb[0].mxu0
      %v3967 = vadd.f32 0.0, %v3966
      %v3968 = vpop.f32.mrb[0].mxu0
      %v3969 = vadd.f32 0.0, %v3968
      %3970 = vdwg.mxu0
      %3971 = vmatprep.subr.mxu0 0.0
      %3972 = vmatpush1.msra.mxu0 %v3898
      %3973 = vmatprep.subr.mxu0 0.0
      %3974 = vmatpush1.msra.mxu0 0.0
      %3975 = vmatprep.subr.mxu0 0.0
      %3976 = vmatpush1.msra.mxu0 0.0
      %3977 = vmatprep.subr.mxu0 0.0
      %3978 = vmatpush1.msra.mxu0 0.0
      %3979 = vmatprep.subr.mxu0 0.0
      %3980 = vmatpush1.msra.mxu0 0.0
      %3981 = vmatprep.subr.mxu0 0.0
      %3982 = vmatpush1.msra.mxu0 0.0
      %3983 = vmatprep.subr.mxu0 0.0
      %3984 = vmatpush1.msra.mxu0 0.0
      %3985 = vmatprep.subr.mxu0 0.0
      %3986 = vmatpush1.msra.mxu0 0.0
      %3987 = vmatprep.subr.mxu0 0.0
      %3988 = vmatpush1.msra.mxu0 0.0
      %3989 = vmatprep.subr.mxu0 0.0
      %3990 = vmatpush1.msra.mxu0 0.0
      %3991 = vmatprep.subr.mxu0 0.0
      %3992 = vmatpush1.msra.mxu0 0.0
      %3993 = vmatprep.subr.mxu0 0.0
      %3994 = vmatpush1.msra.mxu0 0.0
      %3995 = vmatprep.subr.mxu0 0.0
      %3996 = vmatpush1.msra.mxu0 0.0
      %3997 = vmatprep.subr.mxu0 0.0
      %3998 = vmatpush1.msra.mxu0 0.0
      %3999 = vmatprep.subr.mxu0 0.0
      %4000 = vmatpush1.msra.mxu0 0.0
      %4001 = vmatprep.subr.mxu0 0.0
      %4002 = vmatpush1.msra.mxu0 0.0
      %4003 = vmatprep.subr.mxu0 0.0
      %4004 = vmatpush1.msra.mxu0 0.0
      %4005 = vmatprep.subr.mxu0 0.0
      %4006 = vmatpush1.msra.mxu0 0.0
      %4007 = vmatprep.subr.mxu0 0.0
      %4008 = vmatpush1.msra.mxu0 0.0
      %4009 = vmatprep.subr.mxu0 0.0
      %4010 = vmatpush1.msra.mxu0 0.0
      %4011 = vmatprep.subr.mxu0 0.0
      %4012 = vmatpush1.msra.mxu0 0.0
      %4013 = vmatprep.subr.mxu0 0.0
      %4014 = vmatpush1.msra.mxu0 0.0
      %4015 = vmatprep.subr.mxu0 0.0
      %4016 = vmatpush1.msra.mxu0 0.0
      %4017 = vmatprep.subr.mxu0 0.0
      %4018 = vmatpush1.msra.mxu0 0.0
      %4019 = vmatprep.subr.mxu0 0.0
      %4020 = vmatpush1.msra.mxu0 0.0
      %4021 = vmatprep.subr.mxu0 0.0
      %4022 = vmatpush1.msra.mxu0 0.0
      %4023 = vmatprep.subr.mxu0 0.0
      %4024 = vmatpush1.msra.mxu0 0.0
      %4025 = vmatprep.subr.mxu0 0.0
      %4026 = vmatpush1.msra.mxu0 0.0
      %4027 = vmatprep.subr.mxu0 0.0
      %4028 = vmatpush1.msra.mxu0 0.0
      %4029 = vmatprep.subr.mxu0 0.0
      %4030 = vmatpush1.msra.mxu0 0.0
      %4031 = vmatprep.subr.mxu0 0.0
      %4032 = vmatpush1.msra.mxu0 0.0
      %4033 = vmatprep.subr.mxu0 0.0
      %4034 = vmatpush1.msra.mxu0 0.0
      %4035 = vmatprep.mubr.f32.mxu0 0.0
      %4036 = vmatmul.mubr.f32.gmra.mrb[0].mxu0 %v3892
      %v4037 = vpop.f32.mrb[0].mxu0
      %v4038 = vadd.f32 0.0, %v4037
      %v4039 = vpop.f32.mrb[0].mxu0
      %4040 = vdwg.mxu0
      %v4041 = vadd.f32 %v3878, %v3967
      %v4042 = vadd.f32 %v3879, %v3969
      %v4043 = vadd.f32 %v3880, %v4038
      %s4044 = scalar_lea.vmem %s11, 20
      %v4045 = vld [vmem:[%s4044] sm:$0xf]
      %4046 = vrot.lane.b32.xlu0 %v3167, 108
      %v4047 = vpop.permute.xlu0 %4046
      %4048 = vrot.lane.b32.xlu0 %v3169, 108
      %v4049 = vpop.permute.xlu0 %4048
      %4050 = vrot.lane.b32.xlu0 %v3238, 108
      %v4051 = vpop.permute.xlu0 %4050
      %v4052 = vsel %vm1882, %v4047, %v4049
      %v4053 = vsel %vm1882, %v4049, %v4051
      %v4055 = vsel %vm1080, %v4045, 0
      %v4057 = vsel %vm1084, %v4052, 0
      %v4059 = vsel %vm1084, %v4053, 0
      %v4061 = vsel %vm1084, %v4051, 0
      %4063 = vmatprep.subr.mxu0 %v4059
      %4064 = vmatpush1.msra.mxu0 %v4057
      %4065 = vmatprep.subr.mxu0 0.0
      %4066 = vmatpush1.msra.mxu0 0.0
      %4067 = vmatprep.subr.mxu0 0.0
      %4068 = vmatpush1.msra.mxu0 0.0
      %4069 = vmatprep.subr.mxu0 0.0
      %4070 = vmatpush1.msra.mxu0 0.0
      %4071 = vmatprep.subr.mxu0 0.0
      %4072 = vmatpush1.msra.mxu0 0.0
      %4073 = vmatprep.subr.mxu0 0.0
      %4074 = vmatpush1.msra.mxu0 0.0
      %4075 = vmatprep.subr.mxu0 0.0
      %4076 = vmatpush1.msra.mxu0 0.0
      %4077 = vmatprep.subr.mxu0 0.0
      %4078 = vmatpush1.msra.mxu0 0.0
      %4079 = vmatprep.subr.mxu0 0.0
      %4080 = vmatpush1.msra.mxu0 0.0
      %4081 = vmatprep.subr.mxu0 0.0
      %4082 = vmatpush1.msra.mxu0 0.0
      %4083 = vmatprep.subr.mxu0 0.0
      %4084 = vmatpush1.msra.mxu0 0.0
      %4085 = vmatprep.subr.mxu0 0.0
      %4086 = vmatpush1.msra.mxu0 0.0
      %4087 = vmatprep.subr.mxu0 0.0
      %4088 = vmatpush1.msra.mxu0 0.0
      %4089 = vmatprep.subr.mxu0 0.0
      %4090 = vmatpush1.msra.mxu0 0.0
      %4091 = vmatprep.subr.mxu0 0.0
      %4092 = vmatpush1.msra.mxu0 0.0
      %4093 = vmatprep.subr.mxu0 0.0
      %4094 = vmatpush1.msra.mxu0 0.0
      %4095 = vmatprep.subr.mxu0 0.0
      %4096 = vmatpush1.msra.mxu0 0.0
      %4097 = vmatprep.subr.mxu0 0.0
      %4098 = vmatpush1.msra.mxu0 0.0
      %4099 = vmatprep.subr.mxu0 0.0
      %4100 = vmatpush1.msra.mxu0 0.0
      %4101 = vmatprep.subr.mxu0 0.0
      %4102 = vmatpush1.msra.mxu0 0.0
      %4103 = vmatprep.subr.mxu0 0.0
      %4104 = vmatpush1.msra.mxu0 0.0
      %4105 = vmatprep.subr.mxu0 0.0
      %4106 = vmatpush1.msra.mxu0 0.0
      %4107 = vmatprep.subr.mxu0 0.0
      %4108 = vmatpush1.msra.mxu0 0.0
      %4109 = vmatprep.subr.mxu0 0.0
      %4110 = vmatpush1.msra.mxu0 0.0
      %4111 = vmatprep.subr.mxu0 0.0
      %4112 = vmatpush1.msra.mxu0 0.0
      %4113 = vmatprep.subr.mxu0 0.0
      %4114 = vmatpush1.msra.mxu0 0.0
      %4115 = vmatprep.subr.mxu0 0.0
      %4116 = vmatpush1.msra.mxu0 0.0
      %4117 = vmatprep.subr.mxu0 0.0
      %4118 = vmatpush1.msra.mxu0 0.0
      %4119 = vmatprep.subr.mxu0 0.0
      %4120 = vmatpush1.msra.mxu0 0.0
      %4121 = vmatprep.subr.mxu0 0.0
      %4122 = vmatpush1.msra.mxu0 0.0
      %4123 = vmatprep.subr.mxu0 0.0
      %4124 = vmatpush1.msra.mxu0 0.0
      %4125 = vmatprep.subr.mxu0 0.0
      %4126 = vmatpush1.msra.mxu0 0.0
      %4127 = vmatprep.mubr.f32.mxu0 0.0
      %4128 = vmatmul.mubr.f32.gmra.mrb[0].mxu0 %v4055
      %v4129 = vpop.f32.mrb[0].mxu0
      %v4130 = vadd.f32 0.0, %v4129
      %v4131 = vpop.f32.mrb[0].mxu0
      %v4132 = vadd.f32 0.0, %v4131
      %4133 = vdwg.mxu0
      %4134 = vmatprep.subr.mxu0 0.0
      %4135 = vmatpush1.msra.mxu0 %v4061
      %4136 = vmatprep.subr.mxu0 0.0
      %4137 = vmatpush1.msra.mxu0 0.0
      %4138 = vmatprep.subr.mxu0 0.0
      %4139 = vmatpush1.msra.mxu0 0.0
      %4140 = vmatprep.subr.mxu0 0.0
      %4141 = vmatpush1.msra.mxu0 0.0
      %4142 = vmatprep.subr.mxu0 0.0
      %4143 = vmatpush1.msra.mxu0 0.0
      %4144 = vmatprep.subr.mxu0 0.0
      %4145 = vmatpush1.msra.mxu0 0.0
      %4146 = vmatprep.subr.mxu0 0.0
      %4147 = vmatpush1.msra.mxu0 0.0
      %4148 = vmatprep.subr.mxu0 0.0
      %4149 = vmatpush1.msra.mxu0 0.0
      %4150 = vmatprep.subr.mxu0 0.0
      %4151 = vmatpush1.msra.mxu0 0.0
      %4152 = vmatprep.subr.mxu0 0.0
      %4153 = vmatpush1.msra.mxu0 0.0
      %4154 = vmatprep.subr.mxu0 0.0
      %4155 = vmatpush1.msra.mxu0 0.0
      %4156 = vmatprep.subr.mxu0 0.0
      %4157 = vmatpush1.msra.mxu0 0.0
      %4158 = vmatprep.subr.mxu0 0.0
      %4159 = vmatpush1.msra.mxu0 0.0
      %4160 = vmatprep.subr.mxu0 0.0
      %4161 = vmatpush1.msra.mxu0 0.0
      %4162 = vmatprep.subr.mxu0 0.0
      %4163 = vmatpush1.msra.mxu0 0.0
      %4164 = vmatprep.subr.mxu0 0.0
      %4165 = vmatpush1.msra.mxu0 0.0
      %4166 = vmatprep.subr.mxu0 0.0
      %4167 = vmatpush1.msra.mxu0 0.0
      %4168 = vmatprep.subr.mxu0 0.0
      %4169 = vmatpush1.msra.mxu0 0.0
      %4170 = vmatprep.subr.mxu0 0.0
      %4171 = vmatpush1.msra.mxu0 0.0
      %4172 = vmatprep.subr.mxu0 0.0
      %4173 = vmatpush1.msra.mxu0 0.0
      %4174 = vmatprep.subr.mxu0 0.0
      %4175 = vmatpush1.msra.mxu0 0.0
      %4176 = vmatprep.subr.mxu0 0.0
      %4177 = vmatpush1.msra.mxu0 0.0
      %4178 = vmatprep.subr.mxu0 0.0
      %4179 = vmatpush1.msra.mxu0 0.0
      %4180 = vmatprep.subr.mxu0 0.0
      %4181 = vmatpush1.msra.mxu0 0.0
      %4182 = vmatprep.subr.mxu0 0.0
      %4183 = vmatpush1.msra.mxu0 0.0
      %4184 = vmatprep.subr.mxu0 0.0
      %4185 = vmatpush1.msra.mxu0 0.0
      %4186 = vmatprep.subr.mxu0 0.0
      %4187 = vmatpush1.msra.mxu0 0.0
      %4188 = vmatprep.subr.mxu0 0.0
      %4189 = vmatpush1.msra.mxu0 0.0
      %4190 = vmatprep.subr.mxu0 0.0
      %4191 = vmatpush1.msra.mxu0 0.0
      %4192 = vmatprep.subr.mxu0 0.0
      %4193 = vmatpush1.msra.mxu0 0.0
      %4194 = vmatprep.subr.mxu0 0.0
      %4195 = vmatpush1.msra.mxu0 0.0
      %4196 = vmatprep.subr.mxu0 0.0
      %4197 = vmatpush1.msra.mxu0 0.0
      %4198 = vmatprep.mubr.f32.mxu0 0.0
      %4199 = vmatmul.mubr.f32.gmra.mrb[0].mxu0 %v4055
      %v4200 = vpop.f32.mrb[0].mxu0
      %v4201 = vadd.f32 0.0, %v4200
      %v4202 = vpop.f32.mrb[0].mxu0
      %4203 = vdwg.mxu0
      %v4204 = vadd.f32 %v4041, %v4130
      %v4205 = vadd.f32 %v4042, %v4132
      %v4206 = vadd.f32 %v4043, %v4201
      %s4207 = scalar_lea.vmem %s11, 24
      %v4208 = vld [vmem:[%s4207] sm:$0xf]
      %4209 = vrot.lane.b32.xlu0 %v3167, 92
      %v4210 = vpop.permute.xlu0 %4209
      %4211 = vrot.lane.b32.xlu0 %v3169, 92
      %v4212 = vpop.permute.xlu0 %4211
      %4213 = vrot.lane.b32.xlu0 %v3238, 92
      %v4214 = vpop.permute.xlu0 %4213
      %v4215 = vsel %vm2046, %v4210, %v4212
      %v4216 = vsel %vm2046, %v4212, %v4214
      %v4218 = vsel %vm1080, %v4208, 0
      %v4220 = vsel %vm1084, %v4215, 0
      %v4222 = vsel %vm1084, %v4216, 0
      %v4224 = vsel %vm1084, %v4214, 0
      %4226 = vmatprep.subr.mxu0 %v4222
      %4227 = vmatpush1.msra.mxu0 %v4220
      %4228 = vmatprep.subr.mxu0 0.0
      %4229 = vmatpush1.msra.mxu0 0.0
      %4230 = vmatprep.subr.mxu0 0.0
      %4231 = vmatpush1.msra.mxu0 0.0
      %4232 = vmatprep.subr.mxu0 0.0
      %4233 = vmatpush1.msra.mxu0 0.0
      %4234 = vmatprep.subr.mxu0 0.0
      %4235 = vmatpush1.msra.mxu0 0.0
      %4236 = vmatprep.subr.mxu0 0.0
      %4237 = vmatpush1.msra.mxu0 0.0
      %4238 = vmatprep.subr.mxu0 0.0
      %4239 = vmatpush1.msra.mxu0 0.0
      %4240 = vmatprep.subr.mxu0 0.0
      %4241 = vmatpush1.msra.mxu0 0.0
      %4242 = vmatprep.subr.mxu0 0.0
      %4243 = vmatpush1.msra.mxu0 0.0
      %4244 = vmatprep.subr.mxu0 0.0
      %4245 = vmatpush1.msra.mxu0 0.0
      %4246 = vmatprep.subr.mxu0 0.0
      %4247 = vmatpush1.msra.mxu0 0.0
      %4248 = vmatprep.subr.mxu0 0.0
      %4249 = vmatpush1.msra.mxu0 0.0
      %4250 = vmatprep.subr.mxu0 0.0
      %4251 = vmatpush1.msra.mxu0 0.0
      %4252 = vmatprep.subr.mxu0 0.0
      %4253 = vmatpush1.msra.mxu0 0.0
      %4254 = vmatprep.subr.mxu0 0.0
      %4255 = vmatpush1.msra.mxu0 0.0
      %4256 = vmatprep.subr.mxu0 0.0
      %4257 = vmatpush1.msra.mxu0 0.0
      %4258 = vmatprep.subr.mxu0 0.0
      %4259 = vmatpush1.msra.mxu0 0.0
      %4260 = vmatprep.subr.mxu0 0.0
      %4261 = vmatpush1.msra.mxu0 0.0
      %4262 = vmatprep.subr.mxu0 0.0
      %4263 = vmatpush1.msra.mxu0 0.0
      %4264 = vmatprep.subr.mxu0 0.0
      %4265 = vmatpush1.msra.mxu0 0.0
      %4266 = vmatprep.subr.mxu0 0.0
      %4267 = vmatpush1.msra.mxu0 0.0
      %4268 = vmatprep.subr.mxu0 0.0
      %4269 = vmatpush1.msra.mxu0 0.0
      %4270 = vmatprep.subr.mxu0 0.0
      %4271 = vmatpush1.msra.mxu0 0.0
      %4272 = vmatprep.subr.mxu0 0.0
      %4273 = vmatpush1.msra.mxu0 0.0
      %4274 = vmatprep.subr.mxu0 0.0
      %4275 = vmatpush1.msra.mxu0 0.0
      %4276 = vmatprep.subr.mxu0 0.0
      %4277 = vmatpush1.msra.mxu0 0.0
      %4278 = vmatprep.subr.mxu0 0.0
      %4279 = vmatpush1.msra.mxu0 0.0
      %4280 = vmatprep.subr.mxu0 0.0
      %4281 = vmatpush1.msra.mxu0 0.0
      %4282 = vmatprep.subr.mxu0 0.0
      %4283 = vmatpush1.msra.mxu0 0.0
      %4284 = vmatprep.subr.mxu0 0.0
      %4285 = vmatpush1.msra.mxu0 0.0
      %4286 = vmatprep.subr.mxu0 0.0
      %4287 = vmatpush1.msra.mxu0 0.0
      %4288 = vmatprep.subr.mxu0 0.0
      %4289 = vmatpush1.msra.mxu0 0.0
      %4290 = vmatprep.mubr.f32.mxu0 0.0
      %4291 = vmatmul.mubr.f32.gmra.mrb[0].mxu0 %v4218
      %v4292 = vpop.f32.mrb[0].mxu0
      %v4293 = vadd.f32 0.0, %v4292
      %v4294 = vpop.f32.mrb[0].mxu0
      %v4295 = vadd.f32 0.0, %v4294
      %4296 = vdwg.mxu0
      %4297 = vmatprep.subr.mxu0 0.0
      %4298 = vmatpush1.msra.mxu0 %v4224
      %4299 = vmatprep.subr.mxu0 0.0
      %4300 = vmatpush1.msra.mxu0 0.0
      %4301 = vmatprep.subr.mxu0 0.0
      %4302 = vmatpush1.msra.mxu0 0.0
      %4303 = vmatprep.subr.mxu0 0.0
      %4304 = vmatpush1.msra.mxu0 0.0
      %4305 = vmatprep.subr.mxu0 0.0
      %4306 = vmatpush1.msra.mxu0 0.0
      %4307 = vmatprep.subr.mxu0 0.0
      %4308 = vmatpush1.msra.mxu0 0.0
      %4309 = vmatprep.subr.mxu0 0.0
      %4310 = vmatpush1.msra.mxu0 0.0
      %4311 = vmatprep.subr.mxu0 0.0
      %4312 = vmatpush1.msra.mxu0 0.0
      %4313 = vmatprep.subr.mxu0 0.0
      %4314 = vmatpush1.msra.mxu0 0.0
      %4315 = vmatprep.subr.mxu0 0.0
      %4316 = vmatpush1.msra.mxu0 0.0
      %4317 = vmatprep.subr.mxu0 0.0
      %4318 = vmatpush1.msra.mxu0 0.0
      %4319 = vmatprep.subr.mxu0 0.0
      %4320 = vmatpush1.msra.mxu0 0.0
      %4321 = vmatprep.subr.mxu0 0.0
      %4322 = vmatpush1.msra.mxu0 0.0
      %4323 = vmatprep.subr.mxu0 0.0
      %4324 = vmatpush1.msra.mxu0 0.0
      %4325 = vmatprep.subr.mxu0 0.0
      %4326 = vmatpush1.msra.mxu0 0.0
      %4327 = vmatprep.subr.mxu0 0.0
      %4328 = vmatpush1.msra.mxu0 0.0
      %4329 = vmatprep.subr.mxu0 0.0
      %4330 = vmatpush1.msra.mxu0 0.0
      %4331 = vmatprep.subr.mxu0 0.0
      %4332 = vmatpush1.msra.mxu0 0.0
      %4333 = vmatprep.subr.mxu0 0.0
      %4334 = vmatpush1.msra.mxu0 0.0
      %4335 = vmatprep.subr.mxu0 0.0
      %4336 = vmatpush1.msra.mxu0 0.0
      %4337 = vmatprep.subr.mxu0 0.0
      %4338 = vmatpush1.msra.mxu0 0.0
      %4339 = vmatprep.subr.mxu0 0.0
      %4340 = vmatpush1.msra.mxu0 0.0
      %4341 = vmatprep.subr.mxu0 0.0
      %4342 = vmatpush1.msra.mxu0 0.0
      %4343 = vmatprep.subr.mxu0 0.0
      %4344 = vmatpush1.msra.mxu0 0.0
      %4345 = vmatprep.subr.mxu0 0.0
      %4346 = vmatpush1.msra.mxu0 0.0
      %4347 = vmatprep.subr.mxu0 0.0
      %4348 = vmatpush1.msra.mxu0 0.0
      %4349 = vmatprep.subr.mxu0 0.0
      %4350 = vmatpush1.msra.mxu0 0.0
      %4351 = vmatprep.subr.mxu0 0.0
      %4352 = vmatpush1.msra.mxu0 0.0
      %4353 = vmatprep.subr.mxu0 0.0
      %4354 = vmatpush1.msra.mxu0 0.0
      %4355 = vmatprep.subr.mxu0 0.0
      %4356 = vmatpush1.msra.mxu0 0.0
      %4357 = vmatprep.subr.mxu0 0.0
      %4358 = vmatpush1.msra.mxu0 0.0
      %4359 = vmatprep.subr.mxu0 0.0
      %4360 = vmatpush1.msra.mxu0 0.0
      %4361 = vmatprep.mubr.f32.mxu0 0.0
      %4362 = vmatmul.mubr.f32.gmra.mrb[0].mxu0 %v4218
      %v4363 = vpop.f32.mrb[0].mxu0
      %v4364 = vadd.f32 0.0, %v4363
      %v4365 = vpop.f32.mrb[0].mxu0
      %4366 = vdwg.mxu0
      %v4367 = vadd.f32 %v4204, %v4293
      %v4368 = vadd.f32 %v4205, %v4295
      %v4369 = vadd.f32 %v4206, %v4364
      %s4370 = scalar_lea.vmem %s11, 28
      %v4371 = vld [vmem:[%s4370] sm:$0xf]
      %4372 = vrot.lane.b32.xlu0 %v3167, 91
      %v4373 = vpop.permute.xlu0 %4372
      %4374 = vrot.lane.b32.xlu0 %v3169, 91
      %v4375 = vpop.permute.xlu0 %4374
      %4376 = vrot.lane.b32.xlu0 %v3238, 91
      %v4377 = vpop.permute.xlu0 %4376
      %v4378 = vsel %vm2210, %v4373, %v4375
      %v4379 = vsel %vm2210, %v4375, %v4377
      %v4381 = vsel %vm1080, %v4371, 0
      %v4383 = vsel %vm1084, %v4378, 0
      %v4385 = vsel %vm1084, %v4379, 0
      %v4387 = vsel %vm1084, %v4377, 0
      %4389 = vmatprep.subr.mxu0 %v4385
      %4390 = vmatpush1.msra.mxu0 %v4383
      %4391 = vmatprep.subr.mxu0 0.0
      %4392 = vmatpush1.msra.mxu0 0.0
      %4393 = vmatprep.subr.mxu0 0.0
      %4394 = vmatpush1.msra.mxu0 0.0
      %4395 = vmatprep.subr.mxu0 0.0
      %4396 = vmatpush1.msra.mxu0 0.0
      %4397 = vmatprep.subr.mxu0 0.0
      %4398 = vmatpush1.msra.mxu0 0.0
      %4399 = vmatprep.subr.mxu0 0.0
      %4400 = vmatpush1.msra.mxu0 0.0
      %4401 = vmatprep.subr.mxu0 0.0
      %4402 = vmatpush1.msra.mxu0 0.0
      %4403 = vmatprep.subr.mxu0 0.0
      %4404 = vmatpush1.msra.mxu0 0.0
      %4405 = vmatprep.subr.mxu0 0.0
      %4406 = vmatpush1.msra.mxu0 0.0
      %4407 = vmatprep.subr.mxu0 0.0
      %4408 = vmatpush1.msra.mxu0 0.0
      %4409 = vmatprep.subr.mxu0 0.0
      %4410 = vmatpush1.msra.mxu0 0.0
      %4411 = vmatprep.subr.mxu0 0.0
      %4412 = vmatpush1.msra.mxu0 0.0
      %4413 = vmatprep.subr.mxu0 0.0
      %4414 = vmatpush1.msra.mxu0 0.0
      %4415 = vmatprep.subr.mxu0 0.0
      %4416 = vmatpush1.msra.mxu0 0.0
      %4417 = vmatprep.subr.mxu0 0.0
      %4418 = vmatpush1.msra.mxu0 0.0
      %4419 = vmatprep.subr.mxu0 0.0
      %4420 = vmatpush1.msra.mxu0 0.0
      %4421 = vmatprep.subr.mxu0 0.0
      %4422 = vmatpush1.msra.mxu0 0.0
      %4423 = vmatprep.subr.mxu0 0.0
      %4424 = vmatpush1.msra.mxu0 0.0
      %4425 = vmatprep.subr.mxu0 0.0
      %4426 = vmatpush1.msra.mxu0 0.0
      %4427 = vmatprep.subr.mxu0 0.0
      %4428 = vmatpush1.msra.mxu0 0.0
      %4429 = vmatprep.subr.mxu0 0.0
      %4430 = vmatpush1.msra.mxu0 0.0
      %4431 = vmatprep.subr.mxu0 0.0
      %4432 = vmatpush1.msra.mxu0 0.0
      %4433 = vmatprep.subr.mxu0 0.0
      %4434 = vmatpush1.msra.mxu0 0.0
      %4435 = vmatprep.subr.mxu0 0.0
      %4436 = vmatpush1.msra.mxu0 0.0
      %4437 = vmatprep.subr.mxu0 0.0
      %4438 = vmatpush1.msra.mxu0 0.0
      %4439 = vmatprep.subr.mxu0 0.0
      %4440 = vmatpush1.msra.mxu0 0.0
      %4441 = vmatprep.subr.mxu0 0.0
      %4442 = vmatpush1.msra.mxu0 0.0
      %4443 = vmatprep.subr.mxu0 0.0
      %4444 = vmatpush1.msra.mxu0 0.0
      %4445 = vmatprep.subr.mxu0 0.0
      %4446 = vmatpush1.msra.mxu0 0.0
      %4447 = vmatprep.subr.mxu0 0.0
      %4448 = vmatpush1.msra.mxu0 0.0
      %4449 = vmatprep.subr.mxu0 0.0
      %4450 = vmatpush1.msra.mxu0 0.0
      %4451 = vmatprep.subr.mxu0 0.0
      %4452 = vmatpush1.msra.mxu0 0.0
      %4453 = vmatprep.mubr.f32.mxu0 0.0
      %4454 = vmatmul.mubr.f32.gmra.mrb[0].mxu0 %v4381
      %v4455 = vpop.f32.mrb[0].mxu0
      %v4456 = vadd.f32 0.0, %v4455
      %v4457 = vpop.f32.mrb[0].mxu0
      %v4458 = vadd.f32 0.0, %v4457
      %4459 = vdwg.mxu0
      %4460 = vmatprep.subr.mxu0 0.0
      %4461 = vmatpush1.msra.mxu0 %v4387
      %4462 = vmatprep.subr.mxu0 0.0
      %4463 = vmatpush1.msra.mxu0 0.0
      %4464 = vmatprep.subr.mxu0 0.0
      %4465 = vmatpush1.msra.mxu0 0.0
      %4466 = vmatprep.subr.mxu0 0.0
      %4467 = vmatpush1.msra.mxu0 0.0
      %4468 = vmatprep.subr.mxu0 0.0
      %4469 = vmatpush1.msra.mxu0 0.0
      %4470 = vmatprep.subr.mxu0 0.0
      %4471 = vmatpush1.msra.mxu0 0.0
      %4472 = vmatprep.subr.mxu0 0.0
      %4473 = vmatpush1.msra.mxu0 0.0
      %4474 = vmatprep.subr.mxu0 0.0
      %4475 = vmatpush1.msra.mxu0 0.0
      %4476 = vmatprep.subr.mxu0 0.0
      %4477 = vmatpush1.msra.mxu0 0.0
      %4478 = vmatprep.subr.mxu0 0.0
      %4479 = vmatpush1.msra.mxu0 0.0
      %4480 = vmatprep.subr.mxu0 0.0
      %4481 = vmatpush1.msra.mxu0 0.0
      %4482 = vmatprep.subr.mxu0 0.0
      %4483 = vmatpush1.msra.mxu0 0.0
      %4484 = vmatprep.subr.mxu0 0.0
      %4485 = vmatpush1.msra.mxu0 0.0
      %4486 = vmatprep.subr.mxu0 0.0
      %4487 = vmatpush1.msra.mxu0 0.0
      %4488 = vmatprep.subr.mxu0 0.0
      %4489 = vmatpush1.msra.mxu0 0.0
      %4490 = vmatprep.subr.mxu0 0.0
      %4491 = vmatpush1.msra.mxu0 0.0
      %4492 = vmatprep.subr.mxu0 0.0
      %4493 = vmatpush1.msra.mxu0 0.0
      %4494 = vmatprep.subr.mxu0 0.0
      %4495 = vmatpush1.msra.mxu0 0.0
      %4496 = vmatprep.subr.mxu0 0.0
      %4497 = vmatpush1.msra.mxu0 0.0
      %4498 = vmatprep.subr.mxu0 0.0
      %4499 = vmatpush1.msra.mxu0 0.0
      %4500 = vmatprep.subr.mxu0 0.0
      %4501 = vmatpush1.msra.mxu0 0.0
      %4502 = vmatprep.subr.mxu0 0.0
      %4503 = vmatpush1.msra.mxu0 0.0
      %4504 = vmatprep.subr.mxu0 0.0
      %4505 = vmatpush1.msra.mxu0 0.0
      %4506 = vmatprep.subr.mxu0 0.0
      %4507 = vmatpush1.msra.mxu0 0.0
      %4508 = vmatprep.subr.mxu0 0.0
      %4509 = vmatpush1.msra.mxu0 0.0
      %4510 = vmatprep.subr.mxu0 0.0
      %4511 = vmatpush1.msra.mxu0 0.0
      %4512 = vmatprep.subr.mxu0 0.0
      %4513 = vmatpush1.msra.mxu0 0.0
      %4514 = vmatprep.subr.mxu0 0.0
      %4515 = vmatpush1.msra.mxu0 0.0
      %4516 = vmatprep.subr.mxu0 0.0
      %4517 = vmatpush1.msra.mxu0 0.0
      %4518 = vmatprep.subr.mxu0 0.0
      %4519 = vmatpush1.msra.mxu0 0.0
      %4520 = vmatprep.subr.mxu0 0.0
      %4521 = vmatpush1.msra.mxu0 0.0
      %4522 = vmatprep.subr.mxu0 0.0
      %4523 = vmatpush1.msra.mxu0 0.0
      %4524 = vmatprep.mubr.f32.mxu0 0.0
      %4525 = vmatmul.mubr.f32.gmra.mrb[0].mxu0 %v4381
      %v4526 = vpop.f32.mrb[0].mxu0
      %v4527 = vadd.f32 0.0, %v4526
      %v4528 = vpop.f32.mrb[0].mxu0
      %4529 = vdwg.mxu0
      %v4530 = vadd.f32 %v4367, %v4456
      %v4531 = vadd.f32 %v4368, %v4458
      %v4532 = vadd.f32 %v4369, %v4527
      %s4533 = scalar_lea.vmem %s11, 32
      %v4534 = vld [vmem:[%s4533] sm:$0xf]
      %4535 = vrot.lane.b32.xlu0 %v3167, 90
      %v4536 = vpop.permute.xlu0 %4535
      %4537 = vrot.lane.b32.xlu0 %v3169, 90
      %v4538 = vpop.permute.xlu0 %4537
      %4539 = vrot.lane.b32.xlu0 %v3238, 90
      %v4540 = vpop.permute.xlu0 %4539
      %v4541 = vsel %vm2374, %v4536, %v4538
      %v4542 = vsel %vm2374, %v4538, %v4540
      %v4544 = vsel %vm1080, %v4534, 0
      %v4546 = vsel %vm1084, %v4541, 0
      %v4548 = vsel %vm1084, %v4542, 0
      %v4550 = vsel %vm1084, %v4540, 0
      %4552 = vmatprep.subr.mxu0 %v4548
      %4553 = vmatpush1.msra.mxu0 %v4546
      %4554 = vmatprep.subr.mxu0 0.0
      %4555 = vmatpush1.msra.mxu0 0.0
      %4556 = vmatprep.subr.mxu0 0.0
      %4557 = vmatpush1.msra.mxu0 0.0
      %4558 = vmatprep.subr.mxu0 0.0
      %4559 = vmatpush1.msra.mxu0 0.0
      %4560 = vmatprep.subr.mxu0 0.0
      %4561 = vmatpush1.msra.mxu0 0.0
      %4562 = vmatprep.subr.mxu0 0.0
      %4563 = vmatpush1.msra.mxu0 0.0
      %4564 = vmatprep.subr.mxu0 0.0
      %4565 = vmatpush1.msra.mxu0 0.0
      %4566 = vmatprep.subr.mxu0 0.0
      %4567 = vmatpush1.msra.mxu0 0.0
      %4568 = vmatprep.subr.mxu0 0.0
      %4569 = vmatpush1.msra.mxu0 0.0
      %4570 = vmatprep.subr.mxu0 0.0
      %4571 = vmatpush1.msra.mxu0 0.0
      %4572 = vmatprep.subr.mxu0 0.0
      %4573 = vmatpush1.msra.mxu0 0.0
      %4574 = vmatprep.subr.mxu0 0.0
      %4575 = vmatpush1.msra.mxu0 0.0
      %4576 = vmatprep.subr.mxu0 0.0
      %4577 = vmatpush1.msra.mxu0 0.0
      %4578 = vmatprep.subr.mxu0 0.0
      %4579 = vmatpush1.msra.mxu0 0.0
      %4580 = vmatprep.subr.mxu0 0.0
      %4581 = vmatpush1.msra.mxu0 0.0
      %4582 = vmatprep.subr.mxu0 0.0
      %4583 = vmatpush1.msra.mxu0 0.0
      %4584 = vmatprep.subr.mxu0 0.0
      %4585 = vmatpush1.msra.mxu0 0.0
      %4586 = vmatprep.subr.mxu0 0.0
      %4587 = vmatpush1.msra.mxu0 0.0
      %4588 = vmatprep.subr.mxu0 0.0
      %4589 = vmatpush1.msra.mxu0 0.0
      %4590 = vmatprep.subr.mxu0 0.0
      %4591 = vmatpush1.msra.mxu0 0.0
      %4592 = vmatprep.subr.mxu0 0.0
      %4593 = vmatpush1.msra.mxu0 0.0
      %4594 = vmatprep.subr.mxu0 0.0
      %4595 = vmatpush1.msra.mxu0 0.0
      %4596 = vmatprep.subr.mxu0 0.0
      %4597 = vmatpush1.msra.mxu0 0.0
      %4598 = vmatprep.subr.mxu0 0.0
      %4599 = vmatpush1.msra.mxu0 0.0
      %4600 = vmatprep.subr.mxu0 0.0
      %4601 = vmatpush1.msra.mxu0 0.0
      %4602 = vmatprep.subr.mxu0 0.0
      %4603 = vmatpush1.msra.mxu0 0.0
      %4604 = vmatprep.subr.mxu0 0.0
      %4605 = vmatpush1.msra.mxu0 0.0
      %4606 = vmatprep.subr.mxu0 0.0
      %4607 = vmatpush1.msra.mxu0 0.0
      %4608 = vmatprep.subr.mxu0 0.0
      %4609 = vmatpush1.msra.mxu0 0.0
      %4610 = vmatprep.subr.mxu0 0.0
      %4611 = vmatpush1.msra.mxu0 0.0
      %4612 = vmatprep.subr.mxu0 0.0
      %4613 = vmatpush1.msra.mxu0 0.0
      %4614 = vmatprep.subr.mxu0 0.0
      %4615 = vmatpush1.msra.mxu0 0.0
      %4616 = vmatprep.mubr.f32.mxu0 0.0
      %4617 = vmatmul.mubr.f32.gmra.mrb[0].mxu0 %v4544
      %v4618 = vpop.f32.mrb[0].mxu0
      %v4619 = vadd.f32 0.0, %v4618
      %v4620 = vpop.f32.mrb[0].mxu0
      %v4621 = vadd.f32 0.0, %v4620
      %4622 = vdwg.mxu0
      %4623 = vmatprep.subr.mxu0 0.0
      %4624 = vmatpush1.msra.mxu0 %v4550
      %4625 = vmatprep.subr.mxu0 0.0
      %4626 = vmatpush1.msra.mxu0 0.0
      %4627 = vmatprep.subr.mxu0 0.0
      %4628 = vmatpush1.msra.mxu0 0.0
      %4629 = vmatprep.subr.mxu0 0.0
      %4630 = vmatpush1.msra.mxu0 0.0
      %4631 = vmatprep.subr.mxu0 0.0
      %4632 = vmatpush1.msra.mxu0 0.0
      %4633 = vmatprep.subr.mxu0 0.0
      %4634 = vmatpush1.msra.mxu0 0.0
      %4635 = vmatprep.subr.mxu0 0.0
      %4636 = vmatpush1.msra.mxu0 0.0
      %4637 = vmatprep.subr.mxu0 0.0
      %4638 = vmatpush1.msra.mxu0 0.0
      %4639 = vmatprep.subr.mxu0 0.0
      %4640 = vmatpush1.msra.mxu0 0.0
      %4641 = vmatprep.subr.mxu0 0.0
      %4642 = vmatpush1.msra.mxu0 0.0
      %4643 = vmatprep.subr.mxu0 0.0
      %4644 = vmatpush1.msra.mxu0 0.0
      %4645 = vmatprep.subr.mxu0 0.0
      %4646 = vmatpush1.msra.mxu0 0.0
      %4647 = vmatprep.subr.mxu0 0.0
      %4648 = vmatpush1.msra.mxu0 0.0
      %4649 = vmatprep.subr.mxu0 0.0
      %4650 = vmatpush1.msra.mxu0 0.0
      %4651 = vmatprep.subr.mxu0 0.0
      %4652 = vmatpush1.msra.mxu0 0.0
      %4653 = vmatprep.subr.mxu0 0.0
      %4654 = vmatpush1.msra.mxu0 0.0
      %4655 = vmatprep.subr.mxu0 0.0
      %4656 = vmatpush1.msra.mxu0 0.0
      %4657 = vmatprep.subr.mxu0 0.0
      %4658 = vmatpush1.msra.mxu0 0.0
      %4659 = vmatprep.subr.mxu0 0.0
      %4660 = vmatpush1.msra.mxu0 0.0
      %4661 = vmatprep.subr.mxu0 0.0
      %4662 = vmatpush1.msra.mxu0 0.0
      %4663 = vmatprep.subr.mxu0 0.0
      %4664 = vmatpush1.msra.mxu0 0.0
      %4665 = vmatprep.subr.mxu0 0.0
      %4666 = vmatpush1.msra.mxu0 0.0
      %4667 = vmatprep.subr.mxu0 0.0
      %4668 = vmatpush1.msra.mxu0 0.0
      %4669 = vmatprep.subr.mxu0 0.0
      %4670 = vmatpush1.msra.mxu0 0.0
      %4671 = vmatprep.subr.mxu0 0.0
      %4672 = vmatpush1.msra.mxu0 0.0
      %4673 = vmatprep.subr.mxu0 0.0
      %4674 = vmatpush1.msra.mxu0 0.0
      %4675 = vmatprep.subr.mxu0 0.0
      %4676 = vmatpush1.msra.mxu0 0.0
      %4677 = vmatprep.subr.mxu0 0.0
      %4678 = vmatpush1.msra.mxu0 0.0
      %4679 = vmatprep.subr.mxu0 0.0
      %4680 = vmatpush1.msra.mxu0 0.0
      %4681 = vmatprep.subr.mxu0 0.0
      %4682 = vmatpush1.msra.mxu0 0.0
      %4683 = vmatprep.subr.mxu0 0.0
      %4684 = vmatpush1.msra.mxu0 0.0
      %4685 = vmatprep.subr.mxu0 0.0
      %4686 = vmatpush1.msra.mxu0 0.0
      %4687 = vmatprep.mubr.f32.mxu0 0.0
      %4688 = vmatmul.mubr.f32.gmra.mrb[0].mxu0 %v4544
      %v4689 = vpop.f32.mrb[0].mxu0
      %v4690 = vadd.f32 0.0, %v4689
      %v4691 = vpop.f32.mrb[0].mxu0
      %4692 = vdwg.mxu0
      %v4693 = vadd.f32 %v4530, %v4619
      %v4694 = vadd.f32 %v4531, %v4621
      %v4695 = vadd.f32 %v4532, %v4690
      %v4696 = vld [vmem:[%s12] sm:$0xf]
      %4698 = vset.pattern.permute.xlu0 0
      %4699 = vperm.xlu0 %4698, %v4696
      %v4700 = vpop.permute.xlu0 %4699
      %v4703 = vsel %vm2608, %v4695, 0
      %4705 = vmatprep.subr.mxu0 %v2531
      %4706 = vmatpush1.msra.mxu0 %v2530
      %4707 = vmatprep.subr.mxu0 %v2533
      %4708 = vmatpush1.msra.mxu0 %v2532
      %4709 = vmatprep.subr.mxu0 %v2535
      %4710 = vmatpush1.msra.mxu0 %v2534
      %4711 = vmatprep.subr.mxu0 %v2537
      %4712 = vmatpush1.msra.mxu0 %v2536
      %4713 = vmatprep.subr.mxu0 %v2539
      %4714 = vmatpush1.msra.mxu0 %v2538
      %4715 = vmatprep.subr.mxu0 %v2541
      %4716 = vmatpush1.msra.mxu0 %v2540
      %4717 = vmatprep.subr.mxu0 %v2543
      %4718 = vmatpush1.msra.mxu0 %v2542
      %4719 = vmatprep.subr.mxu0 %v2545
      %4720 = vmatpush1.msra.mxu0 %v2544
      %4721 = vmatprep.subr.mxu0 %v2547
      %4722 = vmatpush1.msra.mxu0 %v2546
      %4723 = vmatprep.subr.mxu0 %v2549
      %4724 = vmatpush1.msra.mxu0 %v2548
      %4725 = vmatprep.subr.mxu0 %v2551
      %4726 = vmatpush1.msra.mxu0 %v2550
      %4727 = vmatprep.subr.mxu0 %v2553
      %4728 = vmatpush1.msra.mxu0 %v2552
      %4729 = vmatprep.subr.mxu0 %v2555
      %4730 = vmatpush1.msra.mxu0 %v2554
      %4731 = vmatprep.subr.mxu0 %v2557
      %4732 = vmatpush1.msra.mxu0 %v2556
      %4733 = vmatprep.subr.mxu0 %v2559
      %4734 = vmatpush1.msra.mxu0 %v2558
      %4735 = vmatprep.subr.mxu0 %v2561
      %4736 = vmatpush1.msra.mxu0 %v2560
      %4737 = vmatprep.subr.mxu0 %v2563
      %4738 = vmatpush1.msra.mxu0 %v2562
      %4739 = vmatprep.subr.mxu0 %v2565
      %4740 = vmatpush1.msra.mxu0 %v2564
      %4741 = vmatprep.subr.mxu0 %v2567
      %4742 = vmatpush1.msra.mxu0 %v2566
      %4743 = vmatprep.subr.mxu0 %v2569
      %4744 = vmatpush1.msra.mxu0 %v2568
      %4745 = vmatprep.subr.mxu0 %v2571
      %4746 = vmatpush1.msra.mxu0 %v2570
      %4747 = vmatprep.subr.mxu0 %v2573
      %4748 = vmatpush1.msra.mxu0 %v2572
      %4749 = vmatprep.subr.mxu0 %v2575
      %4750 = vmatpush1.msra.mxu0 %v2574
      %4751 = vmatprep.subr.mxu0 %v2577
      %4752 = vmatpush1.msra.mxu0 %v2576
      %4753 = vmatprep.subr.mxu0 %v2579
      %4754 = vmatpush1.msra.mxu0 %v2578
      %4755 = vmatprep.subr.mxu0 %v2581
      %4756 = vmatpush1.msra.mxu0 %v2580
      %4757 = vmatprep.subr.mxu0 %v2583
      %4758 = vmatpush1.msra.mxu0 %v2582
      %4759 = vmatprep.subr.mxu0 %v2585
      %4760 = vmatpush1.msra.mxu0 %v2584
      %4761 = vmatprep.subr.mxu0 %v2587
      %4762 = vmatpush1.msra.mxu0 %v2586
      %4763 = vmatprep.subr.mxu0 %v2589
      %4764 = vmatpush1.msra.mxu0 %v2588
      %4765 = vmatprep.subr.mxu0 %v2591
      %4766 = vmatpush1.msra.mxu0 %v2590
      %4767 = vmatprep.subr.mxu0 %v2593
      %4768 = vmatpush1.msra.mxu0 %v2592
      %4769 = vmatprep.mubr.f32.mxu0 %v4694
      %4770 = vmatmul.mubr.f32.gmra.mrb[0].mxu0 %v4693
      %v4771 = vpop.f32.mrb[0].mxu0
      %v4772 = vadd.f32 %v4700, %v4771
      %v4773 = vpop.f32.mrb[0].mxu0
      %v4774 = vadd.f32 %v4700, %v4773
      %4775 = vdwg.mxu0
      %4776 = vmatprep.subr.mxu0 %v2595
      %4777 = vmatpush1.msra.mxu0 %v2594
      %4778 = vmatprep.subr.mxu0 %v2597
      %4779 = vmatpush1.msra.mxu0 %v2596
      %4780 = vmatprep.subr.mxu0 %v2599
      %4781 = vmatpush1.msra.mxu0 %v2598
      %4782 = vmatprep.subr.mxu0 %v2601
      %4783 = vmatpush1.msra.mxu0 %v2600
      %4784 = vmatprep.subr.mxu0 0.0
      %4785 = vmatpush1.msra.mxu0 0.0
      %4786 = vmatprep.subr.mxu0 0.0
      %4787 = vmatpush1.msra.mxu0 0.0
      %4788 = vmatprep.subr.mxu0 0.0
      %4789 = vmatpush1.msra.mxu0 0.0
      %4790 = vmatprep.subr.mxu0 0.0
      %4791 = vmatpush1.msra.mxu0 0.0
      %4792 = vmatprep.subr.mxu0 0.0
      %4793 = vmatpush1.msra.mxu0 0.0
      %4794 = vmatprep.subr.mxu0 0.0
      %4795 = vmatpush1.msra.mxu0 0.0
      %4796 = vmatprep.subr.mxu0 0.0
      %4797 = vmatpush1.msra.mxu0 0.0
      %4798 = vmatprep.subr.mxu0 0.0
      %4799 = vmatpush1.msra.mxu0 0.0
      %4800 = vmatprep.subr.mxu0 0.0
      %4801 = vmatpush1.msra.mxu0 0.0
      %4802 = vmatprep.subr.mxu0 0.0
      %4803 = vmatpush1.msra.mxu0 0.0
      %4804 = vmatprep.subr.mxu0 0.0
      %4805 = vmatpush1.msra.mxu0 0.0
      %4806 = vmatprep.subr.mxu0 0.0
      %4807 = vmatpush1.msra.mxu0 0.0
      %4808 = vmatprep.subr.mxu0 0.0
      %4809 = vmatpush1.msra.mxu0 0.0
      %4810 = vmatprep.subr.mxu0 0.0
      %4811 = vmatpush1.msra.mxu0 0.0
      %4812 = vmatprep.subr.mxu0 0.0
      %4813 = vmatpush1.msra.mxu0 0.0
      %4814 = vmatprep.subr.mxu0 0.0
      %4815 = vmatpush1.msra.mxu0 0.0
      %4816 = vmatprep.subr.mxu0 0.0
      %4817 = vmatpush1.msra.mxu0 0.0
      %4818 = vmatprep.subr.mxu0 0.0
      %4819 = vmatpush1.msra.mxu0 0.0
      %4820 = vmatprep.subr.mxu0 0.0
      %4821 = vmatpush1.msra.mxu0 0.0
      %4822 = vmatprep.subr.mxu0 0.0
      %4823 = vmatpush1.msra.mxu0 0.0
      %4824 = vmatprep.subr.mxu0 0.0
      %4825 = vmatpush1.msra.mxu0 0.0
      %4826 = vmatprep.subr.mxu0 0.0
      %4827 = vmatpush1.msra.mxu0 0.0
      %4828 = vmatprep.subr.mxu0 0.0
      %4829 = vmatpush1.msra.mxu0 0.0
      %4830 = vmatprep.subr.mxu0 0.0
      %4831 = vmatpush1.msra.mxu0 0.0
      %4832 = vmatprep.subr.mxu0 0.0
      %4833 = vmatpush1.msra.mxu0 0.0
      %4834 = vmatprep.subr.mxu0 0.0
      %4835 = vmatpush1.msra.mxu0 0.0
      %4836 = vmatprep.subr.mxu0 0.0
      %4837 = vmatpush1.msra.mxu0 0.0
      %4838 = vmatprep.subr.mxu0 0.0
      %4839 = vmatpush1.msra.mxu0 0.0
      %4840 = vmatprep.mubr.f32.mxu0 0.0
      %4841 = vmatmul.mubr.f32.gmra.mrb[0].mxu0 %v4703
      %v4842 = vpop.f32.mrb[0].mxu0
      %v4843 = vadd.f32 %v4772, %v4842
      %v4844 = vpop.f32.mrb[0].mxu0
      %v4845 = vadd.f32 %v4774, %v4844
      %4846 = vdwg.mxu0
      %v4847 = vadd.f32 %v4843, %v441
      %v4848 = vadd.f32 %v4845, %v475
      %v4851 = vcombine.low %v4847, %v4848
      %4853 = vst [vmem:[%s440] sm:$0xff] %v4851
      %p4854 = scmp.lt.s32.totalorder %s24, 1
      %s4855 = scalar_select %p4854, %s24, 1
      %s4856 = smul.addr %s4855, 2
      %s4857 = smul.addr %s4856, 4
      %s4858 = scalar_lea.vmem %s13, %s4857
      // Predicated region
      $region73: #{residual_cnn_forward.1} parent=71 // pred_check
        %p4859 = pneg %p320
      $region74: #{residual_cnn_forward.1} parent=71 // pred_check_branch
        %4861 = sbr.rel (%p4859) target = $region76
      $region75: #{residual_cnn_forward.1} parent=71 // pred_region
        _
      $region76: #{residual_cnn_forward.1} parent=71 // pred_fallthru
        _
    $region72: #{residual_cnn_forward.1} parent=5 // pred_fallthru
      _
    %p4862 = scmp.le.s32.totalorder 2, %s19
    // Predicated region
    $region77: #{residual_cnn_forward.1} parent=5 // pred_check
      %p4863 = pneg %p4862
    $region78: #{residual_cnn_forward.1} parent=5 // pred_check_branch
      %4865 = sbr.rel (%p4863) target = $region80
    $region79: #{residual_cnn_forward.1} parent=5 // pred_region
      %s4866 = ssub.s32 %s19, 2
      // Predicated region
      $region81: #{residual_cnn_forward.1} parent=79 // pred_check
        %p4867 = pneg %p326
      $region82: #{residual_cnn_forward.1} parent=79 // pred_check_branch
        %4869 = sbr.rel (%p4867) target = $region84
      $region83: #{residual_cnn_forward.1} parent=79 // pred_region
        %p4870 = scmp.lt.s32.totalorder %s25, 1
        %s4871 = scalar_select %p4870, %s25, 1
        %s4872 = smul.addr %s4871, 2
        %s4873 = smul.addr %s4872, 4
        %s4874 = scalar_lea.vmem %s13, %s4873
      $region84: #{residual_cnn_forward.1} parent=79 // pred_fallthru
        _
    $region80: #{residual_cnn_forward.1} parent=5 // pred_fallthru
      _
  $region6: #{residual_cnn_forward.1} parent=0 // loop_footer
    %s23 = sadd.s32 1, %s19
  $region7: #{residual_cnn_forward.1} parent=0 // loop_footer_branch
    %18 = sbr.rel target = $region3
  $region8: #{residual_cnn_forward.1} parent=0 // loop_exit
    _

</llo_original>
